<compile_context>
chip_gen: v7x
topology: tpu7x:2x2x1
jax: 0.10.0
libtpu: 0.0.40
codegen_flags: <defaults>
</compile_context>

<pallas_src>
import math
import functools

import jax
import jax.numpy as jnp
from jax.experimental import pallas as pl
from jax.experimental.pallas import tpu as pltpu

NEG = -1e9                     # finite stand-in for float('-inf') in the masks

# MXU operand dtype.  Keep fp32 at these toy sizes for fidelity with the PyTorch
# reference; set to jnp.bfloat16 at realistic d_model/vocab (LayerNorm, softmax,
# residuals and mask arithmetic stay fp32 regardless).
COMPUTE_DTYPE = jnp.float32
# EUP approximate reciprocal in the softmax denominator (perf).  Set False for
# exact parity tests against the PyTorch reference softmax.
APPROX_SOFTMAX_RECIP = True


def _c(v):
    return v.astype(COMPUTE_DTYPE)


def _clamp_vmem(nbytes):
    return int(min(max(nbytes, 4 << 20), 64 << 20))


# ----------------------- Kernel 1: decoder layer stack -----------------------

def _decoder_layers_kernel(x0_ref, mem_ref, tbias_ref, mbias_ref,
                           lng_ref, lnb_ref,
                           s_wqkv_ref, s_bqkv_ref, s_wo_ref, s_bo_ref,
                           c_wq_ref, c_bq_ref, c_wkv_ref, c_bkv_ref,
                           c_wo_ref, c_bo_ref,
                           f_w1_ref, f_b1_ref, f_w2_ref, f_b2_ref,
                           fin_g_ref, fin_b_ref,
                           h_ref,                    # (B, T, D) resident output
                           causal_vmem, attn_vmem, *, nhead):
    l = pl.program_id(0)
    b = pl.program_id(1)
    T, D = x0_ref.shape
    H = nhead
    hd = D // H

    @pl.when(l == 0)
    def _():
        # Load this batch row's embedded input once; it is carried in the
        # VMEM-resident output block across the whole layer axis.
        h_ref[b] = x0_ref[...]
        # Build the causal additive mask once (hoisted out of the layer loop).
        rows = jax.lax.broadcasted_iota(jnp.int32, (T, T), 0)
        cols = jax.lax.broadcasted_iota(jnp.int32, (T, T), 1)
        causal_vmem[...] = jnp.where(cols > rows, NEG, 0.0).astype(jnp.float32)

    x = h_ref[b]                                     # (T, D)
    mem = mem_ref[...]                               # (S, D)

    # Additive biases (kept fp32 even if COMPUTE_DTYPE is bf16).
    self_bias = causal_vmem[...] + tbias_ref[...]    # (T, T)
    cross_bias = mbias_ref[...]                      # (1, S) broadcasts over (T, S)

    def ln(v, g, beta):                              # PyTorch LayerNorm, eps=1e-5
        mu = jnp.mean(v, axis=-1, keepdims=True)
        c = v - mu
        var = jnp.mean(c * c, axis=-1, keepdims=True)
        return c * jax.lax.rsqrt(var + 1e-5) * g + beta

    def softmax(s):                                  # fp32 scores + bias already added
        m = jnp.max(s, axis=-1, keepdims=True)
        p = jnp.exp(s - m)
        den = jnp.sum(p, axis=-1, keepdims=True)
        if APPROX_SOFTMAX_RECIP:
            return p * pl.reciprocal(den, approx=True)
        return p / den

    def mha(q_full, k_full, v_full, bias, wo, bo):
        # q_full:(T,D) k_full/v_full:(S,D).  Heads handled with static 2-D lane
        # slices; per-head outputs land in lane slices of a VMEM scratch so the
        # merge + output projection is ONE lane-dense (T,D)x(D,D) matmul.
        # TODO(synk): for long T/S add an inner KV-chunk loop with online
        # softmax instead of materializing full (T, S) scores per head.
        for h in range(H):
            sl = slice(h * hd, (h + 1) * hd)
            q_h = _c(q_full[:, sl])
            k_h = _c(k_full[:, sl])
            v_h = _c(v_full[:, sl])
            s_h = jax.lax.dot_general(q_h, k_h, (((1,), (1,)), ((), ())),
                                      preferred_element_type=jnp.float32)
            p_h = softmax(s_h + bias)
            attn_vmem[:, sl] = jnp.dot(_c(p_h), v_h,
                                       preferred_element_type=jnp.float32)
        merged = attn_vmem[...]                                    # (T, D)
        return jnp.dot(_c(merged), _c(wo),
                       preferred_element_type=jnp.float32) + bo

    # ---------------- TransformerDecoderLayer (norm_first=True) ----------------
    # Self-attention: fused lane-dense QKV projection (T,D)@(D,3D); the
    # 1/sqrt(hd) scale is pre-folded into the Q weight columns on the host.
    h1 = ln(x, lng_ref[0], lnb_ref[0])
    qkv = jnp.dot(_c(h1), _c(s_wqkv_ref[...]),
                  preferred_element_type=jnp.float32) + s_bqkv_ref[...]
    x = x + mha(qkv[:, :D], qkv[:, D:2 * D], qkv[:, 2 * D:],
                self_bias, s_wo_ref[...], s_bo_ref[...])

    # Cross-attention: q from the decoder stream, fused KV projection of memory.
    h2 = ln(x, lng_ref[1], lnb_ref[1])
    q = jnp.dot(_c(h2), _c(c_wq_ref[...]),
                preferred_element_type=jnp.float32) + c_bq_ref[...]
    kv = jnp.dot(_c(mem), _c(c_wkv_ref[...]),
                 preferred_element_type=jnp.float32) + c_bkv_ref[...]
    x = x + mha(q, kv[:, :D], kv[:, D:], cross_bias,
                c_wo_ref[...], c_bo_ref[...])

    # Feed-forward (ReLU, 4*D hidden).
    h3 = ln(x, lng_ref[2], lnb_ref[2])
    f = jnp.maximum(jnp.dot(_c(h3), _c(f_w1_ref[...]),
                            preferred_element_type=jnp.float32) + f_b1_ref[...], 0.0)
    x = x + jnp.dot(_c(f), _c(f_w2_ref[...]),
                    preferred_element_type=jnp.float32) + f_b2_ref[...]

    h_ref[b] = x

    # Last layer: apply the decoder's final LayerNorm before the (separate,
    # vocab-tiled) output projection kernel.
    @pl.when(l == pl.num_programs(0) - 1)
    def _():
        h_ref[b] = ln(x, fin_g_ref[...], fin_b_ref[...])


def decoder_stack(x, mem, tbias, mbias, p, nhead):
    B, T, D = x.shape
    S = mem.shape[1]
    L = p["lng"].shape[0]
    Dff = p["f_w1"].shape[2]

    kernel = functools.partial(_decoder_layers_kernel, nhead=nhead)

    bmap = lambda l, b: (b, 0, 0)          # per-batch activations / biases
    wmap3 = lambda l, b: (l, 0, 0)         # per-layer weights (outer axis only ->
    wmap4 = lambda l, b: (l, 0, 0, 0)      #  fetched once per layer, not per batch)
    cmap = lambda l, b: (0, 0)             # shared final-LN params

    in_specs = [
        pl.BlockSpec((None, T, D), bmap),          # x0 (embedded input)
        pl.BlockSpec((None, S, D), bmap),          # memory
        pl.BlockSpec((None, 1, T), bmap),          # tgt key-padding bias
        pl.BlockSpec((None, 1, S), bmap),          # memory key-padding bias
        pl.BlockSpec((None, 3, 1, D), wmap4),      # LN gammas (norm1..3)
        pl.BlockSpec((None, 3, 1, D), wmap4),      # LN betas
        pl.BlockSpec((None, D, 3 * D), wmap3),     # self Wqkv (q cols pre-scaled)
        pl.BlockSpec((None, 1, 3 * D), wmap3),     # self bqkv
        pl.BlockSpec((None, D, D), wmap3),         # self Wo
        pl.BlockSpec((None, 1, D), wmap3),         # self bo
        pl.BlockSpec((None, D, D), wmap3),         # cross Wq (pre-scaled)
        pl.BlockSpec((None, 1, D), wmap3),         # cross bq
        pl.BlockSpec((None, D, 2 * D), wmap3),     # cross Wkv
        pl.BlockSpec((None, 1, 2 * D), wmap3),     # cross bkv
        pl.BlockSpec((None, D, D), wmap3),         # cross Wo
        pl.BlockSpec((None, 1, D), wmap3),         # cross bo
        pl.BlockSpec((None, D, Dff), wmap3),       # FFN W1
        pl.BlockSpec((None, 1, Dff), wmap3),       # FFN b1
        pl.BlockSpec((None, Dff, D), wmap3),       # FFN W2
        pl.BlockSpec((None, 1, D), wmap3),         # FFN b2
        pl.BlockSpec((1, D), cmap),                # final gamma
        pl.BlockSpec((1, D), cmap),                # final beta
    ]

    # Explicit scoped-VMEM budget sized from the real per-step residency:
    # double-buffered input blocks + resident (B,T,D) output + scratches, 2x slack.
    blk_bytes = 4 * (T * D + S * D + T + S + 2 * 3 * D
                     + D * 3 * D + 3 * D + D * D + D
                     + D * D + D + D * 2 * D + 2 * D + D * D + D
                     + D * Dff + Dff + Dff * D + D
                     + 2 * D)
    resident_bytes = 2 * blk_bytes + 4 * (B * T * D + T * T + T * D)
    vmem_limit = _clamp_vmem(2 * resident_bytes)

    return pl.pallas_call(
        kernel,
        out_shape=jax.ShapeDtypeStruct((B, T, D), jnp.float32),
        grid=(L, B),
        in_specs=in_specs,
        # Constant block index: the whole (B,T,D) activation stays VMEM-resident
        # across the grid and is written back to HBM exactly once at the end.
        out_specs=pl.BlockSpec((B, T, D), lambda l, b: (0, 0, 0)),
        scratch_shapes=[pltpu.VMEM((T, T), jnp.float32),    # causal mask
                        pltpu.VMEM((T, D), jnp.float32)],   # head-merge buffer
        compiler_params=pltpu.CompilerParams(
            # Layer axis carries the activation; batch axis shares the resident
            # output block, so both are sequential.  (On v7x, shard batch across
            # the two TensorCores at the wrapper level instead.)
            dimension_semantics=("arbitrary", "arbitrary"),
            vmem_limit_bytes=vmem_limit),
    )(x, mem, tbias, mbias,
      p["lng"], p["lnb"],
      p["s_wqkv"], p["s_bqkv"], p["s_wo"], p["s_bo"],
      p["c_wq"], p["c_bq"], p["c_wkv"], p["c_bkv"], p["c_wo"], p["c_bo"],
      p["f_w1"], p["f_b1"], p["f_w2"], p["f_b2"],
      p["fin_g"], p["fin_b"])


# ---------------- Kernel 2: vocab projection (lane-dense, vocab-tiled) ----------------

def _vocab_proj_kernel(h_ref, w_ref, b_ref, o_ref):
    o_ref[...] = (jnp.dot(_c(h_ref[...]), _c(w_ref[...]),
                          preferred_element_type=jnp.float32)
                  + b_ref[...]).astype(o_ref.dtype)


def vocab_projection(h, out_w, out_b):
    B, T, D = h.shape
    Vpad = out_w.shape[1]                            # multiple of 128 (lane-dense)
    TV = Vpad if Vpad <= 512 else (512 if Vpad % 512 == 0 else 128)
    vmem_limit = _clamp_vmem(4 * 2 * 2 * (T * D + D * TV + TV + T * TV))
    return pl.pallas_call(
        _vocab_proj_kernel,
        out_shape=jax.ShapeDtypeStruct((B, T, Vpad), jnp.float32),
        grid=(B, Vpad // TV),
        in_specs=[pl.BlockSpec((None, T, D), lambda b, v: (b, 0, 0)),
                  pl.BlockSpec((D, TV), lambda b, v: (0, v)),
                  pl.BlockSpec((1, TV), lambda b, v: (0, v))],
        out_specs=pl.BlockSpec((None, T, TV), lambda b, v: (b, 0, v)),
        compiler_params=pltpu.CompilerParams(
            dimension_semantics=("parallel", "parallel"),
            vmem_limit_bytes=vmem_limit),
    )(h, out_w, out_b)


# --------------------------------- Model glue ---------------------------------

def positional_encoding(length, dim):
    position = jnp.arange(length, dtype=jnp.float32)[:, None]
    div_term = jnp.exp(jnp.arange(0, dim, 2, dtype=jnp.float32)
                       * (-math.log(10000.0) / dim))
    ang = position * div_term                           # (length, dim/2)
    pe = jnp.stack([jnp.sin(ang), jnp.cos(ang)], axis=-1).reshape(length, dim)
    return pe                                           # pe[:,0::2]=sin, 1::2=cos


def init_params(key, vocab, d_model, nhead, num_layers):
    D, H, L = d_model, nhead, num_layers
    hd = D // H
    dff = 4 * D
    vpad = ((vocab + 127) // 128) * 128                 # lane-dense vocab output
    scale = 1.0 / math.sqrt(hd)
    ks = jax.random.split(key, 2 + L)

    def rnd(k, shape, s=0.02):
        return (s * jax.random.normal(k, shape)).astype(jnp.float32)

    zeros = lambda s: jnp.zeros(s, jnp.float32)
    ones = lambda s: jnp.ones(s, jnp.float32)

    names = ["lng", "lnb", "s_wqkv", "s_bqkv", "s_wo", "s_bo",
             "c_wq", "c_bq", "c_wkv", "c_bkv", "c_wo", "c_bo",
             "f_w1", "f_b1", "f_w2", "f_b2"]
    fields = {n: [] for n in names}

    for li in range(L):
        lk = jax.random.split(ks[2 + li], 10)
        # Fused lane-dense projections; 1/sqrt(hd) folded into the Q weights.
        s_wqkv = jnp.concatenate([rnd(lk[0], (D, D)) * scale,
                                  rnd(lk[1], (D, D)),
                                  rnd(lk[2], (D, D))], axis=1)       # (D, 3D)
        c_wq = rnd(lk[4], (D, D)) * scale
        c_wkv = jnp.concatenate([rnd(lk[5], (D, D)),
                                 rnd(lk[6], (D, D))], axis=1)        # (D, 2D)

        fields["lng"].append(ones((3, 1, D)))
        fields["lnb"].append(zeros((3, 1, D)))
        fields["s_wqkv"].append(s_wqkv)
        fields["s_bqkv"].append(zeros((1, 3 * D)))
        fields["s_wo"].append(rnd(lk[3], (D, D)))
        fields["s_bo"].append(zeros((1, D)))
        fields["c_wq"].append(c_wq)
        fields["c_bq"].append(zeros((1, D)))
        fields["c_wkv"].append(c_wkv)
        fields["c_bkv"].append(zeros((1, 2 * D)))
        fields["c_wo"].append(rnd(lk[7], (D, D)))
        fields["c_bo"].append(zeros((1, D)))
        fields["f_w1"].append(rnd(lk[8], (D, dff)))
        fields["f_b1"].append(zeros((1, dff)))
        fields["f_w2"].append(rnd(lk[9], (dff, D)))
        fields["f_b2"].append(zeros((1, D)))

    params = {n: jnp.stack(v, axis=0) for n, v in fields.items()}
    out_w = rnd(ks[1], (D, vocab))
    params.update({
        "embedding": rnd(ks[0], (vocab, D), 1.0),
        "out_w": jnp.pad(out_w, ((0, 0), (0, vpad - vocab))),   # zero-pad vocab
        "out_b": zeros((1, vpad)),
        "fin_g": ones((1, D)),
        "fin_b": zeros((1, D)),
    })
    return params


def decoder_forward(params, token_ids, tgt_pad_mask, memory, memory_pad_mask,
                    d_model, nhead):
    """token_ids: (T+1, B) int32 seq-first; memory: (S, B, D) seq-first.
    Returns logits (T, B, vocab), matching the PyTorch module."""
    ids = token_ids[:-1]                                # (T, B)
    T, B = ids.shape
    V = params["embedding"].shape[0]

    # TODO(synk): embedding gather + positional-encoding add stay in plain JAX
    # (no rectangular tiling for the gather); dropout is identity (eval mode).
    emb = jnp.take(params["embedding"], ids, axis=0)    # (T, B, D)
    pe = positional_encoding(T, d_model)                # (T, D)
    emb = emb * math.sqrt(d_model) + pe[:, None, :]

    x = jnp.transpose(emb, (1, 0, 2)).astype(jnp.float32)       # (B, T, D)
    mem = jnp.transpose(memory, (1, 0, 2)).astype(jnp.float32)  # (B, S, D)

    # Tiny per-row additive padding biases; the (T,T) causal mask is built in-kernel.
    tbias = jnp.where(tgt_pad_mask[:, :-1], NEG, 0.0).astype(jnp.float32)[:, None, :]
    mbias = jnp.where(memory_pad_mask, NEG, 0.0).astype(jnp.float32)[:, None, :]

    hidden = decoder_stack(x, mem, tbias, mbias, params, nhead)      # (B, T, D)
    logits = vocab_projection(hidden, params["out_w"], params["out_b"])
    logits = logits[:, :, :V]                                        # drop vocab pad
    return jnp.transpose(logits, (1, 0, 2))                          # (T, B, vocab)


# ------------------------------------ Main ------------------------------------

if __name__ == "__main__":
    vocab, d_model, nhead, num_layers = 50, 32, 4, 2
    B, Tp1, S = 2, 9, 10

    key = jax.random.PRNGKey(0)
    k_ids, k_mem, k_params = jax.random.split(key, 3)

    token_ids = jax.random.randint(k_ids, (Tp1, B), 0, vocab, dtype=jnp.int32)
    memory = jax.random.normal(k_mem, (S, B, d_model), dtype=jnp.float32)
    # key-padding masks (True = padded), matching PyTorch bool semantics
    tgt_pad_mask = jnp.zeros((B, Tp1), dtype=bool).at[1, -2:].set(True)
    memory_pad_mask = jnp.zeros((B, S), dtype=bool).at[0, -2:].set(True)

    params = init_params(k_params, vocab, d_model, nhead, num_layers)

    fwd = jax.jit(functools.partial(decoder_forward, d_model=d_model, nhead=nhead))
    out = fwd(params, token_ids, tgt_pad_mask, memory, memory_pad_mask)
    out = jax.block_until_ready(out)
    assert out.shape == (Tp1 - 1, B, vocab), out.shape
    assert bool(jnp.all(jnp.isfinite(out)))
    print("KERNEL_OK")
</pallas_src>

<mosaic_0001>
module attributes {stable_mosaic.version = 11 : i64} {
  func.func @_vocab_proj_kernel(%arg0: i32, %arg1: i32, %arg2: memref<1x8x32xf32, #tpu.memory_space<vmem>>, %arg3: memref<32x128xf32, #tpu.memory_space<vmem>>, %arg4: memref<1x128xf32, #tpu.memory_space<vmem>>, %arg5: memref<1x8x128xf32, #tpu.memory_space<vmem>>) attributes {dimension_semantics = [#tpu.dimension_semantics<parallel>, #tpu.dimension_semantics<parallel>], iteration_bounds = array<i64: 2, 1>, scalar_prefetch = 0 : i64, scratch_operands = 0 : i64, tpu.core_type = #tpu.core_type<tc>, window_params = [{transform_indices = @transform_0, window_bounds = array<i64: 1, 8, 32>}, {transform_indices = @transform_1, window_bounds = array<i64: 32, 128>}, {transform_indices = @transform_2, window_bounds = array<i64: 1, 128>}, {transform_indices = @transform_3, window_bounds = array<i64: 1, 8, 128>}]} {
    %c0 = arith.constant 0 : index
    %c0_0 = arith.constant 0 : index
    %c0_1 = arith.constant 0 : index
    %0 = vector.load %arg2[%c0, %c0_0, %c0_1] : memref<1x8x32xf32, #tpu.memory_space<vmem>>, vector<1x8x32xf32>
    %1 = vector.shape_cast %0 : vector<1x8x32xf32> to vector<8x32xf32>
    %c0_2 = arith.constant 0 : index
    %c0_3 = arith.constant 0 : index
    %2 = vector.load %arg3[%c0_2, %c0_3] : memref<32x128xf32, #tpu.memory_space<vmem>>, vector<32x128xf32>
    %cst = arith.constant dense<0.000000e+00> : vector<8x128xf32>
    %3 = tpu.matmul %1, %2, %cst {dimension_numbers = #tpu.dot_dimension_numbers<[1], [0], [0], [1], [0, 0, 1, 1], [], []>} : vector<8x32xf32>, vector<32x128xf32>, vector<8x128xf32> -> vector<8x128xf32>
    %c0_4 = arith.constant 0 : index
    %c0_5 = arith.constant 0 : index
    %4 = vector.load %arg4[%c0_4, %c0_5] : memref<1x128xf32, #tpu.memory_space<vmem>>, vector<1x128xf32>
    %5 = vector.broadcast %4 : vector<1x128xf32> to vector<8x128xf32>
    %6 = arith.addf %3, %5 : vector<8x128xf32>
    %c0_6 = arith.constant 0 : index
    %c0_7 = arith.constant 0 : index
    %c0_8 = arith.constant 0 : index
    %7 = vector.load %arg5[%c0_6, %c0_7, %c0_8] : memref<1x8x128xf32, #tpu.memory_space<vmem>>, vector<1x8x128xf32>
    %8 = vector.shape_cast %7 : vector<1x8x128xf32> to vector<8x128xf32>
    %9 = vector.shape_cast %6 : vector<8x128xf32> to vector<1x8x128xf32>
    tpu.vector_store %arg5[%c0_6, %c0_7, %c0_8], %9 {strides = array<i32>} : memref<1x8x128xf32, #tpu.memory_space<vmem>>, vector<1x8x128xf32>,
    return
  }
  func.func @transform_0(%arg0: i32, %arg1: i32) -> (i32, i32, i32) {
    %c0_i32 = arith.constant 0 : i32
    %c0_i32_0 = arith.constant 0 : i32
    %c0_i32_1 = arith.constant 0 : i32
    return %arg0, %c0_i32, %c0_i32_0 : i32, i32, i32
  }
  func.func @transform_1(%arg0: i32, %arg1: i32) -> (i32, i32) {
    %c0_i32 = arith.constant 0 : i32
    %c0_i32_0 = arith.constant 0 : i32
    return %c0_i32, %arg1 : i32, i32
  }
  func.func @transform_2(%arg0: i32, %arg1: i32) -> (i32, i32) {
    %c0_i32 = arith.constant 0 : i32
    %c0_i32_0 = arith.constant 0 : i32
    return %c0_i32, %arg1 : i32, i32
  }
  func.func @transform_3(%arg0: i32, %arg1: i32) -> (i32, i32, i32) {
    %c0_i32 = arith.constant 0 : i32
    %c0_i32_0 = arith.constant 0 : i32
    return %arg0, %c0_i32, %arg1 : i32, i32, i32
  }
}

module attributes {stable_mosaic.version = 11 : i64} {
  func.func @_decoder_layers_kernel(%arg0: i32, %arg1: i32, %arg2: memref<1x8x32xf32, #tpu.memory_space<vmem>>, %arg3: memref<1x10x32xf32, #tpu.memory_space<vmem>>, %arg4: memref<1x1x8xf32, #tpu.memory_space<vmem>>, %arg5: memref<1x1x10xf32, #tpu.memory_space<vmem>>, %arg6: memref<1x3x1x32xf32, #tpu.memory_space<vmem>>, %arg7: memref<1x3x1x32xf32, #tpu.memory_space<vmem>>, %arg8: memref<1x32x96xf32, #tpu.memory_space<vmem>>, %arg9: memref<1x1x96xf32, #tpu.memory_space<vmem>>, %arg10: memref<1x32x32xf32, #tpu.memory_space<vmem>>, %arg11: memref<1x1x32xf32, #tpu.memory_space<vmem>>, %arg12: memref<1x32x32xf32, #tpu.memory_space<vmem>>, %arg13: memref<1x1x32xf32, #tpu.memory_space<vmem>>, %arg14: memref<1x32x64xf32, #tpu.memory_space<vmem>>, %arg15: memref<1x1x64xf32, #tpu.memory_space<vmem>>, %arg16: memref<1x32x32xf32, #tpu.memory_space<vmem>>, %arg17: memref<1x1x32xf32, #tpu.memory_space<vmem>>, %arg18: memref<1x32x128xf32, #tpu.memory_space<vmem>>, %arg19: memref<1x1x128xf32, #tpu.memory_space<vmem>>, %arg20: memref<1x128x32xf32, #tpu.memory_space<vmem>>, %arg21: memref<1x1x32xf32, #tpu.memory_space<vmem>>, %arg22: memref<1x32xf32, #tpu.memory_space<vmem>>, %arg23: memref<1x32xf32, #tpu.memory_space<vmem>>, %arg24: memref<2x8x32xf32, #tpu.memory_space<vmem>>, %arg25: memref<8x8xf32, #tpu.memory_space<vmem>>, %arg26: memref<8x32xf32, #tpu.memory_space<vmem>>) attributes {dimension_semantics = [#tpu.dimension_semantics<arbitrary>, #tpu.dimension_semantics<arbitrary>], iteration_bounds = array<i64: 2, 2>, scalar_prefetch = 0 : i64, scratch_operands = 2 : i64, tpu.core_type = #tpu.core_type<tc>, window_params = [{transform_indices = @transform_0, window_bounds = array<i64: 1, 8, 32>}, {transform_indices = @transform_1, window_bounds = array<i64: 1, 10, 32>}, {transform_indices = @transform_2, window_bounds = array<i64: 1, 1, 8>}, {transform_indices = @transform_3, window_bounds = array<i64: 1, 1, 10>}, {transform_indices = @transform_4, window_bounds = array<i64: 1, 3, 1, 32>}, {transform_indices = @transform_5, window_bounds = array<i64: 1, 3, 1, 32>}, {transform_indices = @transform_6, window_bounds = array<i64: 1, 32, 96>}, {transform_indices = @transform_7, window_bounds = array<i64: 1, 1, 96>}, {transform_indices = @transform_8, window_bounds = array<i64: 1, 32, 32>}, {transform_indices = @transform_9, window_bounds = array<i64: 1, 1, 32>}, {transform_indices = @transform_10, window_bounds = array<i64: 1, 32, 32>}, {transform_indices = @transform_11, window_bounds = array<i64: 1, 1, 32>}, {transform_indices = @transform_12, window_bounds = array<i64: 1, 32, 64>}, {transform_indices = @transform_13, window_bounds = array<i64: 1, 1, 64>}, {transform_indices = @transform_14, window_bounds = array<i64: 1, 32, 32>}, {transform_indices = @transform_15, window_bounds = array<i64: 1, 1, 32>}, {transform_indices = @transform_16, window_bounds = array<i64: 1, 32, 128>}, {transform_indices = @transform_17, window_bounds = array<i64: 1, 1, 128>}, {transform_indices = @transform_18, window_bounds = array<i64: 1, 128, 32>}, {transform_indices = @transform_19, window_bounds = array<i64: 1, 1, 32>}, {pipeline_mode = #tpu.pipeline_mode<synchronous>, transform_indices = @transform_20, window_bounds = array<i64: 1, 32>}, {pipeline_mode = #tpu.pipeline_mode<synchronous>, transform_indices = @transform_21, window_bounds = array<i64: 1, 32>}, {pipeline_mode = #tpu.pipeline_mode<synchronous>, transform_indices = @transform_22, window_bounds = array<i64: 2, 8, 32>}]} {
    %c0_i32 = arith.constant 0 : i32
    %0 = arith.cmpi eq, %arg0, %c0_i32 : i32
    %1 = arith.extui %0 : i1 to i32
    %c0_i32_0 = arith.constant 0 : i32
    %2 = arith.cmpi ne, %1, %c0_i32_0 : i32
    scf.if %2 {
      %c0_151 = arith.constant 0 : index
      %c0_152 = arith.constant 0 : index
      %c0_153 = arith.constant 0 : index
      %295 = vector.load %arg2[%c0_151, %c0_152, %c0_153] : memref<1x8x32xf32, #tpu.memory_space<vmem>>, vector<1x8x32xf32>
      %296 = vector.shape_cast %295 : vector<1x8x32xf32> to vector<8x32xf32>
      %297 = arith.index_cast %arg1 : i32 to index
      %c0_154 = arith.constant 0 : index
      %c0_155 = arith.constant 0 : index
      %298 = vector.load %arg24[%297, %c0_154, %c0_155] : memref<2x8x32xf32, #tpu.memory_space<vmem>>, vector<1x8x32xf32>
      %299 = vector.shape_cast %298 : vector<1x8x32xf32> to vector<8x32xf32>
      %300 = vector.shape_cast %296 : vector<8x32xf32> to vector<1x8x32xf32>
      tpu.vector_store %arg24[%297, %c0_154, %c0_155], %300 {strides = array<i32>} : memref<2x8x32xf32, #tpu.memory_space<vmem>>, vector<1x8x32xf32>,
      %301 = tpu.iota {dimensions = array<i32: 0>} : vector<8x8xi32>
      %302 = tpu.iota {dimensions = array<i32: 1>} : vector<8x8xi32>
      %303 = arith.cmpi sgt, %302, %301 : vector<8x8xi32>
      %cst_156 = arith.constant -1.000000e+09 : f32
      %cst_157 = arith.constant 0.000000e+00 : f32
      %304 = vector.broadcast %cst_156 : f32 to vector<8x8xf32>
      %305 = vector.broadcast %cst_157 : f32 to vector<8x8xf32>
      %306 = arith.select %303, %304, %305 : vector<8x8xi1>, vector<8x8xf32>
      %c0_158 = arith.constant 0 : index
      %c0_159 = arith.constant 0 : index
      %307 = vector.load %arg25[%c0_158, %c0_159] : memref<8x8xf32, #tpu.memory_space<vmem>>, vector<8x8xf32>
      tpu.vector_store %arg25[%c0_158, %c0_159], %306 {strides = array<i32>} : memref<8x8xf32, #tpu.memory_space<vmem>>, vector<8x8xf32>,
    } else {
    }
    %3 = arith.index_cast %arg1 : i32 to index
    %c0 = arith.constant 0 : index
    %c0_1 = arith.constant 0 : index
    %4 = vector.load %arg24[%3, %c0, %c0_1] : memref<2x8x32xf32, #tpu.memory_space<vmem>>, vector<1x8x32xf32>
    %5 = vector.shape_cast %4 : vector<1x8x32xf32> to vector<8x32xf32>
    %c0_2 = arith.constant 0 : index
    %c0_3 = arith.constant 0 : index
    %c0_4 = arith.constant 0 : index
    %6 = vector.load %arg3[%c0_2, %c0_3, %c0_4] : memref<1x10x32xf32, #tpu.memory_space<vmem>>, vector<1x10x32xf32>
    %7 = vector.shape_cast %6 : vector<1x10x32xf32> to vector<10x32xf32>
    %c0_5 = arith.constant 0 : index
    %c0_6 = arith.constant 0 : index
    %8 = vector.load %arg25[%c0_5, %c0_6] : memref<8x8xf32, #tpu.memory_space<vmem>>, vector<8x8xf32>
    %c0_7 = arith.constant 0 : index
    %c0_8 = arith.constant 0 : index
    %c0_9 = arith.constant 0 : index
    %9 = vector.load %arg4[%c0_7, %c0_8, %c0_9] : memref<1x1x8xf32, #tpu.memory_space<vmem>>, vector<1x1x8xf32>
    %10 = vector.shape_cast %9 : vector<1x1x8xf32> to vector<1x8xf32>
    %11 = vector.broadcast %10 : vector<1x8xf32> to vector<8x8xf32>
    %12 = arith.addf %8, %11 : vector<8x8xf32>
    %c0_10 = arith.constant 0 : index
    %c0_11 = arith.constant 0 : index
    %c0_12 = arith.constant 0 : index
    %13 = vector.load %arg5[%c0_10, %c0_11, %c0_12] : memref<1x1x10xf32, #tpu.memory_space<vmem>>, vector<1x1x10xf32>
    %14 = vector.shape_cast %13 : vector<1x1x10xf32> to vector<1x10xf32>
    %c0_13 = arith.constant 0 : index
    %c0_14 = arith.constant 0 : index
    %c0_15 = arith.constant 0 : index
    %c0_16 = arith.constant 0 : index
    %15 = vector.load %arg6[%c0_13, %c0_14, %c0_15, %c0_16] : memref<1x3x1x32xf32, #tpu.memory_space<vmem>>, vector<1x1x1x32xf32>
    %16 = vector.shape_cast %15 : vector<1x1x1x32xf32> to vector<1x32xf32>
    %c0_17 = arith.constant 0 : index
    %c0_18 = arith.constant 0 : index
    %c0_19 = arith.constant 0 : index
    %c0_20 = arith.constant 0 : index
    %17 = vector.load %arg7[%c0_17, %c0_18, %c0_19, %c0_20] : memref<1x3x1x32xf32, #tpu.memory_space<vmem>>, vector<1x1x1x32xf32>
    %18 = vector.shape_cast %17 : vector<1x1x1x32xf32> to vector<1x32xf32>
    %cst = arith.constant dense<0.000000e+00> : vector<8xf32>
    %19 = vector.multi_reduction <add>, %5, %cst [1] : vector<8x32xf32> to vector<8xf32>
    %20 = vector.shape_cast %19 : vector<8xf32> to vector<8x1xf32>
    %cst_21 = arith.constant 3.200000e+01 : f32
    %21 = vector.broadcast %cst_21 : f32 to vector<8x1xf32>
    %22 = arith.divf %20, %21 : vector<8x1xf32>
    %23 = vector.broadcast %22 : vector<8x1xf32> to vector<8x32xf32>
    %24 = arith.subf %5, %23 : vector<8x32xf32>
    %25 = arith.mulf %24, %24 : vector<8x32xf32>
    %cst_22 = arith.constant dense<0.000000e+00> : vector<8xf32>
    %26 = vector.multi_reduction <add>, %25, %cst_22 [1] : vector<8x32xf32> to vector<8xf32>
    %27 = vector.shape_cast %26 : vector<8xf32> to vector<8x1xf32>
    %cst_23 = arith.constant 3.200000e+01 : f32
    %28 = vector.broadcast %cst_23 : f32 to vector<8x1xf32>
    %29 = arith.divf %27, %28 : vector<8x1xf32>
    %cst_24 = arith.constant 9.99999974E-6 : f32
    %30 = vector.broadcast %cst_24 : f32 to vector<8x1xf32>
    %31 = arith.addf %29, %30 : vector<8x1xf32>
    %32 = math.rsqrt %31 : vector<8x1xf32>
    %33 = vector.broadcast %32 : vector<8x1xf32> to vector<8x32xf32>
    %34 = arith.mulf %24, %33 : vector<8x32xf32>
    %35 = vector.broadcast %16 : vector<1x32xf32> to vector<8x32xf32>
    %36 = arith.mulf %34, %35 : vector<8x32xf32>
    %37 = vector.broadcast %18 : vector<1x32xf32> to vector<8x32xf32>
    %38 = arith.addf %36, %37 : vector<8x32xf32>
    %c0_25 = arith.constant 0 : index
    %c0_26 = arith.constant 0 : index
    %c0_27 = arith.constant 0 : index
    %39 = vector.load %arg8[%c0_25, %c0_26, %c0_27] : memref<1x32x96xf32, #tpu.memory_space<vmem>>, vector<1x32x96xf32>
    %40 = vector.shape_cast %39 : vector<1x32x96xf32> to vector<32x96xf32>
    %cst_28 = arith.constant dense<0.000000e+00> : vector<8x96xf32>
    %41 = tpu.matmul %38, %40, %cst_28 {dimension_numbers = #tpu.dot_dimension_numbers<[1], [0], [0], [1], [0, 0, 1, 1], [], []>} : vector<8x32xf32>, vector<32x96xf32>, vector<8x96xf32> -> vector<8x96xf32>
    %c0_29 = arith.constant 0 : index
    %c0_30 = arith.constant 0 : index
    %c0_31 = arith.constant 0 : index
    %42 = vector.load %arg9[%c0_29, %c0_30, %c0_31] : memref<1x1x96xf32, #tpu.memory_space<vmem>>, vector<1x1x96xf32>
    %43 = vector.shape_cast %42 : vector<1x1x96xf32> to vector<1x96xf32>
    %44 = vector.broadcast %43 : vector<1x96xf32> to vector<8x96xf32>
    %45 = arith.addf %41, %44 : vector<8x96xf32>
    %46 = vector.extract_strided_slice %45 {offsets = [0, 0], sizes = [8, 32], strides = [1, 1]} : vector<8x96xf32> to vector<8x32xf32>
    %47 = vector.extract_strided_slice %45 {offsets = [0, 32], sizes = [8, 32], strides = [1, 1]} : vector<8x96xf32> to vector<8x32xf32>
    %48 = vector.extract_strided_slice %45 {offsets = [0, 64], sizes = [8, 32], strides = [1, 1]} : vector<8x96xf32> to vector<8x32xf32>
    %c0_32 = arith.constant 0 : index
    %c0_33 = arith.constant 0 : index
    %c0_34 = arith.constant 0 : index
    %49 = vector.load %arg10[%c0_32, %c0_33, %c0_34] : memref<1x32x32xf32, #tpu.memory_space<vmem>>, vector<1x32x32xf32>
    %50 = vector.shape_cast %49 : vector<1x32x32xf32> to vector<32x32xf32>
    %c0_35 = arith.constant 0 : index
    %c0_36 = arith.constant 0 : index
    %c0_37 = arith.constant 0 : index
    %51 = vector.load %arg11[%c0_35, %c0_36, %c0_37] : memref<1x1x32xf32, #tpu.memory_space<vmem>>, vector<1x1x32xf32>
    %52 = vector.shape_cast %51 : vector<1x1x32xf32> to vector<1x32xf32>
    %53 = vector.extract_strided_slice %46 {offsets = [0, 0], sizes = [8, 8], strides = [1, 1]} : vector<8x32xf32> to vector<8x8xf32>
    %54 = vector.extract_strided_slice %47 {offsets = [0, 0], sizes = [8, 8], strides = [1, 1]} : vector<8x32xf32> to vector<8x8xf32>
    %55 = vector.extract_strided_slice %48 {offsets = [0, 0], sizes = [8, 8], strides = [1, 1]} : vector<8x32xf32> to vector<8x8xf32>
    %cst_38 = arith.constant dense<0.000000e+00> : vector<8x8xf32>
    %56 = tpu.matmul %53, %54, %cst_38 {dimension_numbers = #tpu.dot_dimension_numbers<[1], [1], [0], [0], [0, 0, 1, 0], [], []>} : vector<8x8xf32>, vector<8x8xf32>, vector<8x8xf32> -> vector<8x8xf32>
    %57 = arith.addf %56, %12 : vector<8x8xf32>
    %cst_39 = arith.constant dense<0xFF800000> : vector<8xf32>
    %58 = vector.multi_reduction <maximumf>, %57, %cst_39 [1] : vector<8x8xf32> to vector<8xf32>
    %59 = vector.shape_cast %58 : vector<8xf32> to vector<8x1xf32>
    %60 = vector.broadcast %59 : vector<8x1xf32> to vector<8x8xf32>
    %61 = arith.subf %57, %60 : vector<8x8xf32>
    %62 = math.exp %61 : vector<8x8xf32>
    %cst_40 = arith.constant dense<0.000000e+00> : vector<8xf32>
    %63 = vector.multi_reduction <add>, %62, %cst_40 [1] : vector<8x8xf32> to vector<8xf32>
    %64 = vector.shape_cast %63 : vector<8xf32> to vector<8x1xf32>
    %65 = tpu.reciprocal %64 {approx = true} : vector<8x1xf32> -> vector<8x1xf32>
    %66 = vector.broadcast %65 : vector<8x1xf32> to vector<8x8xf32>
    %67 = arith.mulf %62, %66 : vector<8x8xf32>
    %cst_41 = arith.constant dense<0.000000e+00> : vector<8x8xf32>
    %68 = tpu.matmul %67, %55, %cst_41 {dimension_numbers = #tpu.dot_dimension_numbers<[1], [0], [0], [1], [0, 0, 1, 1], [], []>} : vector<8x8xf32>, vector<8x8xf32>, vector<8x8xf32> -> vector<8x8xf32>
    %c0_42 = arith.constant 0 : index
    %c0_43 = arith.constant 0 : index
    %69 = vector.load %arg26[%c0_42, %c0_43] : memref<8x32xf32, #tpu.memory_space<vmem>>, vector<8x8xf32>
    tpu.vector_store %arg26[%c0_42, %c0_43], %68 {strides = array<i32>} : memref<8x32xf32, #tpu.memory_space<vmem>>, vector<8x8xf32>,
    %70 = vector.extract_strided_slice %46 {offsets = [0, 8], sizes = [8, 8], strides = [1, 1]} : vector<8x32xf32> to vector<8x8xf32>
    %71 = vector.extract_strided_slice %47 {offsets = [0, 8], sizes = [8, 8], strides = [1, 1]} : vector<8x32xf32> to vector<8x8xf32>
    %72 = vector.extract_strided_slice %48 {offsets = [0, 8], sizes = [8, 8], strides = [1, 1]} : vector<8x32xf32> to vector<8x8xf32>
    %cst_44 = arith.constant dense<0.000000e+00> : vector<8x8xf32>
    %73 = tpu.matmul %70, %71, %cst_44 {dimension_numbers = #tpu.dot_dimension_numbers<[1], [1], [0], [0], [0, 0, 1, 0], [], []>} : vector<8x8xf32>, vector<8x8xf32>, vector<8x8xf32> -> vector<8x8xf32>
    %74 = arith.addf %73, %12 : vector<8x8xf32>
    %cst_45 = arith.constant dense<0xFF800000> : vector<8xf32>
    %75 = vector.multi_reduction <maximumf>, %74, %cst_45 [1] : vector<8x8xf32> to vector<8xf32>
    %76 = vector.shape_cast %75 : vector<8xf32> to vector<8x1xf32>
    %77 = vector.broadcast %76 : vector<8x1xf32> to vector<8x8xf32>
    %78 = arith.subf %74, %77 : vector<8x8xf32>
    %79 = math.exp %78 : vector<8x8xf32>
    %cst_46 = arith.constant dense<0.000000e+00> : vector<8xf32>
    %80 = vector.multi_reduction <add>, %79, %cst_46 [1] : vector<8x8xf32> to vector<8xf32>
    %81 = vector.shape_cast %80 : vector<8xf32> to vector<8x1xf32>
    %82 = tpu.reciprocal %81 {approx = true} : vector<8x1xf32> -> vector<8x1xf32>
    %83 = vector.broadcast %82 : vector<8x1xf32> to vector<8x8xf32>
    %84 = arith.mulf %79, %83 : vector<8x8xf32>
    %cst_47 = arith.constant dense<0.000000e+00> : vector<8x8xf32>
    %85 = tpu.matmul %84, %72, %cst_47 {dimension_numbers = #tpu.dot_dimension_numbers<[1], [0], [0], [1], [0, 0, 1, 1], [], []>} : vector<8x8xf32>, vector<8x8xf32>, vector<8x8xf32> -> vector<8x8xf32>
    %c0_48 = arith.constant 0 : index
    %c8 = arith.constant 8 : index
    %86 = vector.load %arg26[%c0_48, %c8] : memref<8x32xf32, #tpu.memory_space<vmem>>, vector<8x8xf32>
    tpu.vector_store %arg26[%c0_48, %c8], %85 {strides = array<i32>} : memref<8x32xf32, #tpu.memory_space<vmem>>, vector<8x8xf32>,
    %87 = vector.extract_strided_slice %46 {offsets = [0, 16], sizes = [8, 8], strides = [1, 1]} : vector<8x32xf32> to vector<8x8xf32>
    %88 = vector.extract_strided_slice %47 {offsets = [0, 16], sizes = [8, 8], strides = [1, 1]} : vector<8x32xf32> to vector<8x8xf32>
    %89 = vector.extract_strided_slice %48 {offsets = [0, 16], sizes = [8, 8], strides = [1, 1]} : vector<8x32xf32> to vector<8x8xf32>
    %cst_49 = arith.constant dense<0.000000e+00> : vector<8x8xf32>
    %90 = tpu.matmul %87, %88, %cst_49 {dimension_numbers = #tpu.dot_dimension_numbers<[1], [1], [0], [0], [0, 0, 1, 0], [], []>} : vector<8x8xf32>, vector<8x8xf32>, vector<8x8xf32> -> vector<8x8xf32>
    %91 = arith.addf %90, %12 : vector<8x8xf32>
    %cst_50 = arith.constant dense<0xFF800000> : vector<8xf32>
    %92 = vector.multi_reduction <maximumf>, %91, %cst_50 [1] : vector<8x8xf32> to vector<8xf32>
    %93 = vector.shape_cast %92 : vector<8xf32> to vector<8x1xf32>
    %94 = vector.broadcast %93 : vector<8x1xf32> to vector<8x8xf32>
    %95 = arith.subf %91, %94 : vector<8x8xf32>
    %96 = math.exp %95 : vector<8x8xf32>
    %cst_51 = arith.constant dense<0.000000e+00> : vector<8xf32>
    %97 = vector.multi_reduction <add>, %96, %cst_51 [1] : vector<8x8xf32> to vector<8xf32>
    %98 = vector.shape_cast %97 : vector<8xf32> to vector<8x1xf32>
    %99 = tpu.reciprocal %98 {approx = true} : vector<8x1xf32> -> vector<8x1xf32>
    %100 = vector.broadcast %99 : vector<8x1xf32> to vector<8x8xf32>
    %101 = arith.mulf %96, %100 : vector<8x8xf32>
    %cst_52 = arith.constant dense<0.000000e+00> : vector<8x8xf32>
    %102 = tpu.matmul %101, %89, %cst_52 {dimension_numbers = #tpu.dot_dimension_numbers<[1], [0], [0], [1], [0, 0, 1, 1], [], []>} : vector<8x8xf32>, vector<8x8xf32>, vector<8x8xf32> -> vector<8x8xf32>
    %c0_53 = arith.constant 0 : index
    %c16 = arith.constant 16 : index
    %103 = vector.load %arg26[%c0_53, %c16] : memref<8x32xf32, #tpu.memory_space<vmem>>, vector<8x8xf32>
    tpu.vector_store %arg26[%c0_53, %c16], %102 {strides = array<i32>} : memref<8x32xf32, #tpu.memory_space<vmem>>, vector<8x8xf32>,
    %104 = vector.extract_strided_slice %46 {offsets = [0, 24], sizes = [8, 8], strides = [1, 1]} : vector<8x32xf32> to vector<8x8xf32>
    %105 = vector.extract_strided_slice %47 {offsets = [0, 24], sizes = [8, 8], strides = [1, 1]} : vector<8x32xf32> to vector<8x8xf32>
    %106 = vector.extract_strided_slice %48 {offsets = [0, 24], sizes = [8, 8], strides = [1, 1]} : vector<8x32xf32> to vector<8x8xf32>
    %cst_54 = arith.constant dense<0.000000e+00> : vector<8x8xf32>
    %107 = tpu.matmul %104, %105, %cst_54 {dimension_numbers = #tpu.dot_dimension_numbers<[1], [1], [0], [0], [0, 0, 1, 0], [], []>} : vector<8x8xf32>, vector<8x8xf32>, vector<8x8xf32> -> vector<8x8xf32>
    %108 = arith.addf %107, %12 : vector<8x8xf32>
    %cst_55 = arith.constant dense<0xFF800000> : vector<8xf32>
    %109 = vector.multi_reduction <maximumf>, %108, %cst_55 [1] : vector<8x8xf32> to vector<8xf32>
    %110 = vector.shape_cast %109 : vector<8xf32> to vector<8x1xf32>
    %111 = vector.broadcast %110 : vector<8x1xf32> to vector<8x8xf32>
    %112 = arith.subf %108, %111 : vector<8x8xf32>
    %113 = math.exp %112 : vector<8x8xf32>
    %cst_56 = arith.constant dense<0.000000e+00> : vector<8xf32>
    %114 = vector.multi_reduction <add>, %113, %cst_56 [1] : vector<8x8xf32> to vector<8xf32>
    %115 = vector.shape_cast %114 : vector<8xf32> to vector<8x1xf32>
    %116 = tpu.reciprocal %115 {approx = true} : vector<8x1xf32> -> vector<8x1xf32>
    %117 = vector.broadcast %116 : vector<8x1xf32> to vector<8x8xf32>
    %118 = arith.mulf %113, %117 : vector<8x8xf32>
    %cst_57 = arith.constant dense<0.000000e+00> : vector<8x8xf32>
    %119 = tpu.matmul %118, %106, %cst_57 {dimension_numbers = #tpu.dot_dimension_numbers<[1], [0], [0], [1], [0, 0, 1, 1], [], []>} : vector<8x8xf32>, vector<8x8xf32>, vector<8x8xf32> -> vector<8x8xf32>
    %c0_58 = arith.constant 0 : index
    %c24 = arith.constant 24 : index
    %120 = vector.load %arg26[%c0_58, %c24] : memref<8x32xf32, #tpu.memory_space<vmem>>, vector<8x8xf32>
    tpu.vector_store %arg26[%c0_58, %c24], %119 {strides = array<i32>} : memref<8x32xf32, #tpu.memory_space<vmem>>, vector<8x8xf32>,
    %c0_59 = arith.constant 0 : index
    %c0_60 = arith.constant 0 : index
    %121 = vector.load %arg26[%c0_59, %c0_60] : memref<8x32xf32, #tpu.memory_space<vmem>>, vector<8x32xf32>
    %cst_61 = arith.constant dense<0.000000e+00> : vector<8x32xf32>
    %122 = tpu.matmul %121, %50, %cst_61 {dimension_numbers = #tpu.dot_dimension_numbers<[1], [0], [0], [1], [0, 0, 1, 1], [], []>} : vector<8x32xf32>, vector<32x32xf32>, vector<8x32xf32> -> vector<8x32xf32>
    %123 = vector.broadcast %52 : vector<1x32xf32> to vector<8x32xf32>
    %124 = arith.addf %122, %123 : vector<8x32xf32>
    %125 = arith.addf %5, %124 : vector<8x32xf32>
    %c0_62 = arith.constant 0 : index
    %c1 = arith.constant 1 : index
    %c0_63 = arith.constant 0 : index
    %c0_64 = arith.constant 0 : index
    %126 = vector.load %arg6[%c0_62, %c1, %c0_63, %c0_64] : memref<1x3x1x32xf32, #tpu.memory_space<vmem>>, vector<1x1x1x32xf32>
    %127 = vector.shape_cast %126 : vector<1x1x1x32xf32> to vector<1x32xf32>
    %c0_65 = arith.constant 0 : index
    %c1_66 = arith.constant 1 : index
    %c0_67 = arith.constant 0 : index
    %c0_68 = arith.constant 0 : index
    %128 = vector.load %arg7[%c0_65, %c1_66, %c0_67, %c0_68] : memref<1x3x1x32xf32, #tpu.memory_space<vmem>>, vector<1x1x1x32xf32>
    %129 = vector.shape_cast %128 : vector<1x1x1x32xf32> to vector<1x32xf32>
    %cst_69 = arith.constant dense<0.000000e+00> : vector<8xf32>
    %130 = vector.multi_reduction <add>, %125, %cst_69 [1] : vector<8x32xf32> to vector<8xf32>
    %131 = vector.shape_cast %130 : vector<8xf32> to vector<8x1xf32>
    %cst_70 = arith.constant 3.200000e+01 : f32
    %132 = vector.broadcast %cst_70 : f32 to vector<8x1xf32>
    %133 = arith.divf %131, %132 : vector<8x1xf32>
    %134 = vector.broadcast %133 : vector<8x1xf32> to vector<8x32xf32>
    %135 = arith.subf %125, %134 : vector<8x32xf32>
    %136 = arith.mulf %135, %135 : vector<8x32xf32>
    %cst_71 = arith.constant dense<0.000000e+00> : vector<8xf32>
    %137 = vector.multi_reduction <add>, %136, %cst_71 [1] : vector<8x32xf32> to vector<8xf32>
    %138 = vector.shape_cast %137 : vector<8xf32> to vector<8x1xf32>
    %cst_72 = arith.constant 3.200000e+01 : f32
    %139 = vector.broadcast %cst_72 : f32 to vector<8x1xf32>
    %140 = arith.divf %138, %139 : vector<8x1xf32>
    %cst_73 = arith.constant 9.99999974E-6 : f32
    %141 = vector.broadcast %cst_73 : f32 to vector<8x1xf32>
    %142 = arith.addf %140, %141 : vector<8x1xf32>
    %143 = math.rsqrt %142 : vector<8x1xf32>
    %144 = vector.broadcast %143 : vector<8x1xf32> to vector<8x32xf32>
    %145 = arith.mulf %135, %144 : vector<8x32xf32>
    %146 = vector.broadcast %127 : vector<1x32xf32> to vector<8x32xf32>
    %147 = arith.mulf %145, %146 : vector<8x32xf32>
    %148 = vector.broadcast %129 : vector<1x32xf32> to vector<8x32xf32>
    %149 = arith.addf %147, %148 : vector<8x32xf32>
    %c0_74 = arith.constant 0 : index
    %c0_75 = arith.constant 0 : index
    %c0_76 = arith.constant 0 : index
    %150 = vector.load %arg12[%c0_74, %c0_75, %c0_76] : memref<1x32x32xf32, #tpu.memory_space<vmem>>, vector<1x32x32xf32>
    %151 = vector.shape_cast %150 : vector<1x32x32xf32> to vector<32x32xf32>
    %cst_77 = arith.constant dense<0.000000e+00> : vector<8x32xf32>
    %152 = tpu.matmul %149, %151, %cst_77 {dimension_numbers = #tpu.dot_dimension_numbers<[1], [0], [0], [1], [0, 0, 1, 1], [], []>} : vector<8x32xf32>, vector<32x32xf32>, vector<8x32xf32> -> vector<8x32xf32>
    %c0_78 = arith.constant 0 : index
    %c0_79 = arith.constant 0 : index
    %c0_80 = arith.constant 0 : index
    %153 = vector.load %arg13[%c0_78, %c0_79, %c0_80] : memref<1x1x32xf32, #tpu.memory_space<vmem>>, vector<1x1x32xf32>
    %154 = vector.shape_cast %153 : vector<1x1x32xf32> to vector<1x32xf32>
    %155 = vector.broadcast %154 : vector<1x32xf32> to vector<8x32xf32>
    %156 = arith.addf %152, %155 : vector<8x32xf32>
    %c0_81 = arith.constant 0 : index
    %c0_82 = arith.constant 0 : index
    %c0_83 = arith.constant 0 : index
    %157 = vector.load %arg14[%c0_81, %c0_82, %c0_83] : memref<1x32x64xf32, #tpu.memory_space<vmem>>, vector<1x32x64xf32>
    %158 = vector.shape_cast %157 : vector<1x32x64xf32> to vector<32x64xf32>
    %cst_84 = arith.constant dense<0.000000e+00> : vector<10x64xf32>
    %159 = tpu.matmul %7, %158, %cst_84 {dimension_numbers = #tpu.dot_dimension_numbers<[1], [0], [0], [1], [0, 0, 1, 1], [], []>} : vector<10x32xf32>, vector<32x64xf32>, vector<10x64xf32> -> vector<10x64xf32>
    %c0_85 = arith.constant 0 : index
    %c0_86 = arith.constant 0 : index
    %c0_87 = arith.constant 0 : index
    %160 = vector.load %arg15[%c0_85, %c0_86, %c0_87] : memref<1x1x64xf32, #tpu.memory_space<vmem>>, vector<1x1x64xf32>
    %161 = vector.shape_cast %160 : vector<1x1x64xf32> to vector<1x64xf32>
    %162 = vector.broadcast %161 : vector<1x64xf32> to vector<10x64xf32>
    %163 = arith.addf %159, %162 : vector<10x64xf32>
    %164 = vector.extract_strided_slice %163 {offsets = [0, 0], sizes = [10, 32], strides = [1, 1]} : vector<10x64xf32> to vector<10x32xf32>
    %165 = vector.extract_strided_slice %163 {offsets = [0, 32], sizes = [10, 32], strides = [1, 1]} : vector<10x64xf32> to vector<10x32xf32>
    %c0_88 = arith.constant 0 : index
    %c0_89 = arith.constant 0 : index
    %c0_90 = arith.constant 0 : index
    %166 = vector.load %arg16[%c0_88, %c0_89, %c0_90] : memref<1x32x32xf32, #tpu.memory_space<vmem>>, vector<1x32x32xf32>
    %167 = vector.shape_cast %166 : vector<1x32x32xf32> to vector<32x32xf32>
    %c0_91 = arith.constant 0 : index
    %c0_92 = arith.constant 0 : index
    %c0_93 = arith.constant 0 : index
    %168 = vector.load %arg17[%c0_91, %c0_92, %c0_93] : memref<1x1x32xf32, #tpu.memory_space<vmem>>, vector<1x1x32xf32>
    %169 = vector.shape_cast %168 : vector<1x1x32xf32> to vector<1x32xf32>
    %170 = vector.extract_strided_slice %156 {offsets = [0, 0], sizes = [8, 8], strides = [1, 1]} : vector<8x32xf32> to vector<8x8xf32>
    %171 = vector.extract_strided_slice %164 {offsets = [0, 0], sizes = [10, 8], strides = [1, 1]} : vector<10x32xf32> to vector<10x8xf32>
    %172 = vector.extract_strided_slice %165 {offsets = [0, 0], sizes = [10, 8], strides = [1, 1]} : vector<10x32xf32> to vector<10x8xf32>
    %cst_94 = arith.constant dense<0.000000e+00> : vector<8x10xf32>
    %173 = tpu.matmul %170, %171, %cst_94 {dimension_numbers = #tpu.dot_dimension_numbers<[1], [1], [0], [0], [0, 0, 1, 0], [], []>} : vector<8x8xf32>, vector<10x8xf32>, vector<8x10xf32> -> vector<8x10xf32>
    %174 = vector.broadcast %14 : vector<1x10xf32> to vector<8x10xf32>
    %175 = arith.addf %173, %174 : vector<8x10xf32>
    %cst_95 = arith.constant dense<0xFF800000> : vector<8xf32>
    %176 = vector.multi_reduction <maximumf>, %175, %cst_95 [1] : vector<8x10xf32> to vector<8xf32>
    %177 = vector.shape_cast %176 : vector<8xf32> to vector<8x1xf32>
    %178 = vector.broadcast %177 : vector<8x1xf32> to vector<8x10xf32>
    %179 = arith.subf %175, %178 : vector<8x10xf32>
    %180 = math.exp %179 : vector<8x10xf32>
    %cst_96 = arith.constant dense<0.000000e+00> : vector<8xf32>
    %181 = vector.multi_reduction <add>, %180, %cst_96 [1] : vector<8x10xf32> to vector<8xf32>
    %182 = vector.shape_cast %181 : vector<8xf32> to vector<8x1xf32>
    %183 = tpu.reciprocal %182 {approx = true} : vector<8x1xf32> -> vector<8x1xf32>
    %184 = vector.broadcast %183 : vector<8x1xf32> to vector<8x10xf32>
    %185 = arith.mulf %180, %184 : vector<8x10xf32>
    %cst_97 = arith.constant dense<0.000000e+00> : vector<8x8xf32>
    %186 = tpu.matmul %185, %172, %cst_97 {dimension_numbers = #tpu.dot_dimension_numbers<[1], [0], [0], [1], [0, 0, 1, 1], [], []>} : vector<8x10xf32>, vector<10x8xf32>, vector<8x8xf32> -> vector<8x8xf32>
    %c0_98 = arith.constant 0 : index
    %c0_99 = arith.constant 0 : index
    %187 = vector.load %arg26[%c0_98, %c0_99] : memref<8x32xf32, #tpu.memory_space<vmem>>, vector<8x8xf32>
    tpu.vector_store %arg26[%c0_98, %c0_99], %186 {strides = array<i32>} : memref<8x32xf32, #tpu.memory_space<vmem>>, vector<8x8xf32>,
    %188 = vector.extract_strided_slice %156 {offsets = [0, 8], sizes = [8, 8], strides = [1, 1]} : vector<8x32xf32> to vector<8x8xf32>
    %189 = vector.extract_strided_slice %164 {offsets = [0, 8], sizes = [10, 8], strides = [1, 1]} : vector<10x32xf32> to vector<10x8xf32>
    %190 = vector.extract_strided_slice %165 {offsets = [0, 8], sizes = [10, 8], strides = [1, 1]} : vector<10x32xf32> to vector<10x8xf32>
    %cst_100 = arith.constant dense<0.000000e+00> : vector<8x10xf32>
    %191 = tpu.matmul %188, %189, %cst_100 {dimension_numbers = #tpu.dot_dimension_numbers<[1], [1], [0], [0], [0, 0, 1, 0], [], []>} : vector<8x8xf32>, vector<10x8xf32>, vector<8x10xf32> -> vector<8x10xf32>
    %192 = vector.broadcast %14 : vector<1x10xf32> to vector<8x10xf32>
    %193 = arith.addf %191, %192 : vector<8x10xf32>
    %cst_101 = arith.constant dense<0xFF800000> : vector<8xf32>
    %194 = vector.multi_reduction <maximumf>, %193, %cst_101 [1] : vector<8x10xf32> to vector<8xf32>
    %195 = vector.shape_cast %194 : vector<8xf32> to vector<8x1xf32>
    %196 = vector.broadcast %195 : vector<8x1xf32> to vector<8x10xf32>
    %197 = arith.subf %193, %196 : vector<8x10xf32>
    %198 = math.exp %197 : vector<8x10xf32>
    %cst_102 = arith.constant dense<0.000000e+00> : vector<8xf32>
    %199 = vector.multi_reduction <add>, %198, %cst_102 [1] : vector<8x10xf32> to vector<8xf32>
    %200 = vector.shape_cast %199 : vector<8xf32> to vector<8x1xf32>
    %201 = tpu.reciprocal %200 {approx = true} : vector<8x1xf32> -> vector<8x1xf32>
    %202 = vector.broadcast %201 : vector<8x1xf32> to vector<8x10xf32>
    %203 = arith.mulf %198, %202 : vector<8x10xf32>
    %cst_103 = arith.constant dense<0.000000e+00> : vector<8x8xf32>
    %204 = tpu.matmul %203, %190, %cst_103 {dimension_numbers = #tpu.dot_dimension_numbers<[1], [0], [0], [1], [0, 0, 1, 1], [], []>} : vector<8x10xf32>, vector<10x8xf32>, vector<8x8xf32> -> vector<8x8xf32>
    %c0_104 = arith.constant 0 : index
    %c8_105 = arith.constant 8 : index
    %205 = vector.load %arg26[%c0_104, %c8_105] : memref<8x32xf32, #tpu.memory_space<vmem>>, vector<8x8xf32>
    tpu.vector_store %arg26[%c0_104, %c8_105], %204 {strides = array<i32>} : memref<8x32xf32, #tpu.memory_space<vmem>>, vector<8x8xf32>,
    %206 = vector.extract_strided_slice %156 {offsets = [0, 16], sizes = [8, 8], strides = [1, 1]} : vector<8x32xf32> to vector<8x8xf32>
    %207 = vector.extract_strided_slice %164 {offsets = [0, 16], sizes = [10, 8], strides = [1, 1]} : vector<10x32xf32> to vector<10x8xf32>
    %208 = vector.extract_strided_slice %165 {offsets = [0, 16], sizes = [10, 8], strides = [1, 1]} : vector<10x32xf32> to vector<10x8xf32>
    %cst_106 = arith.constant dense<0.000000e+00> : vector<8x10xf32>
    %209 = tpu.matmul %206, %207, %cst_106 {dimension_numbers = #tpu.dot_dimension_numbers<[1], [1], [0], [0], [0, 0, 1, 0], [], []>} : vector<8x8xf32>, vector<10x8xf32>, vector<8x10xf32> -> vector<8x10xf32>
    %210 = vector.broadcast %14 : vector<1x10xf32> to vector<8x10xf32>
    %211 = arith.addf %209, %210 : vector<8x10xf32>
    %cst_107 = arith.constant dense<0xFF800000> : vector<8xf32>
    %212 = vector.multi_reduction <maximumf>, %211, %cst_107 [1] : vector<8x10xf32> to vector<8xf32>
    %213 = vector.shape_cast %212 : vector<8xf32> to vector<8x1xf32>
    %214 = vector.broadcast %213 : vector<8x1xf32> to vector<8x10xf32>
    %215 = arith.subf %211, %214 : vector<8x10xf32>
    %216 = math.exp %215 : vector<8x10xf32>
    %cst_108 = arith.constant dense<0.000000e+00> : vector<8xf32>
    %217 = vector.multi_reduction <add>, %216, %cst_108 [1] : vector<8x10xf32> to vector<8xf32>
    %218 = vector.shape_cast %217 : vector<8xf32> to vector<8x1xf32>
    %219 = tpu.reciprocal %218 {approx = true} : vector<8x1xf32> -> vector<8x1xf32>
    %220 = vector.broadcast %219 : vector<8x1xf32> to vector<8x10xf32>
    %221 = arith.mulf %216, %220 : vector<8x10xf32>
    %cst_109 = arith.constant dense<0.000000e+00> : vector<8x8xf32>
    %222 = tpu.matmul %221, %208, %cst_109 {dimension_numbers = #tpu.dot_dimension_numbers<[1], [0], [0], [1], [0, 0, 1, 1], [], []>} : vector<8x10xf32>, vector<10x8xf32>, vector<8x8xf32> -> vector<8x8xf32>
    %c0_110 = arith.constant 0 : index
    %c16_111 = arith.constant 16 : index
    %223 = vector.load %arg26[%c0_110, %c16_111] : memref<8x32xf32, #tpu.memory_space<vmem>>, vector<8x8xf32>
    tpu.vector_store %arg26[%c0_110, %c16_111], %222 {strides = array<i32>} : memref<8x32xf32, #tpu.memory_space<vmem>>, vector<8x8xf32>,
    %224 = vector.extract_strided_slice %156 {offsets = [0, 24], sizes = [8, 8], strides = [1, 1]} : vector<8x32xf32> to vector<8x8xf32>
    %225 = vector.extract_strided_slice %164 {offsets = [0, 24], sizes = [10, 8], strides = [1, 1]} : vector<10x32xf32> to vector<10x8xf32>
    %226 = vector.extract_strided_slice %165 {offsets = [0, 24], sizes = [10, 8], strides = [1, 1]} : vector<10x32xf32> to vector<10x8xf32>
    %cst_112 = arith.constant dense<0.000000e+00> : vector<8x10xf32>
    %227 = tpu.matmul %224, %225, %cst_112 {dimension_numbers = #tpu.dot_dimension_numbers<[1], [1], [0], [0], [0, 0, 1, 0], [], []>} : vector<8x8xf32>, vector<10x8xf32>, vector<8x10xf32> -> vector<8x10xf32>
    %228 = vector.broadcast %14 : vector<1x10xf32> to vector<8x10xf32>
    %229 = arith.addf %227, %228 : vector<8x10xf32>
    %cst_113 = arith.constant dense<0xFF800000> : vector<8xf32>
    %230 = vector.multi_reduction <maximumf>, %229, %cst_113 [1] : vector<8x10xf32> to vector<8xf32>
    %231 = vector.shape_cast %230 : vector<8xf32> to vector<8x1xf32>
    %232 = vector.broadcast %231 : vector<8x1xf32> to vector<8x10xf32>
    %233 = arith.subf %229, %232 : vector<8x10xf32>
    %234 = math.exp %233 : vector<8x10xf32>
    %cst_114 = arith.constant dense<0.000000e+00> : vector<8xf32>
    %235 = vector.multi_reduction <add>, %234, %cst_114 [1] : vector<8x10xf32> to vector<8xf32>
    %236 = vector.shape_cast %235 : vector<8xf32> to vector<8x1xf32>
    %237 = tpu.reciprocal %236 {approx = true} : vector<8x1xf32> -> vector<8x1xf32>
    %238 = vector.broadcast %237 : vector<8x1xf32> to vector<8x10xf32>
    %239 = arith.mulf %234, %238 : vector<8x10xf32>
    %cst_115 = arith.constant dense<0.000000e+00> : vector<8x8xf32>
    %240 = tpu.matmul %239, %226, %cst_115 {dimension_numbers = #tpu.dot_dimension_numbers<[1], [0], [0], [1], [0, 0, 1, 1], [], []>} : vector<8x10xf32>, vector<10x8xf32>, vector<8x8xf32> -> vector<8x8xf32>
    %c0_116 = arith.constant 0 : index
    %c24_117 = arith.constant 24 : index
    %241 = vector.load %arg26[%c0_116, %c24_117] : memref<8x32xf32, #tpu.memory_space<vmem>>, vector<8x8xf32>
    tpu.vector_store %arg26[%c0_116, %c24_117], %240 {strides = array<i32>} : memref<8x32xf32, #tpu.memory_space<vmem>>, vector<8x8xf32>,
    %c0_118 = arith.constant 0 : index
    %c0_119 = arith.constant 0 : index
    %242 = vector.load %arg26[%c0_118, %c0_119] : memref<8x32xf32, #tpu.memory_space<vmem>>, vector<8x32xf32>
    %cst_120 = arith.constant dense<0.000000e+00> : vector<8x32xf32>
    %243 = tpu.matmul %242, %167, %cst_120 {dimension_numbers = #tpu.dot_dimension_numbers<[1], [0], [0], [1], [0, 0, 1, 1], [], []>} : vector<8x32xf32>, vector<32x32xf32>, vector<8x32xf32> -> vector<8x32xf32>
    %244 = vector.broadcast %169 : vector<1x32xf32> to vector<8x32xf32>
    %245 = arith.addf %243, %244 : vector<8x32xf32>
    %246 = arith.addf %125, %245 : vector<8x32xf32>
    %c0_121 = arith.constant 0 : index
    %c2 = arith.constant 2 : index
    %c0_122 = arith.constant 0 : index
    %c0_123 = arith.constant 0 : index
    %247 = vector.load %arg6[%c0_121, %c2, %c0_122, %c0_123] : memref<1x3x1x32xf32, #tpu.memory_space<vmem>>, vector<1x1x1x32xf32>
    %248 = vector.shape_cast %247 : vector<1x1x1x32xf32> to vector<1x32xf32>
    %c0_124 = arith.constant 0 : index
    %c2_125 = arith.constant 2 : index
    %c0_126 = arith.constant 0 : index
    %c0_127 = arith.constant 0 : index
    %249 = vector.load %arg7[%c0_124, %c2_125, %c0_126, %c0_127] : memref<1x3x1x32xf32, #tpu.memory_space<vmem>>, vector<1x1x1x32xf32>
    %250 = vector.shape_cast %249 : vector<1x1x1x32xf32> to vector<1x32xf32>
    %cst_128 = arith.constant dense<0.000000e+00> : vector<8xf32>
    %251 = vector.multi_reduction <add>, %246, %cst_128 [1] : vector<8x32xf32> to vector<8xf32>
    %252 = vector.shape_cast %251 : vector<8xf32> to vector<8x1xf32>
    %cst_129 = arith.constant 3.200000e+01 : f32
    %253 = vector.broadcast %cst_129 : f32 to vector<8x1xf32>
    %254 = arith.divf %252, %253 : vector<8x1xf32>
    %255 = vector.broadcast %254 : vector<8x1xf32> to vector<8x32xf32>
    %256 = arith.subf %246, %255 : vector<8x32xf32>
    %257 = arith.mulf %256, %256 : vector<8x32xf32>
    %cst_130 = arith.constant dense<0.000000e+00> : vector<8xf32>
    %258 = vector.multi_reduction <add>, %257, %cst_130 [1] : vector<8x32xf32> to vector<8xf32>
    %259 = vector.shape_cast %258 : vector<8xf32> to vector<8x1xf32>
    %cst_131 = arith.constant 3.200000e+01 : f32
    %260 = vector.broadcast %cst_131 : f32 to vector<8x1xf32>
    %261 = arith.divf %259, %260 : vector<8x1xf32>
    %cst_132 = arith.constant 9.99999974E-6 : f32
    %262 = vector.broadcast %cst_132 : f32 to vector<8x1xf32>
    %263 = arith.addf %261, %262 : vector<8x1xf32>
    %264 = math.rsqrt %263 : vector<8x1xf32>
    %265 = vector.broadcast %264 : vector<8x1xf32> to vector<8x32xf32>
    %266 = arith.mulf %256, %265 : vector<8x32xf32>
    %267 = vector.broadcast %248 : vector<1x32xf32> to vector<8x32xf32>
    %268 = arith.mulf %266, %267 : vector<8x32xf32>
    %269 = vector.broadcast %250 : vector<1x32xf32> to vector<8x32xf32>
    %270 = arith.addf %268, %269 : vector<8x32xf32>
    %c0_133 = arith.constant 0 : index
    %c0_134 = arith.constant 0 : index
    %c0_135 = arith.constant 0 : index
    %271 = vector.load %arg18[%c0_133, %c0_134, %c0_135] : memref<1x32x128xf32, #tpu.memory_space<vmem>>, vector<1x32x128xf32>
    %272 = vector.shape_cast %271 : vector<1x32x128xf32> to vector<32x128xf32>
    %cst_136 = arith.constant dense<0.000000e+00> : vector<8x128xf32>
    %273 = tpu.matmul %270, %272, %cst_136 {dimension_numbers = #tpu.dot_dimension_numbers<[1], [0], [0], [1], [0, 0, 1, 1], [], []>} : vector<8x32xf32>, vector<32x128xf32>, vector<8x128xf32> -> vector<8x128xf32>
    %c0_137 = arith.constant 0 : index
    %c0_138 = arith.constant 0 : index
    %c0_139 = arith.constant 0 : index
    %274 = vector.load %arg19[%c0_137, %c0_138, %c0_139] : memref<1x1x128xf32, #tpu.memory_space<vmem>>, vector<1x1x128xf32>
    %275 = vector.shape_cast %274 : vector<1x1x128xf32> to vector<1x128xf32>
    %276 = vector.broadcast %275 : vector<1x128xf32> to vector<8x128xf32>
    %277 = arith.addf %273, %276 : vector<8x128xf32>
    %cst_140 = arith.constant 0.000000e+00 : f32
    %278 = vector.broadcast %cst_140 : f32 to vector<8x128xf32>
    %279 = arith.maximumf %277, %278 : vector<8x128xf32>
    %c0_141 = arith.constant 0 : index
    %c0_142 = arith.constant 0 : index
    %c0_143 = arith.constant 0 : index
    %280 = vector.load %arg20[%c0_141, %c0_142, %c0_143] : memref<1x128x32xf32, #tpu.memory_space<vmem>>, vector<1x128x32xf32>
    %281 = vector.shape_cast %280 : vector<1x128x32xf32> to vector<128x32xf32>
    %cst_144 = arith.constant dense<0.000000e+00> : vector<8x32xf32>
    %282 = tpu.matmul %279, %281, %cst_144 {dimension_numbers = #tpu.dot_dimension_numbers<[1], [0], [0], [1], [0, 0, 1, 1], [], []>} : vector<8x128xf32>, vector<128x32xf32>, vector<8x32xf32> -> vector<8x32xf32>
    %283 = arith.addf %246, %282 : vector<8x32xf32>
    %c0_145 = arith.constant 0 : index
    %c0_146 = arith.constant 0 : index
    %c0_147 = arith.constant 0 : index
    %284 = vector.load %arg21[%c0_145, %c0_146, %c0_147] : memref<1x1x32xf32, #tpu.memory_space<vmem>>, vector<1x1x32xf32>
    %285 = vector.shape_cast %284 : vector<1x1x32xf32> to vector<1x32xf32>
    %286 = vector.broadcast %285 : vector<1x32xf32> to vector<8x32xf32>
    %287 = arith.addf %283, %286 : vector<8x32xf32>
    %288 = arith.index_cast %arg1 : i32 to index
    %c0_148 = arith.constant 0 : index
    %c0_149 = arith.constant 0 : index
    %289 = vector.load %arg24[%288, %c0_148, %c0_149] : memref<2x8x32xf32, #tpu.memory_space<vmem>>, vector<1x8x32xf32>
    %290 = vector.shape_cast %289 : vector<1x8x32xf32> to vector<8x32xf32>
    %291 = vector.shape_cast %287 : vector<8x32xf32> to vector<1x8x32xf32>
    tpu.vector_store %arg24[%288, %c0_148, %c0_149], %291 {strides = array<i32>} : memref<2x8x32xf32, #tpu.memory_space<vmem>>, vector<1x8x32xf32>,
    %c1_i32 = arith.constant 1 : i32
    %292 = arith.cmpi eq, %arg0, %c1_i32 : i32
    %293 = arith.extui %292 : i1 to i32
    %c0_i32_150 = arith.constant 0 : i32
    %294 = arith.cmpi ne, %293, %c0_i32_150 : i32
    scf.if %294 {
      %c0_151 = arith.constant 0 : index
      %c0_152 = arith.constant 0 : index
      %295 = vector.load %arg22[%c0_151, %c0_152] : memref<1x32xf32, #tpu.memory_space<vmem>>, vector<1x32xf32>
      %c0_153 = arith.constant 0 : index
      %c0_154 = arith.constant 0 : index
      %296 = vector.load %arg23[%c0_153, %c0_154] : memref<1x32xf32, #tpu.memory_space<vmem>>, vector<1x32xf32>
      %cst_155 = arith.constant dense<0.000000e+00> : vector<8xf32>
      %297 = vector.multi_reduction <add>, %287, %cst_155 [1] : vector<8x32xf32> to vector<8xf32>
      %298 = vector.shape_cast %297 : vector<8xf32> to vector<8x1xf32>
      %cst_156 = arith.constant 3.200000e+01 : f32
      %299 = vector.broadcast %cst_156 : f32 to vector<8x1xf32>
      %300 = arith.divf %298, %299 : vector<8x1xf32>
      %301 = vector.broadcast %300 : vector<8x1xf32> to vector<8x32xf32>
      %302 = arith.subf %287, %301 : vector<8x32xf32>
      %303 = arith.mulf %302, %302 : vector<8x32xf32>
      %cst_157 = arith.constant dense<0.000000e+00> : vector<8xf32>
      %304 = vector.multi_reduction <add>, %303, %cst_157 [1] : vector<8x32xf32> to vector<8xf32>
      %305 = vector.shape_cast %304 : vector<8xf32> to vector<8x1xf32>
      %cst_158 = arith.constant 3.200000e+01 : f32
      %306 = vector.broadcast %cst_158 : f32 to vector<8x1xf32>
      %307 = arith.divf %305, %306 : vector<8x1xf32>
      %cst_159 = arith.constant 9.99999974E-6 : f32
      %308 = vector.broadcast %cst_159 : f32 to vector<8x1xf32>
      %309 = arith.addf %307, %308 : vector<8x1xf32>
      %310 = math.rsqrt %309 : vector<8x1xf32>
      %311 = vector.broadcast %310 : vector<8x1xf32> to vector<8x32xf32>
      %312 = arith.mulf %302, %311 : vector<8x32xf32>
      %313 = vector.broadcast %295 : vector<1x32xf32> to vector<8x32xf32>
      %314 = arith.mulf %312, %313 : vector<8x32xf32>
      %315 = vector.broadcast %296 : vector<1x32xf32> to vector<8x32xf32>
      %316 = arith.addf %314, %315 : vector<8x32xf32>
      %317 = arith.index_cast %arg1 : i32 to index
      %c0_160 = arith.constant 0 : index
      %c0_161 = arith.constant 0 : index
      %318 = vector.load %arg24[%317, %c0_160, %c0_161] : memref<2x8x32xf32, #tpu.memory_space<vmem>>, vector<1x8x32xf32>
      %319 = vector.shape_cast %318 : vector<1x8x32xf32> to vector<8x32xf32>
      %320 = vector.shape_cast %316 : vector<8x32xf32> to vector<1x8x32xf32>
      tpu.vector_store %arg24[%317, %c0_160, %c0_161], %320 {strides = array<i32>} : memref<2x8x32xf32, #tpu.memory_space<vmem>>, vector<1x8x32xf32>,
    } else {
    }
    return
  }
  func.func @transform_0(%arg0: i32, %arg1: i32) -> (i32, i32, i32) {
    %c0_i32 = arith.constant 0 : i32
    %c0_i32_0 = arith.constant 0 : i32
    %c0_i32_1 = arith.constant 0 : i32
    return %arg1, %c0_i32, %c0_i32_0 : i32, i32, i32
  }
  func.func @transform_1(%arg0: i32, %arg1: i32) -> (i32, i32, i32) {
    %c0_i32 = arith.constant 0 : i32
    %c0_i32_0 = arith.constant 0 : i32
    %c0_i32_1 = arith.constant 0 : i32
    return %arg1, %c0_i32, %c0_i32_0 : i32, i32, i32
  }
  func.func @transform_2(%arg0: i32, %arg1: i32) -> (i32, i32, i32) {
    %c0_i32 = arith.constant 0 : i32
    %c0_i32_0 = arith.constant 0 : i32
    %c0_i32_1 = arith.constant 0 : i32
    return %arg1, %c0_i32, %c0_i32_0 : i32, i32, i32
  }
  func.func @transform_3(%arg0: i32, %arg1: i32) -> (i32, i32, i32) {
    %c0_i32 = arith.constant 0 : i32
    %c0_i32_0 = arith.constant 0 : i32
    %c0_i32_1 = arith.constant 0 : i32
    return %arg1, %c0_i32, %c0_i32_0 : i32, i32, i32
  }
  func.func @transform_4(%arg0: i32, %arg1: i32) -> (i32, i32, i32, i32) {
    %c0_i32 = arith.constant 0 : i32
    %c0_i32_0 = arith.constant 0 : i32
    %c0_i32_1 = arith.constant 0 : i32
    %c0_i32_2 = arith.constant 0 : i32
    return %arg0, %c0_i32, %c0_i32_0, %c0_i32_1 : i32, i32, i32, i32
  }
  func.func @transform_5(%arg0: i32, %arg1: i32) -> (i32, i32, i32, i32) {
    %c0_i32 = arith.constant 0 : i32
    %c0_i32_0 = arith.constant 0 : i32
    %c0_i32_1 = arith.constant 0 : i32
    %c0_i32_2 = arith.constant 0 : i32
    return %arg0, %c0_i32, %c0_i32_0, %c0_i32_1 : i32, i32, i32, i32
  }
  func.func @transform_6(%arg0: i32, %arg1: i32) -> (i32, i32, i32) {
    %c0_i32 = arith.constant 0 : i32
    %c0_i32_0 = arith.constant 0 : i32
    %c0_i32_1 = arith.constant 0 : i32
    return %arg0, %c0_i32, %c0_i32_0 : i32, i32, i32
  }
  func.func @transform_7(%arg0: i32, %arg1: i32) -> (i32, i32, i32) {
    %c0_i32 = arith.constant 0 : i32
    %c0_i32_0 = arith.constant 0 : i32
    %c0_i32_1 = arith.constant 0 : i32
    return %arg0, %c0_i32, %c0_i32_0 : i32, i32, i32
  }
  func.func @transform_8(%arg0: i32, %arg1: i32) -> (i32, i32, i32) {
    %c0_i32 = arith.constant 0 : i32
    %c0_i32_0 = arith.constant 0 : i32
    %c0_i32_1 = arith.constant 0 : i32
    return %arg0, %c0_i32, %c0_i32_0 : i32, i32, i32
  }
  func.func @transform_9(%arg0: i32, %arg1: i32) -> (i32, i32, i32) {
    %c0_i32 = arith.constant 0 : i32
    %c0_i32_0 = arith.constant 0 : i32
    %c0_i32_1 = arith.constant 0 : i32
    return %arg0, %c0_i32, %c0_i32_0 : i32, i32, i32
  }
  func.func @transform_10(%arg0: i32, %arg1: i32) -> (i32, i32, i32) {
    %c0_i32 = arith.constant 0 : i32
    %c0_i32_0 = arith.constant 0 : i32
    %c0_i32_1 = arith.constant 0 : i32
    return %arg0, %c0_i32, %c0_i32_0 : i32, i32, i32
  }
  func.func @transform_11(%arg0: i32, %arg1: i32) -> (i32, i32, i32) {
    %c0_i32 = arith.constant 0 : i32
    %c0_i32_0 = arith.constant 0 : i32
    %c0_i32_1 = arith.constant 0 : i32
    return %arg0, %c0_i32, %c0_i32_0 : i32, i32, i32
  }
  func.func @transform_12(%arg0: i32, %arg1: i32) -> (i32, i32, i32) {
    %c0_i32 = arith.constant 0 : i32
    %c0_i32_0 = arith.constant 0 : i32
    %c0_i32_1 = arith.constant 0 : i32
    return %arg0, %c0_i32, %c0_i32_0 : i32, i32, i32
  }
  func.func @transform_13(%arg0: i32, %arg1: i32) -> (i32, i32, i32) {
    %c0_i32 = arith.constant 0 : i32
    %c0_i32_0 = arith.constant 0 : i32
    %c0_i32_1 = arith.constant 0 : i32
    return %arg0, %c0_i32, %c0_i32_0 : i32, i32, i32
  }
  func.func @transform_14(%arg0: i32, %arg1: i32) -> (i32, i32, i32) {
    %c0_i32 = arith.constant 0 : i32
    %c0_i32_0 = arith.constant 0 : i32
    %c0_i32_1 = arith.constant 0 : i32
    return %arg0, %c0_i32, %c0_i32_0 : i32, i32, i32
  }
  func.func @transform_15(%arg0: i32, %arg1: i32) -> (i32, i32, i32) {
    %c0_i32 = arith.constant 0 : i32
    %c0_i32_0 = arith.constant 0 : i32
    %c0_i32_1 = arith.constant 0 : i32
    return %arg0, %c0_i32, %c0_i32_0 : i32, i32, i32
  }
  func.func @transform_16(%arg0: i32, %arg1: i32) -> (i32, i32, i32) {
    %c0_i32 = arith.constant 0 : i32
    %c0_i32_0 = arith.constant 0 : i32
    %c0_i32_1 = arith.constant 0 : i32
    return %arg0, %c0_i32, %c0_i32_0 : i32, i32, i32
  }
  func.func @transform_17(%arg0: i32, %arg1: i32) -> (i32, i32, i32) {
    %c0_i32 = arith.constant 0 : i32
    %c0_i32_0 = arith.constant 0 : i32
    %c0_i32_1 = arith.constant 0 : i32
    return %arg0, %c0_i32, %c0_i32_0 : i32, i32, i32
  }
  func.func @transform_18(%arg0: i32, %arg1: i32) -> (i32, i32, i32) {
    %c0_i32 = arith.constant 0 : i32
    %c0_i32_0 = arith.constant 0 : i32
    %c0_i32_1 = arith.constant 0 : i32
    return %arg0, %c0_i32, %c0_i32_0 : i32, i32, i32
  }
  func.func @transform_19(%arg0: i32, %arg1: i32) -> (i32, i32, i32) {
    %c0_i32 = arith.constant 0 : i32
    %c0_i32_0 = arith.constant 0 : i32
    %c0_i32_1 = arith.constant 0 : i32
    return %arg0, %c0_i32, %c0_i32_0 : i32, i32, i32
  }
  func.func @transform_20(%arg0: i32, %arg1: i32) -> (i32, i32) {
    %c0_i32 = arith.constant 0 : i32
    %c0_i32_0 = arith.constant 0 : i32
    %c0_i32_1 = arith.constant 0 : i32
    return %c0_i32, %c0_i32_0 : i32, i32
  }
  func.func @transform_21(%arg0: i32, %arg1: i32) -> (i32, i32) {
    %c0_i32 = arith.constant 0 : i32
    %c0_i32_0 = arith.constant 0 : i32
    %c0_i32_1 = arith.constant 0 : i32
    return %c0_i32, %c0_i32_0 : i32, i32
  }
  func.func @transform_22(%arg0: i32, %arg1: i32) -> (i32, i32, i32) {
    %c0_i32 = arith.constant 0 : i32
    %c0_i32_0 = arith.constant 0 : i32
    %c0_i32_1 = arith.constant 0 : i32
    %c0_i32_2 = arith.constant 0 : i32
    return %c0_i32, %c0_i32_0, %c0_i32_1 : i32, i32, i32
  }
}

</mosaic_0001>

<llo_original>
// kernel: decoder_forward.3
$region0: #{decoder_forward.3}
  #allocation0 [shape = 'u32[]', space=smem, size = 0x4, offset = 0x4, fixed_abs, tag = 'smem constant byte address 0x4 - core index']
  #allocation1 [shape = 'u32[144,128]{1,0:T(1,128)}', space=vmem, size = 0x12000, scoped, tag = 'internal scratch']
  %s0 = inlined_call_operand.vmem [shape: f32[2,8,32], index: 0, kind: input, shape index: {}]
  %s1 = inlined_call_operand.vmem [shape: f32[32,128], index: 1, kind: input, shape index: {}]
  %s2 = inlined_call_operand.vmem [shape: f32[1,128], index: 2, kind: input, shape index: {}]
  %s3 = inlined_call_operand.vmem [shape: f32[2,8,128], index: 3, kind: output, shape index: {}]
  %s4 = sld [smem:[#allocation0]]
  $region45: #{decoder_forward.3} parent=0
    _
  %s6 = ssub.s32 1, %s4
  %s7 = scalar_select 0, %s6, %s4
  loop: start=0, step=1, limit=4
  $region2: #{decoder_forward.3} parent=0 // loop_pre_header
    _
  $region3: #{decoder_forward.3} parent=0 // loop_header
    %s9 = sphi 0, %s13
    %p10 = scmp.ge.s32.totalorder %s9, 4
    %s16 = sphi 0, %s28
    %s17 = sphi 0, %s24
    %s18 = sphi 0, %s16
    %s19 = sphi 0, %s17
    %s20 = sphi 0, %s18
    %s21 = sphi 0, %s19
    %s31 = sphi 0, %s33
    %s34 = sphi 0, %s31
    %s35 = sphi 0, %s34
    %s51 = sphi 0, %s35
    %s57 = sphi 0, %s59
    %s60 = sphi 0, %s57
    %s61 = sphi 0, %s60
    %s77 = sphi 0, %s61
    %s83 = sphi 0, %s85
    %s86 = sphi 0, %s83
    %s87 = sphi 0, %s86
    %s103 = sphi 0, %s87
    %s111 = sphi 0, %s113
    %s114 = sphi 0, %s111
    %s115 = sphi 0, %s114
    %s131 = sphi 0, %s115
  $region4: #{decoder_forward.3} parent=0 // loop_header_branch
    %12 = sbr.rel (%p10) target = $region8
  $region5: #{decoder_forward.3} parent=0 // loop_body
    %s14 = ssub.s32 %s9, 1
    %s15 = ssub.s32 %s9, 2
    %s22 = sadd.s32 1, %s17
    %p23 = scmp.ge.s32.totalorder %s22, 1
    %s24 = scalar_select %p23, 0, %s22
    %s25 = sadd.s32 1, %s16
    %s26 = scalar_select %p23, %s25, %s16
    %p27 = scmp.ge.s32.totalorder %s26, 2
    %s28 = scalar_select %p27, 0, %s26
    %s29 = ssub.s32 %s16, %s28
    %p30 = scmp.eq.s32.totalorder %s29, 0
    %s32 = sadd.s32 %s31, 1
    %s33 = scalar_select %p30, %s31, %s32
    %p36 = pneg %p30
    %p37 = scmp.eq.s32.totalorder %s9, 1
    %p38 = por %p36, %p37
    %p39 = scmp.ne.s32.totalorder %s31, %s34
    %p40 = scmp.eq.s32.totalorder %s9, 0
    %p41 = por %p39, %p40
    %p42 = scmp.ne.s32.totalorder %s31, %s34
    %p43 = scmp.eq.s32.totalorder %s14, 1
    %p44 = por %p42, %p43
    %p45 = scmp.ne.s32.totalorder %s34, %s35
    %p46 = scmp.eq.s32.totalorder %s14, 0
    %p47 = por %p45, %p46
    %p48 = scmp.ne.s32.totalorder %s34, %s35
    %p49 = scmp.eq.s32.totalorder %s15, 1
    %p50 = por %p48, %p49
    %p52 = scmp.ne.s32.totalorder %s35, %s51
    %p53 = scmp.eq.s32.totalorder %s15, 0
    %p54 = por %p52, %p53
    %s55 = ssub.s32 %s17, %s24
    %p56 = scmp.eq.s32.totalorder %s55, 0
    %s58 = sadd.s32 %s57, 1
    %s59 = scalar_select %p56, %s57, %s58
    %p62 = pneg %p56
    %p63 = scmp.eq.s32.totalorder %s9, 1
    %p64 = por %p62, %p63
    %p65 = scmp.ne.s32.totalorder %s57, %s60
    %p66 = scmp.eq.s32.totalorder %s9, 0
    %p67 = por %p65, %p66
    %p68 = scmp.ne.s32.totalorder %s57, %s60
    %p69 = scmp.eq.s32.totalorder %s14, 1
    %p70 = por %p68, %p69
    %p71 = scmp.ne.s32.totalorder %s60, %s61
    %p72 = scmp.eq.s32.totalorder %s14, 0
    %p73 = por %p71, %p72
    %p74 = scmp.ne.s32.totalorder %s60, %s61
    %p75 = scmp.eq.s32.totalorder %s15, 1
    %p76 = por %p74, %p75
    %p78 = scmp.ne.s32.totalorder %s61, %s77
    %p79 = scmp.eq.s32.totalorder %s15, 0
    %p80 = por %p78, %p79
    %s81 = ssub.s32 %s17, %s24
    %p82 = scmp.eq.s32.totalorder %s81, 0
    %s84 = sadd.s32 %s83, 1
    %s85 = scalar_select %p82, %s83, %s84
    %p88 = pneg %p82
    %p89 = scmp.eq.s32.totalorder %s9, 1
    %p90 = por %p88, %p89
    %p91 = scmp.ne.s32.totalorder %s83, %s86
    %p92 = scmp.eq.s32.totalorder %s9, 0
    %p93 = por %p91, %p92
    %p94 = scmp.ne.s32.totalorder %s83, %s86
    %p95 = scmp.eq.s32.totalorder %s14, 1
    %p96 = por %p94, %p95
    %p97 = scmp.ne.s32.totalorder %s86, %s87
    %p98 = scmp.eq.s32.totalorder %s14, 0
    %p99 = por %p97, %p98
    %p100 = scmp.ne.s32.totalorder %s86, %s87
    %p101 = scmp.eq.s32.totalorder %s15, 1
    %p102 = por %p100, %p101
    %p104 = scmp.ne.s32.totalorder %s87, %s103
    %p105 = scmp.eq.s32.totalorder %s15, 0
    %p106 = por %p104, %p105
    %s107 = ssub.s32 %s16, %s28
    %s108 = ssub.s32 %s17, %s24
    %s109 = sor.u32 %s107, %s108
    %p110 = scmp.eq.s32.totalorder %s109, 0
    %s112 = sadd.s32 %s111, 1
    %s113 = scalar_select %p110, %s111, %s112
    %p116 = pneg %p110
    %p117 = scmp.eq.s32.totalorder %s9, 1
    %p118 = por %p116, %p117
    %p119 = scmp.ne.s32.totalorder %s111, %s114
    %p120 = scmp.eq.s32.totalorder %s9, 0
    %p121 = por %p119, %p120
    %p122 = scmp.ne.s32.totalorder %s111, %s114
    %p123 = scmp.eq.s32.totalorder %s14, 1
    %p124 = por %p122, %p123
    %p125 = scmp.ne.s32.totalorder %s114, %s115
    %p126 = scmp.eq.s32.totalorder %s14, 0
    %p127 = por %p125, %p126
    %p128 = scmp.ne.s32.totalorder %s114, %s115
    %p129 = scmp.eq.s32.totalorder %s15, 1
    %p130 = por %p128, %p129
    %p132 = scmp.ne.s32.totalorder %s115, %s131
    %p133 = scmp.eq.s32.totalorder %s15, 0
    %p134 = por %p132, %p133
    %p135 = scmp.le.s32.totalorder 1, %s9
    %p136 = scmp.lt.s32.totalorder %s9, 3
    %p137 = pnand %p135, %p136
    %p138 = pneg %p137
    // Predicated region
    $region9: #{decoder_forward.3} parent=5 // pred_check
      _
    $region10: #{decoder_forward.3} parent=5 // pred_check_branch
      %140 = sbr.rel (%p137) target = $region12
    $region11: #{decoder_forward.3} parent=5 // pred_region
      %s141 = ssub.s32 %s9, 1
      // Predicated region
      $region13: #{decoder_forward.3} parent=11 // pred_check
        %p142 = pneg %p73
      $region14: #{decoder_forward.3} parent=11 // pred_check_branch
        %144 = sbr.rel (%p142) target = $region16
      $region15: #{decoder_forward.3} parent=11 // pred_region
        %p145 = scmp.lt.s32.totalorder %s19, 0
        %s146 = scalar_select %p145, %s19, 0
        %s147 = smul.addr %s146, 8
        %s148 = scalar_lea.vmem %s1, %s147
      $region16: #{decoder_forward.3} parent=11 // pred_fallthru
        _
      // Predicated region
      $region17: #{decoder_forward.3} parent=11 // pred_check
        %p149 = pneg %p99
      $region18: #{decoder_forward.3} parent=11 // pred_check_branch
        %151 = sbr.rel (%p149) target = $region20
      $region19: #{decoder_forward.3} parent=11 // pred_region
        %p152 = scmp.lt.s32.totalorder %s19, 0
        %s153 = scalar_select %p152, %s19, 0
        %s154 = scalar_lea.vmem %s2, %s153
      $region20: #{decoder_forward.3} parent=11 // pred_fallthru
        _
    $region12: #{decoder_forward.3} parent=5 // pred_fallthru
      _
    %p155 = scmp.lt.s32.totalorder %s9, 2
    // Predicated region
    $region21: #{decoder_forward.3} parent=5 // pred_check
      %p156 = pneg %p155
    $region22: #{decoder_forward.3} parent=5 // pred_check_branch
      %158 = sbr.rel (%p156) target = $region24
    $region23: #{decoder_forward.3} parent=5 // pred_region
      // Predicated region
      $region25: #{decoder_forward.3} parent=23 // pred_check
        %p159 = pneg %p41
      $region26: #{decoder_forward.3} parent=23 // pred_check_branch
        %161 = sbr.rel (%p159) target = $region28
      $region27: #{decoder_forward.3} parent=23 // pred_region
        %p162 = scmp.lt.s32.totalorder %s16, 1
        %s163 = scalar_select %p162, %s16, 1
        %s164 = smul.addr %s163, 8
        %s165 = scalar_lea.vmem %s0, %s164
      $region28: #{decoder_forward.3} parent=23 // pred_fallthru
        _
    $region24: #{decoder_forward.3} parent=5 // pred_fallthru
      _
    %p166 = scmp.le.s32.totalorder 1, %s9
    %p167 = scmp.lt.s32.totalorder %s9, 3
    %p168 = pnand %p166, %p167
    %p169 = pneg %p168
    // Predicated region
    $region29: #{decoder_forward.3} parent=5 // pred_check
      _
    $region30: #{decoder_forward.3} parent=5 // pred_check_branch
      %171 = sbr.rel (%p168) target = $region32
    $region31: #{decoder_forward.3} parent=5 // pred_region
      %s172 = ssub.s32 %s9, 1
      %p173 = scmp.lt.s32.totalorder %s18, 1
      %s174 = scalar_select %p173, %s18, 1
      %s175 = smul.addr %s174, 8
      %s176 = scalar_lea.vmem %s0, %s175
      %p177 = pneg %p47
      %p178 = pneg %p44
      %p179 = scmp.lt.s32.totalorder %s19, 0
      %s180 = scalar_select %p179, %s19, 0
      %s181 = smul.addr %s180, 8
      %s182 = scalar_lea.vmem %s1, %s181
      %p183 = pneg %p73
      %p184 = pneg %p70
      %p185 = scmp.lt.s32.totalorder %s19, 0
      %s186 = scalar_select %p185, %s19, 0
      %s187 = scalar_lea.vmem %s2, %s186
      %p188 = pneg %p99
      %p189 = pneg %p96
      %p190 = pneg %p127
      %p191 = pneg %p124
      %p192 = scmp.lt.s32.totalorder %s18, 1
      %s193 = scalar_select %p192, %s18, 1
      %p194 = scmp.lt.s32.totalorder %s19, 0
      %s195 = scalar_select %p194, %s19, 0
      %s196 = sadd.s32 %s195, %s193
      %s197 = smul.addr %s196, 8
      %s198 = scalar_lea.vmem %s3, %s197
      %p199 = scmp.lt.s32.totalorder %s18, 1
      %s200 = scalar_select %p199, %s18, 1
      %s201 = smul.addr %s200, 8
      %s202 = scalar_lea.vmem %s0, %s201
      %p203 = scmp.lt.s32.totalorder %s19, 0
      %s204 = scalar_select %p203, %s19, 0
      %s205 = smul.addr %s204, 8
      %s206 = scalar_lea.vmem %s1, %s205
      %p207 = scmp.lt.s32.totalorder %s19, 0
      %s208 = scalar_select %p207, %s19, 0
      %s209 = scalar_lea.vmem %s2, %s208
      %p210 = scmp.lt.s32.totalorder %s18, 1
      %s211 = scalar_select %p210, %s18, 1
      %p212 = scmp.lt.s32.totalorder %s19, 0
      %s213 = scalar_select %p212, %s19, 0
      %s214 = sadd.s32 %s213, %s211
      %s215 = smul.addr %s214, 8
      %s216 = scalar_lea.vmem %s3, %s215
      %v217 = vld [vmem:[%s202] sm:$0xff]
      %v218 = vld [vmem:[%s206] sm:$0xff]
      %v219 = vld [vmem:[%s206 + $0x8] sm:$0xff]
      %v220 = vld [vmem:[%s206 + $0x10] sm:$0xff]
      %v221 = vld [vmem:[%s206 + $0x18] sm:$0xff]
      %v222 = vld [vmem:[%s209] sm:$0x1]
      %v224 = vlaneseq
      %v225 = vshrl.u32 %v224, 7
      %v226 = vsub.s32 0, %v225
      %v227 = vrot.slane %v222, %v226
      %vm229 = vcmask 261120
      %v231 = vsel %vm229, %v217, 0
      %233 = vmatprep.subr.mxu0 0.0
      %234 = vmatpush1.msra.mxu0 %v218
      %235 = vmatprep.subr.mxu0 0.0
      %236 = vmatpush1.msra.mxu0 %v219
      %237 = vmatprep.subr.mxu0 0.0
      %238 = vmatpush1.msra.mxu0 %v220
      %239 = vmatprep.subr.mxu0 0.0
      %240 = vmatpush1.msra.mxu0 %v221
      %241 = vmatprep.subr.mxu0 0.0
      %242 = vmatpush1.msra.mxu0 0.0
      %243 = vmatprep.subr.mxu0 0.0
      %244 = vmatpush1.msra.mxu0 0.0
      %245 = vmatprep.subr.mxu0 0.0
      %246 = vmatpush1.msra.mxu0 0.0
      %247 = vmatprep.subr.mxu0 0.0
      %248 = vmatpush1.msra.mxu0 0.0
      %249 = vmatprep.subr.mxu0 0.0
      %250 = vmatpush1.msra.mxu0 0.0
      %251 = vmatprep.subr.mxu0 0.0
      %252 = vmatpush1.msra.mxu0 0.0
      %253 = vmatprep.subr.mxu0 0.0
      %254 = vmatpush1.msra.mxu0 0.0
      %255 = vmatprep.subr.mxu0 0.0
      %256 = vmatpush1.msra.mxu0 0.0
      %257 = vmatprep.subr.mxu0 0.0
      %258 = vmatpush1.msra.mxu0 0.0
      %259 = vmatprep.subr.mxu0 0.0
      %260 = vmatpush1.msra.mxu0 0.0
      %261 = vmatprep.subr.mxu0 0.0
      %262 = vmatpush1.msra.mxu0 0.0
      %263 = vmatprep.subr.mxu0 0.0
      %264 = vmatpush1.msra.mxu0 0.0
      %265 = vmatprep.subr.mxu0 0.0
      %266 = vmatpush1.msra.mxu0 0.0
      %267 = vmatprep.subr.mxu0 0.0
      %268 = vmatpush1.msra.mxu0 0.0
      %269 = vmatprep.subr.mxu0 0.0
      %270 = vmatpush1.msra.mxu0 0.0
      %271 = vmatprep.subr.mxu0 0.0
      %272 = vmatpush1.msra.mxu0 0.0
      %273 = vmatprep.subr.mxu0 0.0
      %274 = vmatpush1.msra.mxu0 0.0
      %275 = vmatprep.subr.mxu0 0.0
      %276 = vmatpush1.msra.mxu0 0.0
      %277 = vmatprep.subr.mxu0 0.0
      %278 = vmatpush1.msra.mxu0 0.0
      %279 = vmatprep.subr.mxu0 0.0
      %280 = vmatpush1.msra.mxu0 0.0
      %281 = vmatprep.subr.mxu0 0.0
      %282 = vmatpush1.msra.mxu0 0.0
      %283 = vmatprep.subr.mxu0 0.0
      %284 = vmatpush1.msra.mxu0 0.0
      %285 = vmatprep.subr.mxu0 0.0
      %286 = vmatpush1.msra.mxu0 0.0
      %287 = vmatprep.subr.mxu0 0.0
      %288 = vmatpush1.msra.mxu0 0.0
      %289 = vmatprep.subr.mxu0 0.0
      %290 = vmatpush1.msra.mxu0 0.0
      %291 = vmatprep.subr.mxu0 0.0
      %292 = vmatpush1.msra.mxu0 0.0
      %293 = vmatprep.subr.mxu0 0.0
      %294 = vmatpush1.msra.mxu0 0.0
      %295 = vmatprep.subr.mxu0 0.0
      %296 = vmatpush1.msra.mxu0 0.0
      %297 = vmatprep.mubr.f32.mxu0 0.0
      %298 = vmatmul.mubr.f32.gmra.mrb[0].mxu0 %v231
      %v299 = vpop.f32.mrb[0].mxu0
      %v300 = vadd.f32 %v227, %v299
      %v301 = vpop.f32.mrb[0].mxu0
      %302 = vdwg.mxu0
      %303 = vst [vmem:[%s216] sm:$0xff] %v300
      %p304 = scmp.lt.s32.totalorder %s18, 1
      %s305 = scalar_select %p304, %s18, 1
      %p306 = scmp.lt.s32.totalorder %s19, 0
      %s307 = scalar_select %p306, %s19, 0
      %s308 = sadd.s32 %s307, %s305
      %s309 = smul.addr %s308, 8
      %s310 = scalar_lea.vmem %s3, %s309
      // Predicated region
      $region33: #{decoder_forward.3} parent=31 // pred_check
        %p311 = pneg %p124
      $region34: #{decoder_forward.3} parent=31 // pred_check_branch
        %313 = sbr.rel (%p311) target = $region36
      $region35: #{decoder_forward.3} parent=31 // pred_region
        _
      $region36: #{decoder_forward.3} parent=31 // pred_fallthru
        _
    $region32: #{decoder_forward.3} parent=5 // pred_fallthru
      _
    %p314 = scmp.le.s32.totalorder 2, %s9
    // Predicated region
    $region37: #{decoder_forward.3} parent=5 // pred_check
      %p315 = pneg %p314
    $region38: #{decoder_forward.3} parent=5 // pred_check_branch
      %317 = sbr.rel (%p315) target = $region40
    $region39: #{decoder_forward.3} parent=5 // pred_region
      %s318 = ssub.s32 %s9, 2
      // Predicated region
      $region41: #{decoder_forward.3} parent=39 // pred_check
        %p319 = pneg %p130
      $region42: #{decoder_forward.3} parent=39 // pred_check_branch
        %321 = sbr.rel (%p319) target = $region44
      $region43: #{decoder_forward.3} parent=39 // pred_region
        %p322 = scmp.lt.s32.totalorder %s20, 1
        %s323 = scalar_select %p322, %s20, 1
        %p324 = scmp.lt.s32.totalorder %s21, 0
        %s325 = scalar_select %p324, %s21, 0
        %s326 = sadd.s32 %s325, %s323
        %s327 = smul.addr %s326, 8
        %s328 = scalar_lea.vmem %s3, %s327
      $region44: #{decoder_forward.3} parent=39 // pred_fallthru
        _
    $region40: #{decoder_forward.3} parent=5 // pred_fallthru
      _
  $region6: #{decoder_forward.3} parent=0 // loop_footer
    %s13 = sadd.s32 1, %s9
  $region7: #{decoder_forward.3} parent=0 // loop_footer_branch
    %8 = sbr.rel target = $region3
  $region8: #{decoder_forward.3} parent=0 // loop_exit
    _

// kernel: decoder_forward.2
$region0: #{decoder_forward.2}
  #allocation0 [shape = 'u32[]', space=smem, size = 0x4, offset = 0x4, fixed_abs, tag = 'smem constant byte address 0x4 - core index']
  #allocation1 [shape = 'u32[144,128]{1,0:T(1,128)}', space=vmem, size = 0x12000, scoped, tag = 'internal scratch']
  #allocation2 [shape = 'f32[8,8]{1,0:T(8,128)}', space=vmem, size = 0x1000, scoped, tag = 'scratch operand']
  #allocation3 [shape = 'f32[8,32]{1,0:T(8,128)}', space=vmem, size = 0x1000, scoped, tag = 'scratch operand']
  %s0 = inlined_call_operand.vmem [shape: f32[2,8,32], index: 0, kind: input, shape index: {}]
  %s1 = inlined_call_operand.vmem [shape: f32[2,10,32], index: 1, kind: input, shape index: {}]
  %s2 = inlined_call_operand.vmem [shape: f32[2,1,8], index: 2, kind: input, shape index: {}]
  %s3 = inlined_call_operand.vmem [shape: f32[2,1,10], index: 3, kind: input, shape index: {}]
  %s4 = inlined_call_operand.vmem [shape: f32[2,3,1,32], index: 4, kind: input, shape index: {}]
  %s5 = inlined_call_operand.vmem [shape: f32[2,3,1,32], index: 5, kind: input, shape index: {}]
  %s6 = inlined_call_operand.vmem [shape: f32[2,32,96], index: 6, kind: input, shape index: {}]
  %s7 = inlined_call_operand.vmem [shape: f32[2,1,96], index: 7, kind: input, shape index: {}]
  %s8 = inlined_call_operand.vmem [shape: f32[2,32,32], index: 8, kind: input, shape index: {}]
  %s9 = inlined_call_operand.vmem [shape: f32[2,1,32], index: 9, kind: input, shape index: {}]
  %s10 = inlined_call_operand.vmem [shape: f32[2,32,32], index: 10, kind: input, shape index: {}]
  %s11 = inlined_call_operand.vmem [shape: f32[2,1,32], index: 11, kind: input, shape index: {}]
  %s12 = inlined_call_operand.vmem [shape: f32[2,32,64], index: 12, kind: input, shape index: {}]
  %s13 = inlined_call_operand.vmem [shape: f32[2,1,64], index: 13, kind: input, shape index: {}]
  %s14 = inlined_call_operand.vmem [shape: f32[2,32,32], index: 14, kind: input, shape index: {}]
  %s15 = inlined_call_operand.vmem [shape: f32[2,1,32], index: 15, kind: input, shape index: {}]
  %s16 = inlined_call_operand.vmem [shape: f32[2,32,128], index: 16, kind: input, shape index: {}]
  %s17 = inlined_call_operand.vmem [shape: f32[2,1,128], index: 17, kind: input, shape index: {}]
  %s18 = inlined_call_operand.vmem [shape: f32[2,128,32], index: 18, kind: input, shape index: {}]
  %s19 = inlined_call_operand.vmem [shape: f32[2,1,32], index: 19, kind: input, shape index: {}]
  %s20 = inlined_call_operand.vmem [shape: f32[1,32], index: 20, kind: input, shape index: {}]
  %s21 = inlined_call_operand.vmem [shape: f32[1,32], index: 21, kind: input, shape index: {}]
  %s22 = inlined_call_operand.vmem [shape: f32[2,8,32], index: 22, kind: output, shape index: {}]
  %s23 = sld [smem:[#allocation0]]
  $region129: #{decoder_forward.2} parent=0
    _
  %s25 = ssub.s32 1, %s23
  %s26 = scalar_select 0, %s25, %s23
  loop: start=0, step=1, limit=6
  $region2: #{decoder_forward.2} parent=0 // loop_pre_header
    _
  $region3: #{decoder_forward.2} parent=0 // loop_header
    %s28 = sphi 0, %s32
    %p29 = scmp.ge.s32.totalorder %s28, 6
    %s35 = sphi 0, %s47
    %s36 = sphi 0, %s43
    %s37 = sphi 0, %s35
    %s38 = sphi 0, %s36
    %s39 = sphi 0, %s37
    %s40 = sphi 0, %s38
    %s50 = sphi 0, %s52
    %s53 = sphi 0, %s50
    %s54 = sphi 0, %s53
    %s70 = sphi 0, %s54
    %s76 = sphi 0, %s78
    %s79 = sphi 0, %s76
    %s80 = sphi 0, %s79
    %s96 = sphi 0, %s80
    %s102 = sphi 0, %s104
    %s105 = sphi 0, %s102
    %s106 = sphi 0, %s105
    %s122 = sphi 0, %s106
    %s128 = sphi 0, %s130
    %s131 = sphi 0, %s128
    %s132 = sphi 0, %s131
    %s148 = sphi 0, %s132
    %s154 = sphi 0, %s156
    %s157 = sphi 0, %s154
    %s158 = sphi 0, %s157
    %s174 = sphi 0, %s158
    %s180 = sphi 0, %s182
    %s183 = sphi 0, %s180
    %s184 = sphi 0, %s183
    %s200 = sphi 0, %s184
    %s206 = sphi 0, %s208
    %s209 = sphi 0, %s206
    %s210 = sphi 0, %s209
    %s226 = sphi 0, %s210
    %s232 = sphi 0, %s234
    %s235 = sphi 0, %s232
    %s236 = sphi 0, %s235
    %s252 = sphi 0, %s236
    %s258 = sphi 0, %s260
    %s261 = sphi 0, %s258
    %s262 = sphi 0, %s261
    %s278 = sphi 0, %s262
    %s284 = sphi 0, %s286
    %s287 = sphi 0, %s284
    %s288 = sphi 0, %s287
    %s304 = sphi 0, %s288
    %s310 = sphi 0, %s312
    %s313 = sphi 0, %s310
    %s314 = sphi 0, %s313
    %s330 = sphi 0, %s314
    %s336 = sphi 0, %s338
    %s339 = sphi 0, %s336
    %s340 = sphi 0, %s339
    %s356 = sphi 0, %s340
    %s362 = sphi 0, %s364
    %s365 = sphi 0, %s362
    %s366 = sphi 0, %s365
    %s382 = sphi 0, %s366
    %s388 = sphi 0, %s390
    %s391 = sphi 0, %s388
    %s392 = sphi 0, %s391
    %s408 = sphi 0, %s392
    %s414 = sphi 0, %s416
    %s417 = sphi 0, %s414
    %s418 = sphi 0, %s417
    %s434 = sphi 0, %s418
    %s440 = sphi 0, %s442
    %s443 = sphi 0, %s440
    %s444 = sphi 0, %s443
    %s460 = sphi 0, %s444
    %s466 = sphi 0, %s468
    %s469 = sphi 0, %s466
    %s470 = sphi 0, %s469
    %s486 = sphi 0, %s470
    %s492 = sphi 0, %s494
    %s495 = sphi 0, %s492
    %s496 = sphi 0, %s495
    %s512 = sphi 0, %s496
    %s518 = sphi 0, %s520
    %s521 = sphi 0, %s518
    %s522 = sphi 0, %s521
    %s538 = sphi 0, %s522
    %s544 = sphi 0, %s546
    %s547 = sphi 0, %s544
    %s548 = sphi 0, %s547
    %s564 = sphi 0, %s548
    %s568 = sphi 0, %s568
    %s570 = sphi 0, %s568
    %s571 = sphi 0, %s570
    %s585 = sphi 0, %s571
    %s589 = sphi 0, %s589
    %s591 = sphi 0, %s589
    %s592 = sphi 0, %s591
    %s606 = sphi 0, %s592
    %s610 = sphi 0, %s610
    %s612 = sphi 0, %s610
    %s613 = sphi 0, %s612
    %s627 = sphi 0, %s613
  $region4: #{decoder_forward.2} parent=0 // loop_header_branch
    %31 = sbr.rel (%p29) target = $region8
  $region5: #{decoder_forward.2} parent=0 // loop_body
    %s33 = ssub.s32 %s28, 1
    %s34 = ssub.s32 %s28, 2
    %s41 = sadd.s32 1, %s36
    %p42 = scmp.ge.s32.totalorder %s41, 2
    %s43 = scalar_select %p42, 0, %s41
    %s44 = sadd.s32 1, %s35
    %s45 = scalar_select %p42, %s44, %s35
    %p46 = scmp.ge.s32.totalorder %s45, 2
    %s47 = scalar_select %p46, 0, %s45
    %s48 = ssub.s32 %s36, %s43
    %p49 = scmp.eq.s32.totalorder %s48, 0
    %s51 = sadd.s32 %s50, 1
    %s52 = scalar_select %p49, %s50, %s51
    %p55 = pneg %p49
    %p56 = scmp.eq.s32.totalorder %s28, 3
    %p57 = por %p55, %p56
    %p58 = scmp.ne.s32.totalorder %s50, %s53
    %p59 = scmp.eq.s32.totalorder %s28, 0
    %p60 = por %p58, %p59
    %p61 = scmp.ne.s32.totalorder %s50, %s53
    %p62 = scmp.eq.s32.totalorder %s33, 3
    %p63 = por %p61, %p62
    %p64 = scmp.ne.s32.totalorder %s53, %s54
    %p65 = scmp.eq.s32.totalorder %s33, 0
    %p66 = por %p64, %p65
    %p67 = scmp.ne.s32.totalorder %s53, %s54
    %p68 = scmp.eq.s32.totalorder %s34, 3
    %p69 = por %p67, %p68
    %p71 = scmp.ne.s32.totalorder %s54, %s70
    %p72 = scmp.eq.s32.totalorder %s34, 0
    %p73 = por %p71, %p72
    %s74 = ssub.s32 %s36, %s43
    %p75 = scmp.eq.s32.totalorder %s74, 0
    %s77 = sadd.s32 %s76, 1
    %s78 = scalar_select %p75, %s76, %s77
    %p81 = pneg %p75
    %p82 = scmp.eq.s32.totalorder %s28, 3
    %p83 = por %p81, %p82
    %p84 = scmp.ne.s32.totalorder %s76, %s79
    %p85 = scmp.eq.s32.totalorder %s28, 0
    %p86 = por %p84, %p85
    %p87 = scmp.ne.s32.totalorder %s76, %s79
    %p88 = scmp.eq.s32.totalorder %s33, 3
    %p89 = por %p87, %p88
    %p90 = scmp.ne.s32.totalorder %s79, %s80
    %p91 = scmp.eq.s32.totalorder %s33, 0
    %p92 = por %p90, %p91
    %p93 = scmp.ne.s32.totalorder %s79, %s80
    %p94 = scmp.eq.s32.totalorder %s34, 3
    %p95 = por %p93, %p94
    %p97 = scmp.ne.s32.totalorder %s80, %s96
    %p98 = scmp.eq.s32.totalorder %s34, 0
    %p99 = por %p97, %p98
    %s100 = ssub.s32 %s36, %s43
    %p101 = scmp.eq.s32.totalorder %s100, 0
    %s103 = sadd.s32 %s102, 1
    %s104 = scalar_select %p101, %s102, %s103
    %p107 = pneg %p101
    %p108 = scmp.eq.s32.totalorder %s28, 3
    %p109 = por %p107, %p108
    %p110 = scmp.ne.s32.totalorder %s102, %s105
    %p111 = scmp.eq.s32.totalorder %s28, 0
    %p112 = por %p110, %p111
    %p113 = scmp.ne.s32.totalorder %s102, %s105
    %p114 = scmp.eq.s32.totalorder %s33, 3
    %p115 = por %p113, %p114
    %p116 = scmp.ne.s32.totalorder %s105, %s106
    %p117 = scmp.eq.s32.totalorder %s33, 0
    %p118 = por %p116, %p117
    %p119 = scmp.ne.s32.totalorder %s105, %s106
    %p120 = scmp.eq.s32.totalorder %s34, 3
    %p121 = por %p119, %p120
    %p123 = scmp.ne.s32.totalorder %s106, %s122
    %p124 = scmp.eq.s32.totalorder %s34, 0
    %p125 = por %p123, %p124
    %s126 = ssub.s32 %s36, %s43
    %p127 = scmp.eq.s32.totalorder %s126, 0
    %s129 = sadd.s32 %s128, 1
    %s130 = scalar_select %p127, %s128, %s129
    %p133 = pneg %p127
    %p134 = scmp.eq.s32.totalorder %s28, 3
    %p135 = por %p133, %p134
    %p136 = scmp.ne.s32.totalorder %s128, %s131
    %p137 = scmp.eq.s32.totalorder %s28, 0
    %p138 = por %p136, %p137
    %p139 = scmp.ne.s32.totalorder %s128, %s131
    %p140 = scmp.eq.s32.totalorder %s33, 3
    %p141 = por %p139, %p140
    %p142 = scmp.ne.s32.totalorder %s131, %s132
    %p143 = scmp.eq.s32.totalorder %s33, 0
    %p144 = por %p142, %p143
    %p145 = scmp.ne.s32.totalorder %s131, %s132
    %p146 = scmp.eq.s32.totalorder %s34, 3
    %p147 = por %p145, %p146
    %p149 = scmp.ne.s32.totalorder %s132, %s148
    %p150 = scmp.eq.s32.totalorder %s34, 0
    %p151 = por %p149, %p150
    %s152 = ssub.s32 %s35, %s47
    %p153 = scmp.eq.s32.totalorder %s152, 0
    %s155 = sadd.s32 %s154, 1
    %s156 = scalar_select %p153, %s154, %s155
    %p159 = pneg %p153
    %p160 = scmp.eq.s32.totalorder %s28, 3
    %p161 = por %p159, %p160
    %p162 = scmp.ne.s32.totalorder %s154, %s157
    %p163 = scmp.eq.s32.totalorder %s28, 0
    %p164 = por %p162, %p163
    %p165 = scmp.ne.s32.totalorder %s154, %s157
    %p166 = scmp.eq.s32.totalorder %s33, 3
    %p167 = por %p165, %p166
    %p168 = scmp.ne.s32.totalorder %s157, %s158
    %p169 = scmp.eq.s32.totalorder %s33, 0
    %p170 = por %p168, %p169
    %p171 = scmp.ne.s32.totalorder %s157, %s158
    %p172 = scmp.eq.s32.totalorder %s34, 3
    %p173 = por %p171, %p172
    %p175 = scmp.ne.s32.totalorder %s158, %s174
    %p176 = scmp.eq.s32.totalorder %s34, 0
    %p177 = por %p175, %p176
    %s178 = ssub.s32 %s35, %s47
    %p179 = scmp.eq.s32.totalorder %s178, 0
    %s181 = sadd.s32 %s180, 1
    %s182 = scalar_select %p179, %s180, %s181
    %p185 = pneg %p179
    %p186 = scmp.eq.s32.totalorder %s28, 3
    %p187 = por %p185, %p186
    %p188 = scmp.ne.s32.totalorder %s180, %s183
    %p189 = scmp.eq.s32.totalorder %s28, 0
    %p190 = por %p188, %p189
    %p191 = scmp.ne.s32.totalorder %s180, %s183
    %p192 = scmp.eq.s32.totalorder %s33, 3
    %p193 = por %p191, %p192
    %p194 = scmp.ne.s32.totalorder %s183, %s184
    %p195 = scmp.eq.s32.totalorder %s33, 0
    %p196 = por %p194, %p195
    %p197 = scmp.ne.s32.totalorder %s183, %s184
    %p198 = scmp.eq.s32.totalorder %s34, 3
    %p199 = por %p197, %p198
    %p201 = scmp.ne.s32.totalorder %s184, %s200
    %p202 = scmp.eq.s32.totalorder %s34, 0
    %p203 = por %p201, %p202
    %s204 = ssub.s32 %s35, %s47
    %p205 = scmp.eq.s32.totalorder %s204, 0
    %s207 = sadd.s32 %s206, 1
    %s208 = scalar_select %p205, %s206, %s207
    %p211 = pneg %p205
    %p212 = scmp.eq.s32.totalorder %s28, 3
    %p213 = por %p211, %p212
    %p214 = scmp.ne.s32.totalorder %s206, %s209
    %p215 = scmp.eq.s32.totalorder %s28, 0
    %p216 = por %p214, %p215
    %p217 = scmp.ne.s32.totalorder %s206, %s209
    %p218 = scmp.eq.s32.totalorder %s33, 3
    %p219 = por %p217, %p218
    %p220 = scmp.ne.s32.totalorder %s209, %s210
    %p221 = scmp.eq.s32.totalorder %s33, 0
    %p222 = por %p220, %p221
    %p223 = scmp.ne.s32.totalorder %s209, %s210
    %p224 = scmp.eq.s32.totalorder %s34, 3
    %p225 = por %p223, %p224
    %p227 = scmp.ne.s32.totalorder %s210, %s226
    %p228 = scmp.eq.s32.totalorder %s34, 0
    %p229 = por %p227, %p228
    %s230 = ssub.s32 %s35, %s47
    %p231 = scmp.eq.s32.totalorder %s230, 0
    %s233 = sadd.s32 %s232, 1
    %s234 = scalar_select %p231, %s232, %s233
    %p237 = pneg %p231
    %p238 = scmp.eq.s32.totalorder %s28, 3
    %p239 = por %p237, %p238
    %p240 = scmp.ne.s32.totalorder %s232, %s235
    %p241 = scmp.eq.s32.totalorder %s28, 0
    %p242 = por %p240, %p241
    %p243 = scmp.ne.s32.totalorder %s232, %s235
    %p244 = scmp.eq.s32.totalorder %s33, 3
    %p245 = por %p243, %p244
    %p246 = scmp.ne.s32.totalorder %s235, %s236
    %p247 = scmp.eq.s32.totalorder %s33, 0
    %p248 = por %p246, %p247
    %p249 = scmp.ne.s32.totalorder %s235, %s236
    %p250 = scmp.eq.s32.totalorder %s34, 3
    %p251 = por %p249, %p250
    %p253 = scmp.ne.s32.totalorder %s236, %s252
    %p254 = scmp.eq.s32.totalorder %s34, 0
    %p255 = por %p253, %p254
    %s256 = ssub.s32 %s35, %s47
    %p257 = scmp.eq.s32.totalorder %s256, 0
    %s259 = sadd.s32 %s258, 1
    %s260 = scalar_select %p257, %s258, %s259
    %p263 = pneg %p257
    %p264 = scmp.eq.s32.totalorder %s28, 3
    %p265 = por %p263, %p264
    %p266 = scmp.ne.s32.totalorder %s258, %s261
    %p267 = scmp.eq.s32.totalorder %s28, 0
    %p268 = por %p266, %p267
    %p269 = scmp.ne.s32.totalorder %s258, %s261
    %p270 = scmp.eq.s32.totalorder %s33, 3
    %p271 = por %p269, %p270
    %p272 = scmp.ne.s32.totalorder %s261, %s262
    %p273 = scmp.eq.s32.totalorder %s33, 0
    %p274 = por %p272, %p273
    %p275 = scmp.ne.s32.totalorder %s261, %s262
    %p276 = scmp.eq.s32.totalorder %s34, 3
    %p277 = por %p275, %p276
    %p279 = scmp.ne.s32.totalorder %s262, %s278
    %p280 = scmp.eq.s32.totalorder %s34, 0
    %p281 = por %p279, %p280
    %s282 = ssub.s32 %s35, %s47
    %p283 = scmp.eq.s32.totalorder %s282, 0
    %s285 = sadd.s32 %s284, 1
    %s286 = scalar_select %p283, %s284, %s285
    %p289 = pneg %p283
    %p290 = scmp.eq.s32.totalorder %s28, 3
    %p291 = por %p289, %p290
    %p292 = scmp.ne.s32.totalorder %s284, %s287
    %p293 = scmp.eq.s32.totalorder %s28, 0
    %p294 = por %p292, %p293
    %p295 = scmp.ne.s32.totalorder %s284, %s287
    %p296 = scmp.eq.s32.totalorder %s33, 3
    %p297 = por %p295, %p296
    %p298 = scmp.ne.s32.totalorder %s287, %s288
    %p299 = scmp.eq.s32.totalorder %s33, 0
    %p300 = por %p298, %p299
    %p301 = scmp.ne.s32.totalorder %s287, %s288
    %p302 = scmp.eq.s32.totalorder %s34, 3
    %p303 = por %p301, %p302
    %p305 = scmp.ne.s32.totalorder %s288, %s304
    %p306 = scmp.eq.s32.totalorder %s34, 0
    %p307 = por %p305, %p306
    %s308 = ssub.s32 %s35, %s47
    %p309 = scmp.eq.s32.totalorder %s308, 0
    %s311 = sadd.s32 %s310, 1
    %s312 = scalar_select %p309, %s310, %s311
    %p315 = pneg %p309
    %p316 = scmp.eq.s32.totalorder %s28, 3
    %p317 = por %p315, %p316
    %p318 = scmp.ne.s32.totalorder %s310, %s313
    %p319 = scmp.eq.s32.totalorder %s28, 0
    %p320 = por %p318, %p319
    %p321 = scmp.ne.s32.totalorder %s310, %s313
    %p322 = scmp.eq.s32.totalorder %s33, 3
    %p323 = por %p321, %p322
    %p324 = scmp.ne.s32.totalorder %s313, %s314
    %p325 = scmp.eq.s32.totalorder %s33, 0
    %p326 = por %p324, %p325
    %p327 = scmp.ne.s32.totalorder %s313, %s314
    %p328 = scmp.eq.s32.totalorder %s34, 3
    %p329 = por %p327, %p328
    %p331 = scmp.ne.s32.totalorder %s314, %s330
    %p332 = scmp.eq.s32.totalorder %s34, 0
    %p333 = por %p331, %p332
    %s334 = ssub.s32 %s35, %s47
    %p335 = scmp.eq.s32.totalorder %s334, 0
    %s337 = sadd.s32 %s336, 1
    %s338 = scalar_select %p335, %s336, %s337
    %p341 = pneg %p335
    %p342 = scmp.eq.s32.totalorder %s28, 3
    %p343 = por %p341, %p342
    %p344 = scmp.ne.s32.totalorder %s336, %s339
    %p345 = scmp.eq.s32.totalorder %s28, 0
    %p346 = por %p344, %p345
    %p347 = scmp.ne.s32.totalorder %s336, %s339
    %p348 = scmp.eq.s32.totalorder %s33, 3
    %p349 = por %p347, %p348
    %p350 = scmp.ne.s32.totalorder %s339, %s340
    %p351 = scmp.eq.s32.totalorder %s33, 0
    %p352 = por %p350, %p351
    %p353 = scmp.ne.s32.totalorder %s339, %s340
    %p354 = scmp.eq.s32.totalorder %s34, 3
    %p355 = por %p353, %p354
    %p357 = scmp.ne.s32.totalorder %s340, %s356
    %p358 = scmp.eq.s32.totalorder %s34, 0
    %p359 = por %p357, %p358
    %s360 = ssub.s32 %s35, %s47
    %p361 = scmp.eq.s32.totalorder %s360, 0
    %s363 = sadd.s32 %s362, 1
    %s364 = scalar_select %p361, %s362, %s363
    %p367 = pneg %p361
    %p368 = scmp.eq.s32.totalorder %s28, 3
    %p369 = por %p367, %p368
    %p370 = scmp.ne.s32.totalorder %s362, %s365
    %p371 = scmp.eq.s32.totalorder %s28, 0
    %p372 = por %p370, %p371
    %p373 = scmp.ne.s32.totalorder %s362, %s365
    %p374 = scmp.eq.s32.totalorder %s33, 3
    %p375 = por %p373, %p374
    %p376 = scmp.ne.s32.totalorder %s365, %s366
    %p377 = scmp.eq.s32.totalorder %s33, 0
    %p378 = por %p376, %p377
    %p379 = scmp.ne.s32.totalorder %s365, %s366
    %p380 = scmp.eq.s32.totalorder %s34, 3
    %p381 = por %p379, %p380
    %p383 = scmp.ne.s32.totalorder %s366, %s382
    %p384 = scmp.eq.s32.totalorder %s34, 0
    %p385 = por %p383, %p384
    %s386 = ssub.s32 %s35, %s47
    %p387 = scmp.eq.s32.totalorder %s386, 0
    %s389 = sadd.s32 %s388, 1
    %s390 = scalar_select %p387, %s388, %s389
    %p393 = pneg %p387
    %p394 = scmp.eq.s32.totalorder %s28, 3
    %p395 = por %p393, %p394
    %p396 = scmp.ne.s32.totalorder %s388, %s391
    %p397 = scmp.eq.s32.totalorder %s28, 0
    %p398 = por %p396, %p397
    %p399 = scmp.ne.s32.totalorder %s388, %s391
    %p400 = scmp.eq.s32.totalorder %s33, 3
    %p401 = por %p399, %p400
    %p402 = scmp.ne.s32.totalorder %s391, %s392
    %p403 = scmp.eq.s32.totalorder %s33, 0
    %p404 = por %p402, %p403
    %p405 = scmp.ne.s32.totalorder %s391, %s392
    %p406 = scmp.eq.s32.totalorder %s34, 3
    %p407 = por %p405, %p406
    %p409 = scmp.ne.s32.totalorder %s392, %s408
    %p410 = scmp.eq.s32.totalorder %s34, 0
    %p411 = por %p409, %p410
    %s412 = ssub.s32 %s35, %s47
    %p413 = scmp.eq.s32.totalorder %s412, 0
    %s415 = sadd.s32 %s414, 1
    %s416 = scalar_select %p413, %s414, %s415
    %p419 = pneg %p413
    %p420 = scmp.eq.s32.totalorder %s28, 3
    %p421 = por %p419, %p420
    %p422 = scmp.ne.s32.totalorder %s414, %s417
    %p423 = scmp.eq.s32.totalorder %s28, 0
    %p424 = por %p422, %p423
    %p425 = scmp.ne.s32.totalorder %s414, %s417
    %p426 = scmp.eq.s32.totalorder %s33, 3
    %p427 = por %p425, %p426
    %p428 = scmp.ne.s32.totalorder %s417, %s418
    %p429 = scmp.eq.s32.totalorder %s33, 0
    %p430 = por %p428, %p429
    %p431 = scmp.ne.s32.totalorder %s417, %s418
    %p432 = scmp.eq.s32.totalorder %s34, 3
    %p433 = por %p431, %p432
    %p435 = scmp.ne.s32.totalorder %s418, %s434
    %p436 = scmp.eq.s32.totalorder %s34, 0
    %p437 = por %p435, %p436
    %s438 = ssub.s32 %s35, %s47
    %p439 = scmp.eq.s32.totalorder %s438, 0
    %s441 = sadd.s32 %s440, 1
    %s442 = scalar_select %p439, %s440, %s441
    %p445 = pneg %p439
    %p446 = scmp.eq.s32.totalorder %s28, 3
    %p447 = por %p445, %p446
    %p448 = scmp.ne.s32.totalorder %s440, %s443
    %p449 = scmp.eq.s32.totalorder %s28, 0
    %p450 = por %p448, %p449
    %p451 = scmp.ne.s32.totalorder %s440, %s443
    %p452 = scmp.eq.s32.totalorder %s33, 3
    %p453 = por %p451, %p452
    %p454 = scmp.ne.s32.totalorder %s443, %s444
    %p455 = scmp.eq.s32.totalorder %s33, 0
    %p456 = por %p454, %p455
    %p457 = scmp.ne.s32.totalorder %s443, %s444
    %p458 = scmp.eq.s32.totalorder %s34, 3
    %p459 = por %p457, %p458
    %p461 = scmp.ne.s32.totalorder %s444, %s460
    %p462 = scmp.eq.s32.totalorder %s34, 0
    %p463 = por %p461, %p462
    %s464 = ssub.s32 %s35, %s47
    %p465 = scmp.eq.s32.totalorder %s464, 0
    %s467 = sadd.s32 %s466, 1
    %s468 = scalar_select %p465, %s466, %s467
    %p471 = pneg %p465
    %p472 = scmp.eq.s32.totalorder %s28, 3
    %p473 = por %p471, %p472
    %p474 = scmp.ne.s32.totalorder %s466, %s469
    %p475 = scmp.eq.s32.totalorder %s28, 0
    %p476 = por %p474, %p475
    %p477 = scmp.ne.s32.totalorder %s466, %s469
    %p478 = scmp.eq.s32.totalorder %s33, 3
    %p479 = por %p477, %p478
    %p480 = scmp.ne.s32.totalorder %s469, %s470
    %p481 = scmp.eq.s32.totalorder %s33, 0
    %p482 = por %p480, %p481
    %p483 = scmp.ne.s32.totalorder %s469, %s470
    %p484 = scmp.eq.s32.totalorder %s34, 3
    %p485 = por %p483, %p484
    %p487 = scmp.ne.s32.totalorder %s470, %s486
    %p488 = scmp.eq.s32.totalorder %s34, 0
    %p489 = por %p487, %p488
    %s490 = ssub.s32 %s35, %s47
    %p491 = scmp.eq.s32.totalorder %s490, 0
    %s493 = sadd.s32 %s492, 1
    %s494 = scalar_select %p491, %s492, %s493
    %p497 = pneg %p491
    %p498 = scmp.eq.s32.totalorder %s28, 3
    %p499 = por %p497, %p498
    %p500 = scmp.ne.s32.totalorder %s492, %s495
    %p501 = scmp.eq.s32.totalorder %s28, 0
    %p502 = por %p500, %p501
    %p503 = scmp.ne.s32.totalorder %s492, %s495
    %p504 = scmp.eq.s32.totalorder %s33, 3
    %p505 = por %p503, %p504
    %p506 = scmp.ne.s32.totalorder %s495, %s496
    %p507 = scmp.eq.s32.totalorder %s33, 0
    %p508 = por %p506, %p507
    %p509 = scmp.ne.s32.totalorder %s495, %s496
    %p510 = scmp.eq.s32.totalorder %s34, 3
    %p511 = por %p509, %p510
    %p513 = scmp.ne.s32.totalorder %s496, %s512
    %p514 = scmp.eq.s32.totalorder %s34, 0
    %p515 = por %p513, %p514
    %s516 = ssub.s32 %s35, %s47
    %p517 = scmp.eq.s32.totalorder %s516, 0
    %s519 = sadd.s32 %s518, 1
    %s520 = scalar_select %p517, %s518, %s519
    %p523 = pneg %p517
    %p524 = scmp.eq.s32.totalorder %s28, 3
    %p525 = por %p523, %p524
    %p526 = scmp.ne.s32.totalorder %s518, %s521
    %p527 = scmp.eq.s32.totalorder %s28, 0
    %p528 = por %p526, %p527
    %p529 = scmp.ne.s32.totalorder %s518, %s521
    %p530 = scmp.eq.s32.totalorder %s33, 3
    %p531 = por %p529, %p530
    %p532 = scmp.ne.s32.totalorder %s521, %s522
    %p533 = scmp.eq.s32.totalorder %s33, 0
    %p534 = por %p532, %p533
    %p535 = scmp.ne.s32.totalorder %s521, %s522
    %p536 = scmp.eq.s32.totalorder %s34, 3
    %p537 = por %p535, %p536
    %p539 = scmp.ne.s32.totalorder %s522, %s538
    %p540 = scmp.eq.s32.totalorder %s34, 0
    %p541 = por %p539, %p540
    %s542 = ssub.s32 %s35, %s47
    %p543 = scmp.eq.s32.totalorder %s542, 0
    %s545 = sadd.s32 %s544, 1
    %s546 = scalar_select %p543, %s544, %s545
    %p549 = pneg %p543
    %p550 = scmp.eq.s32.totalorder %s28, 3
    %p551 = por %p549, %p550
    %p552 = scmp.ne.s32.totalorder %s544, %s547
    %p553 = scmp.eq.s32.totalorder %s28, 0
    %p554 = por %p552, %p553
    %p555 = scmp.ne.s32.totalorder %s544, %s547
    %p556 = scmp.eq.s32.totalorder %s33, 3
    %p557 = por %p555, %p556
    %p558 = scmp.ne.s32.totalorder %s547, %s548
    %p559 = scmp.eq.s32.totalorder %s33, 0
    %p560 = por %p558, %p559
    %p561 = scmp.ne.s32.totalorder %s547, %s548
    %p562 = scmp.eq.s32.totalorder %s34, 3
    %p563 = por %p561, %p562
    %p565 = scmp.ne.s32.totalorder %s548, %s564
    %p566 = scmp.eq.s32.totalorder %s34, 0
    %p567 = por %p565, %p566
    %s569 = sadd.s32 %s568, 1
    %p572 = scmp.eq.s32.totalorder %s28, 3
    %p573 = scmp.ne.s32.totalorder %s568, %s570
    %p574 = scmp.eq.s32.totalorder %s28, 0
    %p575 = por %p573, %p574
    %p576 = scmp.ne.s32.totalorder %s568, %s570
    %p577 = scmp.eq.s32.totalorder %s33, 3
    %p578 = por %p576, %p577
    %p579 = scmp.ne.s32.totalorder %s570, %s571
    %p580 = scmp.eq.s32.totalorder %s33, 0
    %p581 = por %p579, %p580
    %p582 = scmp.ne.s32.totalorder %s570, %s571
    %p583 = scmp.eq.s32.totalorder %s34, 3
    %p584 = por %p582, %p583
    %p586 = scmp.ne.s32.totalorder %s571, %s585
    %p587 = scmp.eq.s32.totalorder %s34, 0
    %p588 = por %p586, %p587
    %s590 = sadd.s32 %s589, 1
    %p593 = scmp.eq.s32.totalorder %s28, 3
    %p594 = scmp.ne.s32.totalorder %s589, %s591
    %p595 = scmp.eq.s32.totalorder %s28, 0
    %p596 = por %p594, %p595
    %p597 = scmp.ne.s32.totalorder %s589, %s591
    %p598 = scmp.eq.s32.totalorder %s33, 3
    %p599 = por %p597, %p598
    %p600 = scmp.ne.s32.totalorder %s591, %s592
    %p601 = scmp.eq.s32.totalorder %s33, 0
    %p602 = por %p600, %p601
    %p603 = scmp.ne.s32.totalorder %s591, %s592
    %p604 = scmp.eq.s32.totalorder %s34, 3
    %p605 = por %p603, %p604
    %p607 = scmp.ne.s32.totalorder %s592, %s606
    %p608 = scmp.eq.s32.totalorder %s34, 0
    %p609 = por %p607, %p608
    %s611 = sadd.s32 %s610, 1
    %p614 = scmp.eq.s32.totalorder %s28, 3
    %p615 = scmp.ne.s32.totalorder %s610, %s612
    %p616 = scmp.eq.s32.totalorder %s28, 0
    %p617 = por %p615, %p616
    %p618 = scmp.ne.s32.totalorder %s610, %s612
    %p619 = scmp.eq.s32.totalorder %s33, 3
    %p620 = por %p618, %p619
    %p621 = scmp.ne.s32.totalorder %s612, %s613
    %p622 = scmp.eq.s32.totalorder %s33, 0
    %p623 = por %p621, %p622
    %p624 = scmp.ne.s32.totalorder %s612, %s613
    %p625 = scmp.eq.s32.totalorder %s34, 3
    %p626 = por %p624, %p625
    %p628 = scmp.ne.s32.totalorder %s613, %s627
    %p629 = scmp.eq.s32.totalorder %s34, 0
    %p630 = por %p628, %p629
    %p631 = scmp.le.s32.totalorder 1, %s28
    %p632 = scmp.lt.s32.totalorder %s28, 5
    %p633 = pnand %p631, %p632
    %p634 = pneg %p633
    // Predicated region
    $region9: #{decoder_forward.2} parent=5 // pred_check
      _
    $region10: #{decoder_forward.2} parent=5 // pred_check_branch
      %636 = sbr.rel (%p633) target = $region12
    $region11: #{decoder_forward.2} parent=5 // pred_region
      %s637 = ssub.s32 %s28, 1
      // Predicated region
      $region13: #{decoder_forward.2} parent=11 // pred_check
        %p638 = pneg %p581
      $region14: #{decoder_forward.2} parent=11 // pred_check_branch
        %640 = sbr.rel (%p638) target = $region16
      $region15: #{decoder_forward.2} parent=11 // pred_region
        _
      $region16: #{decoder_forward.2} parent=11 // pred_fallthru
        _
      // Predicated region
      $region17: #{decoder_forward.2} parent=11 // pred_check
        %p641 = pneg %p602
      $region18: #{decoder_forward.2} parent=11 // pred_check_branch
        %643 = sbr.rel (%p641) target = $region20
      $region19: #{decoder_forward.2} parent=11 // pred_region
        _
      $region20: #{decoder_forward.2} parent=11 // pred_fallthru
        _
    $region12: #{decoder_forward.2} parent=5 // pred_fallthru
      _
    %p644 = scmp.lt.s32.totalorder %s28, 4
    // Predicated region
    $region21: #{decoder_forward.2} parent=5 // pred_check
      %p645 = pneg %p644
    $region22: #{decoder_forward.2} parent=5 // pred_check_branch
      %647 = sbr.rel (%p645) target = $region24
    $region23: #{decoder_forward.2} parent=5 // pred_region
      // Predicated region
      $region25: #{decoder_forward.2} parent=23 // pred_check
        %p648 = pneg %p60
      $region26: #{decoder_forward.2} parent=23 // pred_check_branch
        %650 = sbr.rel (%p648) target = $region28
      $region27: #{decoder_forward.2} parent=23 // pred_region
        %p651 = scmp.lt.s32.totalorder %s36, 1
        %s652 = scalar_select %p651, %s36, 1
        %s653 = smul.addr %s652, 8
        %s654 = scalar_lea.vmem %s0, %s653
      $region28: #{decoder_forward.2} parent=23 // pred_fallthru
        _
      // Predicated region
      $region29: #{decoder_forward.2} parent=23 // pred_check
        %p655 = pneg %p86
      $region30: #{decoder_forward.2} parent=23 // pred_check_branch
        %657 = sbr.rel (%p655) target = $region32
      $region31: #{decoder_forward.2} parent=23 // pred_region
        %p658 = scmp.lt.s32.totalorder %s36, 1
        %s659 = scalar_select %p658, %s36, 1
        %s660 = smul.addr %s659, 2
        %s661 = smul.addr %s660, 8
        %s662 = scalar_lea.vmem %s1, %s661
      $region32: #{decoder_forward.2} parent=23 // pred_fallthru
        _
      // Predicated region
      $region33: #{decoder_forward.2} parent=23 // pred_check
        %p663 = pneg %p112
      $region34: #{decoder_forward.2} parent=23 // pred_check_branch
        %665 = sbr.rel (%p663) target = $region36
      $region35: #{decoder_forward.2} parent=23 // pred_region
        %p666 = scmp.lt.s32.totalorder %s36, 1
        %s667 = scalar_select %p666, %s36, 1
        %s668 = scalar_lea.vmem %s2, %s667
      $region36: #{decoder_forward.2} parent=23 // pred_fallthru
        _
      // Predicated region
      $region37: #{decoder_forward.2} parent=23 // pred_check
        %p669 = pneg %p138
      $region38: #{decoder_forward.2} parent=23 // pred_check_branch
        %671 = sbr.rel (%p669) target = $region40
      $region39: #{decoder_forward.2} parent=23 // pred_region
        %p672 = scmp.lt.s32.totalorder %s36, 1
        %s673 = scalar_select %p672, %s36, 1
        %s674 = scalar_lea.vmem %s3, %s673
      $region40: #{decoder_forward.2} parent=23 // pred_fallthru
        _
      // Predicated region
      $region41: #{decoder_forward.2} parent=23 // pred_check
        %p675 = pneg %p164
      $region42: #{decoder_forward.2} parent=23 // pred_check_branch
        %677 = sbr.rel (%p675) target = $region44
      $region43: #{decoder_forward.2} parent=23 // pred_region
        %p678 = scmp.lt.s32.totalorder %s35, 1
        %s679 = scalar_select %p678, %s35, 1
        %s680 = smul.addr %s679, 3
        %s681 = scalar_lea.vmem %s4, %s680
      $region44: #{decoder_forward.2} parent=23 // pred_fallthru
        _
      // Predicated region
      $region45: #{decoder_forward.2} parent=23 // pred_check
        %p682 = pneg %p190
      $region46: #{decoder_forward.2} parent=23 // pred_check_branch
        %684 = sbr.rel (%p682) target = $region48
      $region47: #{decoder_forward.2} parent=23 // pred_region
        %p685 = scmp.lt.s32.totalorder %s35, 1
        %s686 = scalar_select %p685, %s35, 1
        %s687 = smul.addr %s686, 3
        %s688 = scalar_lea.vmem %s5, %s687
      $region48: #{decoder_forward.2} parent=23 // pred_fallthru
        _
      // Predicated region
      $region49: #{decoder_forward.2} parent=23 // pred_check
        %p689 = pneg %p216
      $region50: #{decoder_forward.2} parent=23 // pred_check_branch
        %691 = sbr.rel (%p689) target = $region52
      $region51: #{decoder_forward.2} parent=23 // pred_region
        %p692 = scmp.lt.s32.totalorder %s35, 1
        %s693 = scalar_select %p692, %s35, 1
        %s694 = smul.addr %s693, 4
        %s695 = smul.addr %s694, 8
        %s696 = scalar_lea.vmem %s6, %s695
      $region52: #{decoder_forward.2} parent=23 // pred_fallthru
        _
      // Predicated region
      $region53: #{decoder_forward.2} parent=23 // pred_check
        %p697 = pneg %p242
      $region54: #{decoder_forward.2} parent=23 // pred_check_branch
        %699 = sbr.rel (%p697) target = $region56
      $region55: #{decoder_forward.2} parent=23 // pred_region
        %p700 = scmp.lt.s32.totalorder %s35, 1
        %s701 = scalar_select %p700, %s35, 1
        %s702 = scalar_lea.vmem %s7, %s701
      $region56: #{decoder_forward.2} parent=23 // pred_fallthru
        _
      // Predicated region
      $region57: #{decoder_forward.2} parent=23 // pred_check
        %p703 = pneg %p268
      $region58: #{decoder_forward.2} parent=23 // pred_check_branch
        %705 = sbr.rel (%p703) target = $region60
      $region59: #{decoder_forward.2} parent=23 // pred_region
        %p706 = scmp.lt.s32.totalorder %s35, 1
        %s707 = scalar_select %p706, %s35, 1
        %s708 = smul.addr %s707, 4
        %s709 = smul.addr %s708, 8
        %s710 = scalar_lea.vmem %s8, %s709
      $region60: #{decoder_forward.2} parent=23 // pred_fallthru
        _
      // Predicated region
      $region61: #{decoder_forward.2} parent=23 // pred_check
        %p711 = pneg %p294
      $region62: #{decoder_forward.2} parent=23 // pred_check_branch
        %713 = sbr.rel (%p711) target = $region64
      $region63: #{decoder_forward.2} parent=23 // pred_region
        %p714 = scmp.lt.s32.totalorder %s35, 1
        %s715 = scalar_select %p714, %s35, 1
        %s716 = scalar_lea.vmem %s9, %s715
      $region64: #{decoder_forward.2} parent=23 // pred_fallthru
        _
      // Predicated region
      $region65: #{decoder_forward.2} parent=23 // pred_check
        %p717 = pneg %p320
      $region66: #{decoder_forward.2} parent=23 // pred_check_branch
        %719 = sbr.rel (%p717) target = $region68
      $region67: #{decoder_forward.2} parent=23 // pred_region
        %p720 = scmp.lt.s32.totalorder %s35, 1
        %s721 = scalar_select %p720, %s35, 1
        %s722 = smul.addr %s721, 4
        %s723 = smul.addr %s722, 8
        %s724 = scalar_lea.vmem %s10, %s723
      $region68: #{decoder_forward.2} parent=23 // pred_fallthru
        _
      // Predicated region
      $region69: #{decoder_forward.2} parent=23 // pred_check
        %p725 = pneg %p346
      $region70: #{decoder_forward.2} parent=23 // pred_check_branch
        %727 = sbr.rel (%p725) target = $region72
      $region71: #{decoder_forward.2} parent=23 // pred_region
        %p728 = scmp.lt.s32.totalorder %s35, 1
        %s729 = scalar_select %p728, %s35, 1
        %s730 = scalar_lea.vmem %s11, %s729
      $region72: #{decoder_forward.2} parent=23 // pred_fallthru
        _
      // Predicated region
      $region73: #{decoder_forward.2} parent=23 // pred_check
        %p731 = pneg %p372
      $region74: #{decoder_forward.2} parent=23 // pred_check_branch
        %733 = sbr.rel (%p731) target = $region76
      $region75: #{decoder_forward.2} parent=23 // pred_region
        %p734 = scmp.lt.s32.totalorder %s35, 1
        %s735 = scalar_select %p734, %s35, 1
        %s736 = smul.addr %s735, 4
        %s737 = smul.addr %s736, 8
        %s738 = scalar_lea.vmem %s12, %s737
      $region76: #{decoder_forward.2} parent=23 // pred_fallthru
        _
      // Predicated region
      $region77: #{decoder_forward.2} parent=23 // pred_check
        %p739 = pneg %p398
      $region78: #{decoder_forward.2} parent=23 // pred_check_branch
        %741 = sbr.rel (%p739) target = $region80
      $region79: #{decoder_forward.2} parent=23 // pred_region
        %p742 = scmp.lt.s32.totalorder %s35, 1
        %s743 = scalar_select %p742, %s35, 1
        %s744 = scalar_lea.vmem %s13, %s743
      $region80: #{decoder_forward.2} parent=23 // pred_fallthru
        _
      // Predicated region
      $region81: #{decoder_forward.2} parent=23 // pred_check
        %p745 = pneg %p424
      $region82: #{decoder_forward.2} parent=23 // pred_check_branch
        %747 = sbr.rel (%p745) target = $region84
      $region83: #{decoder_forward.2} parent=23 // pred_region
        %p748 = scmp.lt.s32.totalorder %s35, 1
        %s749 = scalar_select %p748, %s35, 1
        %s750 = smul.addr %s749, 4
        %s751 = smul.addr %s750, 8
        %s752 = scalar_lea.vmem %s14, %s751
      $region84: #{decoder_forward.2} parent=23 // pred_fallthru
        _
      // Predicated region
      $region85: #{decoder_forward.2} parent=23 // pred_check
        %p753 = pneg %p450
      $region86: #{decoder_forward.2} parent=23 // pred_check_branch
        %755 = sbr.rel (%p753) target = $region88
      $region87: #{decoder_forward.2} parent=23 // pred_region
        %p756 = scmp.lt.s32.totalorder %s35, 1
        %s757 = scalar_select %p756, %s35, 1
        %s758 = scalar_lea.vmem %s15, %s757
      $region88: #{decoder_forward.2} parent=23 // pred_fallthru
        _
      // Predicated region
      $region89: #{decoder_forward.2} parent=23 // pred_check
        %p759 = pneg %p476
      $region90: #{decoder_forward.2} parent=23 // pred_check_branch
        %761 = sbr.rel (%p759) target = $region92
      $region91: #{decoder_forward.2} parent=23 // pred_region
        %p762 = scmp.lt.s32.totalorder %s35, 1
        %s763 = scalar_select %p762, %s35, 1
        %s764 = smul.addr %s763, 4
        %s765 = smul.addr %s764, 8
        %s766 = scalar_lea.vmem %s16, %s765
      $region92: #{decoder_forward.2} parent=23 // pred_fallthru
        _
      // Predicated region
      $region93: #{decoder_forward.2} parent=23 // pred_check
        %p767 = pneg %p502
      $region94: #{decoder_forward.2} parent=23 // pred_check_branch
        %769 = sbr.rel (%p767) target = $region96
      $region95: #{decoder_forward.2} parent=23 // pred_region
        %p770 = scmp.lt.s32.totalorder %s35, 1
        %s771 = scalar_select %p770, %s35, 1
        %s772 = scalar_lea.vmem %s17, %s771
      $region96: #{decoder_forward.2} parent=23 // pred_fallthru
        _
      // Predicated region
      $region97: #{decoder_forward.2} parent=23 // pred_check
        %p773 = pneg %p528
      $region98: #{decoder_forward.2} parent=23 // pred_check_branch
        %775 = sbr.rel (%p773) target = $region100
      $region99: #{decoder_forward.2} parent=23 // pred_region
        %p776 = scmp.lt.s32.totalorder %s35, 1
        %s777 = scalar_select %p776, %s35, 1
        %s778 = smul.addr %s777, 16
        %s779 = smul.addr %s778, 8
        %s780 = scalar_lea.vmem %s18, %s779
      $region100: #{decoder_forward.2} parent=23 // pred_fallthru
        _
      // Predicated region
      $region101: #{decoder_forward.2} parent=23 // pred_check
        %p781 = pneg %p554
      $region102: #{decoder_forward.2} parent=23 // pred_check_branch
        %783 = sbr.rel (%p781) target = $region104
      $region103: #{decoder_forward.2} parent=23 // pred_region
        %p784 = scmp.lt.s32.totalorder %s35, 1
        %s785 = scalar_select %p784, %s35, 1
        %s786 = scalar_lea.vmem %s19, %s785
      $region104: #{decoder_forward.2} parent=23 // pred_fallthru
        _
    $region24: #{decoder_forward.2} parent=5 // pred_fallthru
      _
    %p787 = scmp.le.s32.totalorder 1, %s28
    %p788 = scmp.lt.s32.totalorder %s28, 5
    %p789 = pnand %p787, %p788
    %p790 = pneg %p789
    // Predicated region
    $region105: #{decoder_forward.2} parent=5 // pred_check
      _
    $region106: #{decoder_forward.2} parent=5 // pred_check_branch
      %792 = sbr.rel (%p789) target = $region108
    $region107: #{decoder_forward.2} parent=5 // pred_region
      %s793 = ssub.s32 %s28, 1
      %p794 = scmp.lt.s32.totalorder %s38, 1
      %s795 = scalar_select %p794, %s38, 1
      %s796 = smul.addr %s795, 8
      %s797 = scalar_lea.vmem %s0, %s796
      %p798 = pneg %p66
      %p799 = pneg %p63
      %p800 = scmp.lt.s32.totalorder %s38, 1
      %s801 = scalar_select %p800, %s38, 1
      %s802 = smul.addr %s801, 2
      %s803 = smul.addr %s802, 8
      %s804 = scalar_lea.vmem %s1, %s803
      %p805 = pneg %p92
      %p806 = pneg %p89
      %p807 = scmp.lt.s32.totalorder %s38, 1
      %s808 = scalar_select %p807, %s38, 1
      %s809 = scalar_lea.vmem %s2, %s808
      %p810 = pneg %p118
      %p811 = pneg %p115
      %p812 = scmp.lt.s32.totalorder %s38, 1
      %s813 = scalar_select %p812, %s38, 1
      %s814 = scalar_lea.vmem %s3, %s813
      %p815 = pneg %p144
      %p816 = pneg %p141
      %p817 = scmp.lt.s32.totalorder %s37, 1
      %s818 = scalar_select %p817, %s37, 1
      %s819 = smul.addr %s818, 3
      %s820 = scalar_lea.vmem %s4, %s819
      %p821 = pneg %p170
      %p822 = pneg %p167
      %p823 = scmp.lt.s32.totalorder %s37, 1
      %s824 = scalar_select %p823, %s37, 1
      %s825 = smul.addr %s824, 3
      %s826 = scalar_lea.vmem %s5, %s825
      %p827 = pneg %p196
      %p828 = pneg %p193
      %p829 = scmp.lt.s32.totalorder %s37, 1
      %s830 = scalar_select %p829, %s37, 1
      %s831 = smul.addr %s830, 4
      %s832 = smul.addr %s831, 8
      %s833 = scalar_lea.vmem %s6, %s832
      %p834 = pneg %p222
      %p835 = pneg %p219
      %p836 = scmp.lt.s32.totalorder %s37, 1
      %s837 = scalar_select %p836, %s37, 1
      %s838 = scalar_lea.vmem %s7, %s837
      %p839 = pneg %p248
      %p840 = pneg %p245
      %p841 = scmp.lt.s32.totalorder %s37, 1
      %s842 = scalar_select %p841, %s37, 1
      %s843 = smul.addr %s842, 4
      %s844 = smul.addr %s843, 8
      %s845 = scalar_lea.vmem %s8, %s844
      %p846 = pneg %p274
      %p847 = pneg %p271
      %p848 = scmp.lt.s32.totalorder %s37, 1
      %s849 = scalar_select %p848, %s37, 1
      %s850 = scalar_lea.vmem %s9, %s849
      %p851 = pneg %p300
      %p852 = pneg %p297
      %p853 = scmp.lt.s32.totalorder %s37, 1
      %s854 = scalar_select %p853, %s37, 1
      %s855 = smul.addr %s854, 4
      %s856 = smul.addr %s855, 8
      %s857 = scalar_lea.vmem %s10, %s856
      %p858 = pneg %p326
      %p859 = pneg %p323
      %p860 = scmp.lt.s32.totalorder %s37, 1
      %s861 = scalar_select %p860, %s37, 1
      %s862 = scalar_lea.vmem %s11, %s861
      %p863 = pneg %p352
      %p864 = pneg %p349
      %p865 = scmp.lt.s32.totalorder %s37, 1
      %s866 = scalar_select %p865, %s37, 1
      %s867 = smul.addr %s866, 4
      %s868 = smul.addr %s867, 8
      %s869 = scalar_lea.vmem %s12, %s868
      %p870 = pneg %p378
      %p871 = pneg %p375
      %p872 = scmp.lt.s32.totalorder %s37, 1
      %s873 = scalar_select %p872, %s37, 1
      %s874 = scalar_lea.vmem %s13, %s873
      %p875 = pneg %p404
      %p876 = pneg %p401
      %p877 = scmp.lt.s32.totalorder %s37, 1
      %s878 = scalar_select %p877, %s37, 1
      %s879 = smul.addr %s878, 4
      %s880 = smul.addr %s879, 8
      %s881 = scalar_lea.vmem %s14, %s880
      %p882 = pneg %p430
      %p883 = pneg %p427
      %p884 = scmp.lt.s32.totalorder %s37, 1
      %s885 = scalar_select %p884, %s37, 1
      %s886 = scalar_lea.vmem %s15, %s885
      %p887 = pneg %p456
      %p888 = pneg %p453
      %p889 = scmp.lt.s32.totalorder %s37, 1
      %s890 = scalar_select %p889, %s37, 1
      %s891 = smul.addr %s890, 4
      %s892 = smul.addr %s891, 8
      %s893 = scalar_lea.vmem %s16, %s892
      %p894 = pneg %p482
      %p895 = pneg %p479
      %p896 = scmp.lt.s32.totalorder %s37, 1
      %s897 = scalar_select %p896, %s37, 1
      %s898 = scalar_lea.vmem %s17, %s897
      %p899 = pneg %p508
      %p900 = pneg %p505
      %p901 = scmp.lt.s32.totalorder %s37, 1
      %s902 = scalar_select %p901, %s37, 1
      %s903 = smul.addr %s902, 16
      %s904 = smul.addr %s903, 8
      %s905 = scalar_lea.vmem %s18, %s904
      %p906 = pneg %p534
      %p907 = pneg %p531
      %p908 = scmp.lt.s32.totalorder %s37, 1
      %s909 = scalar_select %p908, %s37, 1
      %s910 = scalar_lea.vmem %s19, %s909
      %p911 = pneg %p560
      %p912 = pneg %p557
      %p913 = pneg %p581
      %p914 = pneg %p578
      %p915 = pneg %p602
      %p916 = pneg %p599
      %p917 = pneg %p623
      %p918 = pneg %p620
      %p919 = scmp.lt.s32.totalorder %s38, 1
      %s920 = scalar_select %p919, %s38, 1
      %s921 = smul.addr %s920, 8
      %s922 = scalar_lea.vmem %s0, %s921
      %p923 = scmp.lt.s32.totalorder %s38, 1
      %s924 = scalar_select %p923, %s38, 1
      %s925 = smul.addr %s924, 2
      %s926 = smul.addr %s925, 8
      %s927 = scalar_lea.vmem %s1, %s926
      %p928 = scmp.lt.s32.totalorder %s38, 1
      %s929 = scalar_select %p928, %s38, 1
      %s930 = scalar_lea.vmem %s2, %s929
      %p931 = scmp.lt.s32.totalorder %s38, 1
      %s932 = scalar_select %p931, %s38, 1
      %s933 = scalar_lea.vmem %s3, %s932
      %p934 = scmp.lt.s32.totalorder %s37, 1
      %s935 = scalar_select %p934, %s37, 1
      %s936 = smul.addr %s935, 3
      %s937 = scalar_lea.vmem %s4, %s936
      %p938 = scmp.lt.s32.totalorder %s37, 1
      %s939 = scalar_select %p938, %s37, 1
      %s940 = smul.addr %s939, 3
      %s941 = scalar_lea.vmem %s5, %s940
      %p942 = scmp.lt.s32.totalorder %s37, 1
      %s943 = scalar_select %p942, %s37, 1
      %s944 = smul.addr %s943, 4
      %s945 = smul.addr %s944, 8
      %s946 = scalar_lea.vmem %s6, %s945
      %p947 = scmp.lt.s32.totalorder %s37, 1
      %s948 = scalar_select %p947, %s37, 1
      %s949 = scalar_lea.vmem %s7, %s948
      %p950 = scmp.lt.s32.totalorder %s37, 1
      %s951 = scalar_select %p950, %s37, 1
      %s952 = smul.addr %s951, 4
      %s953 = smul.addr %s952, 8
      %s954 = scalar_lea.vmem %s8, %s953
      %p955 = scmp.lt.s32.totalorder %s37, 1
      %s956 = scalar_select %p955, %s37, 1
      %s957 = scalar_lea.vmem %s9, %s956
      %p958 = scmp.lt.s32.totalorder %s37, 1
      %s959 = scalar_select %p958, %s37, 1
      %s960 = smul.addr %s959, 4
      %s961 = smul.addr %s960, 8
      %s962 = scalar_lea.vmem %s10, %s961
      %p963 = scmp.lt.s32.totalorder %s37, 1
      %s964 = scalar_select %p963, %s37, 1
      %s965 = scalar_lea.vmem %s11, %s964
      %p966 = scmp.lt.s32.totalorder %s37, 1
      %s967 = scalar_select %p966, %s37, 1
      %s968 = smul.addr %s967, 4
      %s969 = smul.addr %s968, 8
      %s970 = scalar_lea.vmem %s12, %s969
      %p971 = scmp.lt.s32.totalorder %s37, 1
      %s972 = scalar_select %p971, %s37, 1
      %s973 = scalar_lea.vmem %s13, %s972
      %p974 = scmp.lt.s32.totalorder %s37, 1
      %s975 = scalar_select %p974, %s37, 1
      %s976 = smul.addr %s975, 4
      %s977 = smul.addr %s976, 8
      %s978 = scalar_lea.vmem %s14, %s977
      %p979 = scmp.lt.s32.totalorder %s37, 1
      %s980 = scalar_select %p979, %s37, 1
      %s981 = scalar_lea.vmem %s15, %s980
      %p982 = scmp.lt.s32.totalorder %s37, 1
      %s983 = scalar_select %p982, %s37, 1
      %s984 = smul.addr %s983, 4
      %s985 = smul.addr %s984, 8
      %s986 = scalar_lea.vmem %s16, %s985
      %p987 = scmp.lt.s32.totalorder %s37, 1
      %s988 = scalar_select %p987, %s37, 1
      %s989 = scalar_lea.vmem %s17, %s988
      %p990 = scmp.lt.s32.totalorder %s37, 1
      %s991 = scalar_select %p990, %s37, 1
      %s992 = smul.addr %s991, 16
      %s993 = smul.addr %s992, 8
      %s994 = scalar_lea.vmem %s18, %s993
      %p995 = scmp.lt.s32.totalorder %s37, 1
      %s996 = scalar_select %p995, %s37, 1
      %s997 = scalar_lea.vmem %s19, %s996
      %p998 = scmp.eq.s32.totalorder %s37, 0
      // Predicated region
      $region109: #{decoder_forward.2} parent=107 // pred_check
        %p999 = pneg %p998
      $region110: #{decoder_forward.2} parent=107 // pred_check_branch
        %1001 = sbr.rel (%p999) target = $region112
      $region111: #{decoder_forward.2} parent=107 // pred_region
        %v1002 = vld [vmem:[%s922] sm:$0xff]
        %s1003 = smul.u32 %s38, 8
        %s1004 = scalar_lea.vmem %s22, %s1003
        %vm1005 = vcmask 261120
        %1006 = vst.msk [vmem:[%s1004] sm:$0xff] %vm1005, %v1002
        %v1007 = vlaneseq
        %v1008 = vshrl.u32 %v1007, 7
        %v1009 = vlaneseq
        %v1010 = vand.u32 %v1009, 127
        %vm1011 = vcmp.gt.s32.totalorder %v1010, %v1008
        %v1012 = vsel %vm1011, -1e+09, 0.0
        %vm1013 = vcmask 64512
        %1014 = vst.msk [vmem:[#allocation2] sm:$0xff] %vm1013, %v1012
      $region112: #{decoder_forward.2} parent=107 // pred_fallthru
        _
      %s1015 = smul.u32 %s38, 8
      %s1016 = scalar_lea.vmem %s22, %s1015
      %v1017 = vld [vmem:[%s1016] sm:$0xff]
      %v1018 = vld [vmem:[%s927] sm:$0xff]
      %v1019 = vld [vmem:[%s927 + $0x8] sm:$0x3]
      %v1020 = vld [vmem:[#allocation2] sm:$0xff]
      %v1021 = vld [vmem:[%s930] sm:$0x1]
      %v1023 = vlaneseq
      %v1024 = vshrl.u32 %v1023, 7
      %v1025 = vsub.s32 0, %v1024
      %v1026 = vrot.slane %v1021, %v1025
      %v1028 = vadd.f32 %v1020, %v1026
      %v1029 = vld [vmem:[%s933] sm:$0x1]
      %v1030 = vld [vmem:[%s937] sm:$0x1]
      %v1031 = vld [vmem:[%s941] sm:$0x1]
      %vm1032 = vcmask 261120
      %v1033 = vsel %vm1032, %v1017, 0.0
      %1034 = vadd.xlane.f32.xlu0 %v1033
      %v1035 = vpop.xlane.xlu0 %1034
      %v1036 = vrcp.pop 32.0
      %v1037 = vmul.f32 %v1035, %v1036
      %v1038 = vsub.f32 %v1017, %v1037
      %v1039 = vmul.f32 %v1038, %v1038
      %v1040 = vsel %vm1032, %v1039, 0.0
      %1041 = vadd.xlane.f32.xlu0 %v1040
      %v1042 = vpop.xlane.xlu0 %1041
      %v1043 = vmul.f32 %v1042, %v1036
      %v1044 = vadd.f32 %v1043, 1e-05
      %v1045 = vrsqrt.pop %v1044
      %v1046 = vmul.f32 %v1038, %v1045
      %v1048 = vlaneseq
      %v1049 = vshrl.u32 %v1048, 7
      %v1050 = vsub.s32 0, %v1049
      %v1051 = vrot.slane %v1030, %v1050
      %v1053 = vmul.f32 %v1046, %v1051
      %v1055 = vlaneseq
      %v1056 = vshrl.u32 %v1055, 7
      %v1057 = vsub.s32 0, %v1056
      %v1058 = vrot.slane %v1031, %v1057
      %v1060 = vadd.f32 %v1053, %v1058
      %v1061 = vld [vmem:[%s946] sm:$0xff]
      %v1062 = vld [vmem:[%s946 + $0x8] sm:$0xff]
      %v1063 = vld [vmem:[%s946 + $0x10] sm:$0xff]
      %v1064 = vld [vmem:[%s946 + $0x18] sm:$0xff]
      %v1065 = vld [vmem:[%s949] sm:$0x1]
      %v1067 = vlaneseq
      %v1068 = vshrl.u32 %v1067, 7
      %v1069 = vsub.s32 0, %v1068
      %v1070 = vrot.slane %v1065, %v1069
      %v1073 = vsel %vm1032, %v1060, 0
      %1075 = vmatprep.subr.mxu0 0.0
      %1076 = vmatpush1.msra.mxu0 %v1061
      %1077 = vmatprep.subr.mxu0 0.0
      %1078 = vmatpush1.msra.mxu0 %v1062
      %1079 = vmatprep.subr.mxu0 0.0
      %1080 = vmatpush1.msra.mxu0 %v1063
      %1081 = vmatprep.subr.mxu0 0.0
      %1082 = vmatpush1.msra.mxu0 %v1064
      %1083 = vmatprep.subr.mxu0 0.0
      %1084 = vmatpush1.msra.mxu0 0.0
      %1085 = vmatprep.subr.mxu0 0.0
      %1086 = vmatpush1.msra.mxu0 0.0
      %1087 = vmatprep.subr.mxu0 0.0
      %1088 = vmatpush1.msra.mxu0 0.0
      %1089 = vmatprep.subr.mxu0 0.0
      %1090 = vmatpush1.msra.mxu0 0.0
      %1091 = vmatprep.subr.mxu0 0.0
      %1092 = vmatpush1.msra.mxu0 0.0
      %1093 = vmatprep.subr.mxu0 0.0
      %1094 = vmatpush1.msra.mxu0 0.0
      %1095 = vmatprep.subr.mxu0 0.0
      %1096 = vmatpush1.msra.mxu0 0.0
      %1097 = vmatprep.subr.mxu0 0.0
      %1098 = vmatpush1.msra.mxu0 0.0
      %1099 = vmatprep.subr.mxu0 0.0
      %1100 = vmatpush1.msra.mxu0 0.0
      %1101 = vmatprep.subr.mxu0 0.0
      %1102 = vmatpush1.msra.mxu0 0.0
      %1103 = vmatprep.subr.mxu0 0.0
      %1104 = vmatpush1.msra.mxu0 0.0
      %1105 = vmatprep.subr.mxu0 0.0
      %1106 = vmatpush1.msra.mxu0 0.0
      %1107 = vmatprep.subr.mxu0 0.0
      %1108 = vmatpush1.msra.mxu0 0.0
      %1109 = vmatprep.subr.mxu0 0.0
      %1110 = vmatpush1.msra.mxu0 0.0
      %1111 = vmatprep.subr.mxu0 0.0
      %1112 = vmatpush1.msra.mxu0 0.0
      %1113 = vmatprep.subr.mxu0 0.0
      %1114 = vmatpush1.msra.mxu0 0.0
      %1115 = vmatprep.subr.mxu0 0.0
      %1116 = vmatpush1.msra.mxu0 0.0
      %1117 = vmatprep.subr.mxu0 0.0
      %1118 = vmatpush1.msra.mxu0 0.0
      %1119 = vmatprep.subr.mxu0 0.0
      %1120 = vmatpush1.msra.mxu0 0.0
      %1121 = vmatprep.subr.mxu0 0.0
      %1122 = vmatpush1.msra.mxu0 0.0
      %1123 = vmatprep.subr.mxu0 0.0
      %1124 = vmatpush1.msra.mxu0 0.0
      %1125 = vmatprep.subr.mxu0 0.0
      %1126 = vmatpush1.msra.mxu0 0.0
      %1127 = vmatprep.subr.mxu0 0.0
      %1128 = vmatpush1.msra.mxu0 0.0
      %1129 = vmatprep.subr.mxu0 0.0
      %1130 = vmatpush1.msra.mxu0 0.0
      %1131 = vmatprep.subr.mxu0 0.0
      %1132 = vmatpush1.msra.mxu0 0.0
      %1133 = vmatprep.subr.mxu0 0.0
      %1134 = vmatpush1.msra.mxu0 0.0
      %1135 = vmatprep.subr.mxu0 0.0
      %1136 = vmatpush1.msra.mxu0 0.0
      %1137 = vmatprep.subr.mxu0 0.0
      %1138 = vmatpush1.msra.mxu0 0.0
      %1139 = vmatprep.mubr.f32.mxu0 0.0
      %1140 = vmatmul.mubr.f32.gmra.mrb[0].mxu0 %v1073
      %v1141 = vpop.f32.mrb[0].mxu0
      %v1142 = vadd.f32 %v1070, %v1141
      %v1143 = vpop.f32.mrb[0].mxu0
      %1144 = vdwg.mxu0
      %v1145 = vld [vmem:[%s954] sm:$0xff]
      %v1146 = vld [vmem:[%s954 + $0x8] sm:$0xff]
      %v1147 = vld [vmem:[%s954 + $0x10] sm:$0xff]
      %v1148 = vld [vmem:[%s954 + $0x18] sm:$0xff]
      %v1149 = vld [vmem:[%s957] sm:$0x1]
      %1151 = vrot.lane.b32.xlu0 %v1142, 96
      %v1152 = vpop.permute.xlu0 %1151
      %vm1153 = vcmask 64512
      %v1154 = vsel %vm1153, %v1142, 0
      %v1156 = vsel %vm1153, %v1152, 0
      %1158 = vmatprep.subr.mxu0 0.0
      %1159 = vmatpush1.xpose.msra.mxu0 %v1156
      %1160 = vmatprep.subr.mxu0 0.0
      %1161 = vmatpush1.xpose.msra.mxu0 0.0
      %1162 = vmatprep.subr.mxu0 0.0
      %1163 = vmatpush1.xpose.msra.mxu0 0.0
      %1164 = vmatprep.subr.mxu0 0.0
      %1165 = vmatpush1.xpose.msra.mxu0 0.0
      %1166 = vmatprep.subr.mxu0 0.0
      %1167 = vmatpush1.xpose.msra.mxu0 0.0
      %1168 = vmatprep.subr.mxu0 0.0
      %1169 = vmatpush1.xpose.msra.mxu0 0.0
      %1170 = vmatprep.subr.mxu0 0.0
      %1171 = vmatpush1.xpose.msra.mxu0 0.0
      %1172 = vmatprep.subr.mxu0 0.0
      %1173 = vmatpush1.xpose.msra.mxu0 0.0
      %1174 = vmatprep.subr.mxu0 0.0
      %1175 = vmatpush1.xpose.msra.mxu0 0.0
      %1176 = vmatprep.subr.mxu0 0.0
      %1177 = vmatpush1.xpose.msra.mxu0 0.0
      %1178 = vmatprep.subr.mxu0 0.0
      %1179 = vmatpush1.xpose.msra.mxu0 0.0
      %1180 = vmatprep.subr.mxu0 0.0
      %1181 = vmatpush1.xpose.msra.mxu0 0.0
      %1182 = vmatprep.subr.mxu0 0.0
      %1183 = vmatpush1.xpose.msra.mxu0 0.0
      %1184 = vmatprep.subr.mxu0 0.0
      %1185 = vmatpush1.xpose.msra.mxu0 0.0
      %1186 = vmatprep.subr.mxu0 0.0
      %1187 = vmatpush1.xpose.msra.mxu0 0.0
      %1188 = vmatprep.subr.mxu0 0.0
      %1189 = vmatpush1.xpose.msra.mxu0 0.0
      %1190 = vmatprep.subr.mxu0 0.0
      %1191 = vmatpush1.xpose.msra.mxu0 0.0
      %1192 = vmatprep.subr.mxu0 0.0
      %1193 = vmatpush1.xpose.msra.mxu0 0.0
      %1194 = vmatprep.subr.mxu0 0.0
      %1195 = vmatpush1.xpose.msra.mxu0 0.0
      %1196 = vmatprep.subr.mxu0 0.0
      %1197 = vmatpush1.xpose.msra.mxu0 0.0
      %1198 = vmatprep.subr.mxu0 0.0
      %1199 = vmatpush1.xpose.msra.mxu0 0.0
      %1200 = vmatprep.subr.mxu0 0.0
      %1201 = vmatpush1.xpose.msra.mxu0 0.0
      %1202 = vmatprep.subr.mxu0 0.0
      %1203 = vmatpush1.xpose.msra.mxu0 0.0
      %1204 = vmatprep.subr.mxu0 0.0
      %1205 = vmatpush1.xpose.msra.mxu0 0.0
      %1206 = vmatprep.subr.mxu0 0.0
      %1207 = vmatpush1.xpose.msra.mxu0 0.0
      %1208 = vmatprep.subr.mxu0 0.0
      %1209 = vmatpush1.xpose.msra.mxu0 0.0
      %1210 = vmatprep.subr.mxu0 0.0
      %1211 = vmatpush1.xpose.msra.mxu0 0.0
      %1212 = vmatprep.subr.mxu0 0.0
      %1213 = vmatpush1.xpose.msra.mxu0 0.0
      %1214 = vmatprep.subr.mxu0 0.0
      %1215 = vmatpush1.xpose.msra.mxu0 0.0
      %1216 = vmatprep.subr.mxu0 0.0
      %1217 = vmatpush1.xpose.msra.mxu0 0.0
      %1218 = vmatprep.subr.mxu0 0.0
      %1219 = vmatpush1.xpose.msra.mxu0 0.0
      %1220 = vmatprep.subr.mxu0 0.0
      %1221 = vmatpush1.xpose.msra.mxu0 0.0
      %1222 = vmatprep.mubr.f32.mxu0 0.0
      %1223 = vmatmul.mubr.f32.gmra.mrb[0].mxu0 %v1154
      %v1224 = vpop.f32.mrb[0].mxu0
      %v1225 = vadd.f32 %v1028, %v1224
      %v1226 = vpop.f32.mrb[0].mxu0
      %1227 = vdwg.mxu0
      %v1228 = vsel %vm1153, %v1225, -inf
      %1229 = vmax.xlane.f32.xlu0 %v1228
      %v1230 = vpop.xlane.xlu0 %1229
      %v1231 = vsub.f32 %v1225, %v1230
      %v1232 = vmul.f32 %v1231, 1.442695
      %v1233 = vpow.pop %v1232
      %v1234 = vsel %vm1153, %v1233, 0.0
      %1235 = vadd.xlane.f32.xlu0 %v1234
      %v1236 = vpop.xlane.xlu0 %1235
      %v1237 = vrcp.pop %v1236
      %v1238 = vmul.f32 %v1233, %v1237
      %1239 = vrot.lane.b32.xlu0 %v1142, 64
      %v1240 = vpop.permute.xlu0 %1239
      %v1243 = vsel %vm1153, %v1238, 0
      %1245 = vmatprep.subr.mxu0 0.0
      %1246 = vmatpush1.msra.mxu0 %v1240
      %1247 = vmatprep.subr.mxu0 0.0
      %1248 = vmatpush1.msra.mxu0 0.0
      %1249 = vmatprep.subr.mxu0 0.0
      %1250 = vmatpush1.msra.mxu0 0.0
      %1251 = vmatprep.subr.mxu0 0.0
      %1252 = vmatpush1.msra.mxu0 0.0
      %1253 = vmatprep.subr.mxu0 0.0
      %1254 = vmatpush1.msra.mxu0 0.0
      %1255 = vmatprep.subr.mxu0 0.0
      %1256 = vmatpush1.msra.mxu0 0.0
      %1257 = vmatprep.subr.mxu0 0.0
      %1258 = vmatpush1.msra.mxu0 0.0
      %1259 = vmatprep.subr.mxu0 0.0
      %1260 = vmatpush1.msra.mxu0 0.0
      %1261 = vmatprep.subr.mxu0 0.0
      %1262 = vmatpush1.msra.mxu0 0.0
      %1263 = vmatprep.subr.mxu0 0.0
      %1264 = vmatpush1.msra.mxu0 0.0
      %1265 = vmatprep.subr.mxu0 0.0
      %1266 = vmatpush1.msra.mxu0 0.0
      %1267 = vmatprep.subr.mxu0 0.0
      %1268 = vmatpush1.msra.mxu0 0.0
      %1269 = vmatprep.subr.mxu0 0.0
      %1270 = vmatpush1.msra.mxu0 0.0
      %1271 = vmatprep.subr.mxu0 0.0
      %1272 = vmatpush1.msra.mxu0 0.0
      %1273 = vmatprep.subr.mxu0 0.0
      %1274 = vmatpush1.msra.mxu0 0.0
      %1275 = vmatprep.subr.mxu0 0.0
      %1276 = vmatpush1.msra.mxu0 0.0
      %1277 = vmatprep.subr.mxu0 0.0
      %1278 = vmatpush1.msra.mxu0 0.0
      %1279 = vmatprep.subr.mxu0 0.0
      %1280 = vmatpush1.msra.mxu0 0.0
      %1281 = vmatprep.subr.mxu0 0.0
      %1282 = vmatpush1.msra.mxu0 0.0
      %1283 = vmatprep.subr.mxu0 0.0
      %1284 = vmatpush1.msra.mxu0 0.0
      %1285 = vmatprep.subr.mxu0 0.0
      %1286 = vmatpush1.msra.mxu0 0.0
      %1287 = vmatprep.subr.mxu0 0.0
      %1288 = vmatpush1.msra.mxu0 0.0
      %1289 = vmatprep.subr.mxu0 0.0
      %1290 = vmatpush1.msra.mxu0 0.0
      %1291 = vmatprep.subr.mxu0 0.0
      %1292 = vmatpush1.msra.mxu0 0.0
      %1293 = vmatprep.subr.mxu0 0.0
      %1294 = vmatpush1.msra.mxu0 0.0
      %1295 = vmatprep.subr.mxu0 0.0
      %1296 = vmatpush1.msra.mxu0 0.0
      %1297 = vmatprep.subr.mxu0 0.0
      %1298 = vmatpush1.msra.mxu0 0.0
      %1299 = vmatprep.subr.mxu0 0.0
      %1300 = vmatpush1.msra.mxu0 0.0
      %1301 = vmatprep.subr.mxu0 0.0
      %1302 = vmatpush1.msra.mxu0 0.0
      %1303 = vmatprep.subr.mxu0 0.0
      %1304 = vmatpush1.msra.mxu0 0.0
      %1305 = vmatprep.subr.mxu0 0.0
      %1306 = vmatpush1.msra.mxu0 0.0
      %1307 = vmatprep.subr.mxu0 0.0
      %1308 = vmatpush1.msra.mxu0 0.0
      %1309 = vmatprep.mubr.f32.mxu0 0.0
      %1310 = vmatmul.mubr.f32.gmra.mrb[0].mxu0 %v1243
      %v1311 = vpop.f32.mrb[0].mxu0
      %v1312 = vadd.f32 0.0, %v1311
      %v1313 = vpop.f32.mrb[0].mxu0
      %1314 = vdwg.mxu0
      %1315 = vst.msk [vmem:[#allocation3] sm:$0xff] %vm1153, %v1312
      %1316 = vrot.lane.b32.xlu0 %v1142, 120
      %v1317 = vpop.permute.xlu0 %1316
      %1318 = vrot.lane.b32.xlu0 %v1142, 88
      %v1319 = vpop.permute.xlu0 %1318
      %v1320 = vsel %vm1153, %v1317, 0
      %v1322 = vsel %vm1153, %v1319, 0
      %1324 = vmatprep.subr.mxu0 0.0
      %1325 = vmatpush1.xpose.msra.mxu0 %v1322
      %1326 = vmatprep.subr.mxu0 0.0
      %1327 = vmatpush1.xpose.msra.mxu0 0.0
      %1328 = vmatprep.subr.mxu0 0.0
      %1329 = vmatpush1.xpose.msra.mxu0 0.0
      %1330 = vmatprep.subr.mxu0 0.0
      %1331 = vmatpush1.xpose.msra.mxu0 0.0
      %1332 = vmatprep.subr.mxu0 0.0
      %1333 = vmatpush1.xpose.msra.mxu0 0.0
      %1334 = vmatprep.subr.mxu0 0.0
      %1335 = vmatpush1.xpose.msra.mxu0 0.0
      %1336 = vmatprep.subr.mxu0 0.0
      %1337 = vmatpush1.xpose.msra.mxu0 0.0
      %1338 = vmatprep.subr.mxu0 0.0
      %1339 = vmatpush1.xpose.msra.mxu0 0.0
      %1340 = vmatprep.subr.mxu0 0.0
      %1341 = vmatpush1.xpose.msra.mxu0 0.0
      %1342 = vmatprep.subr.mxu0 0.0
      %1343 = vmatpush1.xpose.msra.mxu0 0.0
      %1344 = vmatprep.subr.mxu0 0.0
      %1345 = vmatpush1.xpose.msra.mxu0 0.0
      %1346 = vmatprep.subr.mxu0 0.0
      %1347 = vmatpush1.xpose.msra.mxu0 0.0
      %1348 = vmatprep.subr.mxu0 0.0
      %1349 = vmatpush1.xpose.msra.mxu0 0.0
      %1350 = vmatprep.subr.mxu0 0.0
      %1351 = vmatpush1.xpose.msra.mxu0 0.0
      %1352 = vmatprep.subr.mxu0 0.0
      %1353 = vmatpush1.xpose.msra.mxu0 0.0
      %1354 = vmatprep.subr.mxu0 0.0
      %1355 = vmatpush1.xpose.msra.mxu0 0.0
      %1356 = vmatprep.subr.mxu0 0.0
      %1357 = vmatpush1.xpose.msra.mxu0 0.0
      %1358 = vmatprep.subr.mxu0 0.0
      %1359 = vmatpush1.xpose.msra.mxu0 0.0
      %1360 = vmatprep.subr.mxu0 0.0
      %1361 = vmatpush1.xpose.msra.mxu0 0.0
      %1362 = vmatprep.subr.mxu0 0.0
      %1363 = vmatpush1.xpose.msra.mxu0 0.0
      %1364 = vmatprep.subr.mxu0 0.0
      %1365 = vmatpush1.xpose.msra.mxu0 0.0
      %1366 = vmatprep.subr.mxu0 0.0
      %1367 = vmatpush1.xpose.msra.mxu0 0.0
      %1368 = vmatprep.subr.mxu0 0.0
      %1369 = vmatpush1.xpose.msra.mxu0 0.0
      %1370 = vmatprep.subr.mxu0 0.0
      %1371 = vmatpush1.xpose.msra.mxu0 0.0
      %1372 = vmatprep.subr.mxu0 0.0
      %1373 = vmatpush1.xpose.msra.mxu0 0.0
      %1374 = vmatprep.subr.mxu0 0.0
      %1375 = vmatpush1.xpose.msra.mxu0 0.0
      %1376 = vmatprep.subr.mxu0 0.0
      %1377 = vmatpush1.xpose.msra.mxu0 0.0
      %1378 = vmatprep.subr.mxu0 0.0
      %1379 = vmatpush1.xpose.msra.mxu0 0.0
      %1380 = vmatprep.subr.mxu0 0.0
      %1381 = vmatpush1.xpose.msra.mxu0 0.0
      %1382 = vmatprep.subr.mxu0 0.0
      %1383 = vmatpush1.xpose.msra.mxu0 0.0
      %1384 = vmatprep.subr.mxu0 0.0
      %1385 = vmatpush1.xpose.msra.mxu0 0.0
      %1386 = vmatprep.subr.mxu0 0.0
      %1387 = vmatpush1.xpose.msra.mxu0 0.0
      %1388 = vmatprep.mubr.f32.mxu0 0.0
      %1389 = vmatmul.mubr.f32.gmra.mrb[0].mxu0 %v1320
      %v1390 = vpop.f32.mrb[0].mxu0
      %v1391 = vadd.f32 %v1028, %v1390
      %v1392 = vpop.f32.mrb[0].mxu0
      %1393 = vdwg.mxu0
      %v1394 = vsel %vm1153, %v1391, -inf
      %1395 = vmax.xlane.f32.xlu0 %v1394
      %v1396 = vpop.xlane.xlu0 %1395
      %v1397 = vsub.f32 %v1391, %v1396
      %v1398 = vmul.f32 %v1397, 1.442695
      %v1399 = vpow.pop %v1398
      %v1400 = vsel %vm1153, %v1399, 0.0
      %1401 = vadd.xlane.f32.xlu0 %v1400
      %v1402 = vpop.xlane.xlu0 %1401
      %v1403 = vrcp.pop %v1402
      %v1404 = vmul.f32 %v1399, %v1403
      %1405 = vrot.lane.b32.xlu0 %v1142, 56
      %v1406 = vpop.permute.xlu0 %1405
      %v1409 = vsel %vm1153, %v1404, 0
      %1411 = vmatprep.subr.mxu0 0.0
      %1412 = vmatpush1.msra.mxu0 %v1406
      %1413 = vmatprep.subr.mxu0 0.0
      %1414 = vmatpush1.msra.mxu0 0.0
      %1415 = vmatprep.subr.mxu0 0.0
      %1416 = vmatpush1.msra.mxu0 0.0
      %1417 = vmatprep.subr.mxu0 0.0
      %1418 = vmatpush1.msra.mxu0 0.0
      %1419 = vmatprep.subr.mxu0 0.0
      %1420 = vmatpush1.msra.mxu0 0.0
      %1421 = vmatprep.subr.mxu0 0.0
      %1422 = vmatpush1.msra.mxu0 0.0
      %1423 = vmatprep.subr.mxu0 0.0
      %1424 = vmatpush1.msra.mxu0 0.0
      %1425 = vmatprep.subr.mxu0 0.0
      %1426 = vmatpush1.msra.mxu0 0.0
      %1427 = vmatprep.subr.mxu0 0.0
      %1428 = vmatpush1.msra.mxu0 0.0
      %1429 = vmatprep.subr.mxu0 0.0
      %1430 = vmatpush1.msra.mxu0 0.0
      %1431 = vmatprep.subr.mxu0 0.0
      %1432 = vmatpush1.msra.mxu0 0.0
      %1433 = vmatprep.subr.mxu0 0.0
      %1434 = vmatpush1.msra.mxu0 0.0
      %1435 = vmatprep.subr.mxu0 0.0
      %1436 = vmatpush1.msra.mxu0 0.0
      %1437 = vmatprep.subr.mxu0 0.0
      %1438 = vmatpush1.msra.mxu0 0.0
      %1439 = vmatprep.subr.mxu0 0.0
      %1440 = vmatpush1.msra.mxu0 0.0
      %1441 = vmatprep.subr.mxu0 0.0
      %1442 = vmatpush1.msra.mxu0 0.0
      %1443 = vmatprep.subr.mxu0 0.0
      %1444 = vmatpush1.msra.mxu0 0.0
      %1445 = vmatprep.subr.mxu0 0.0
      %1446 = vmatpush1.msra.mxu0 0.0
      %1447 = vmatprep.subr.mxu0 0.0
      %1448 = vmatpush1.msra.mxu0 0.0
      %1449 = vmatprep.subr.mxu0 0.0
      %1450 = vmatpush1.msra.mxu0 0.0
      %1451 = vmatprep.subr.mxu0 0.0
      %1452 = vmatpush1.msra.mxu0 0.0
      %1453 = vmatprep.subr.mxu0 0.0
      %1454 = vmatpush1.msra.mxu0 0.0
      %1455 = vmatprep.subr.mxu0 0.0
      %1456 = vmatpush1.msra.mxu0 0.0
      %1457 = vmatprep.subr.mxu0 0.0
      %1458 = vmatpush1.msra.mxu0 0.0
      %1459 = vmatprep.subr.mxu0 0.0
      %1460 = vmatpush1.msra.mxu0 0.0
      %1461 = vmatprep.subr.mxu0 0.0
      %1462 = vmatpush1.msra.mxu0 0.0
      %1463 = vmatprep.subr.mxu0 0.0
      %1464 = vmatpush1.msra.mxu0 0.0
      %1465 = vmatprep.subr.mxu0 0.0
      %1466 = vmatpush1.msra.mxu0 0.0
      %1467 = vmatprep.subr.mxu0 0.0
      %1468 = vmatpush1.msra.mxu0 0.0
      %1469 = vmatprep.subr.mxu0 0.0
      %1470 = vmatpush1.msra.mxu0 0.0
      %1471 = vmatprep.subr.mxu0 0.0
      %1472 = vmatpush1.msra.mxu0 0.0
      %1473 = vmatprep.subr.mxu0 0.0
      %1474 = vmatpush1.msra.mxu0 0.0
      %1475 = vmatprep.mubr.f32.mxu0 0.0
      %1476 = vmatmul.mubr.f32.gmra.mrb[0].mxu0 %v1409
      %v1477 = vpop.f32.mrb[0].mxu0
      %v1478 = vadd.f32 0.0, %v1477
      %v1479 = vpop.f32.mrb[0].mxu0
      %1480 = vdwg.mxu0
      %1482 = vrot.lane.b32.xlu0 %v1478, 8
      %v1483 = vpop.permute.xlu0 %1482
      %vm1485 = vcmask 130112
      %1486 = vst.msk [vmem:[#allocation3] sm:$0xff] %vm1485, %v1483
      %1487 = vrot.lane.b32.xlu0 %v1142, 112
      %v1488 = vpop.permute.xlu0 %1487
      %1489 = vrot.lane.b32.xlu0 %v1142, 80
      %v1490 = vpop.permute.xlu0 %1489
      %v1491 = vsel %vm1153, %v1488, 0
      %v1493 = vsel %vm1153, %v1490, 0
      %1495 = vmatprep.subr.mxu0 0.0
      %1496 = vmatpush1.xpose.msra.mxu0 %v1493
      %1497 = vmatprep.subr.mxu0 0.0
      %1498 = vmatpush1.xpose.msra.mxu0 0.0
      %1499 = vmatprep.subr.mxu0 0.0
      %1500 = vmatpush1.xpose.msra.mxu0 0.0
      %1501 = vmatprep.subr.mxu0 0.0
      %1502 = vmatpush1.xpose.msra.mxu0 0.0
      %1503 = vmatprep.subr.mxu0 0.0
      %1504 = vmatpush1.xpose.msra.mxu0 0.0
      %1505 = vmatprep.subr.mxu0 0.0
      %1506 = vmatpush1.xpose.msra.mxu0 0.0
      %1507 = vmatprep.subr.mxu0 0.0
      %1508 = vmatpush1.xpose.msra.mxu0 0.0
      %1509 = vmatprep.subr.mxu0 0.0
      %1510 = vmatpush1.xpose.msra.mxu0 0.0
      %1511 = vmatprep.subr.mxu0 0.0
      %1512 = vmatpush1.xpose.msra.mxu0 0.0
      %1513 = vmatprep.subr.mxu0 0.0
      %1514 = vmatpush1.xpose.msra.mxu0 0.0
      %1515 = vmatprep.subr.mxu0 0.0
      %1516 = vmatpush1.xpose.msra.mxu0 0.0
      %1517 = vmatprep.subr.mxu0 0.0
      %1518 = vmatpush1.xpose.msra.mxu0 0.0
      %1519 = vmatprep.subr.mxu0 0.0
      %1520 = vmatpush1.xpose.msra.mxu0 0.0
      %1521 = vmatprep.subr.mxu0 0.0
      %1522 = vmatpush1.xpose.msra.mxu0 0.0
      %1523 = vmatprep.subr.mxu0 0.0
      %1524 = vmatpush1.xpose.msra.mxu0 0.0
      %1525 = vmatprep.subr.mxu0 0.0
      %1526 = vmatpush1.xpose.msra.mxu0 0.0
      %1527 = vmatprep.subr.mxu0 0.0
      %1528 = vmatpush1.xpose.msra.mxu0 0.0
      %1529 = vmatprep.subr.mxu0 0.0
      %1530 = vmatpush1.xpose.msra.mxu0 0.0
      %1531 = vmatprep.subr.mxu0 0.0
      %1532 = vmatpush1.xpose.msra.mxu0 0.0
      %1533 = vmatprep.subr.mxu0 0.0
      %1534 = vmatpush1.xpose.msra.mxu0 0.0
      %1535 = vmatprep.subr.mxu0 0.0
      %1536 = vmatpush1.xpose.msra.mxu0 0.0
      %1537 = vmatprep.subr.mxu0 0.0
      %1538 = vmatpush1.xpose.msra.mxu0 0.0
      %1539 = vmatprep.subr.mxu0 0.0
      %1540 = vmatpush1.xpose.msra.mxu0 0.0
      %1541 = vmatprep.subr.mxu0 0.0
      %1542 = vmatpush1.xpose.msra.mxu0 0.0
      %1543 = vmatprep.subr.mxu0 0.0
      %1544 = vmatpush1.xpose.msra.mxu0 0.0
      %1545 = vmatprep.subr.mxu0 0.0
      %1546 = vmatpush1.xpose.msra.mxu0 0.0
      %1547 = vmatprep.subr.mxu0 0.0
      %1548 = vmatpush1.xpose.msra.mxu0 0.0
      %1549 = vmatprep.subr.mxu0 0.0
      %1550 = vmatpush1.xpose.msra.mxu0 0.0
      %1551 = vmatprep.subr.mxu0 0.0
      %1552 = vmatpush1.xpose.msra.mxu0 0.0
      %1553 = vmatprep.subr.mxu0 0.0
      %1554 = vmatpush1.xpose.msra.mxu0 0.0
      %1555 = vmatprep.subr.mxu0 0.0
      %1556 = vmatpush1.xpose.msra.mxu0 0.0
      %1557 = vmatprep.subr.mxu0 0.0
      %1558 = vmatpush1.xpose.msra.mxu0 0.0
      %1559 = vmatprep.mubr.f32.mxu0 0.0
      %1560 = vmatmul.mubr.f32.gmra.mrb[0].mxu0 %v1491
      %v1561 = vpop.f32.mrb[0].mxu0
      %v1562 = vadd.f32 %v1028, %v1561
      %v1563 = vpop.f32.mrb[0].mxu0
      %1564 = vdwg.mxu0
      %v1565 = vsel %vm1153, %v1562, -inf
      %1566 = vmax.xlane.f32.xlu0 %v1565
      %v1567 = vpop.xlane.xlu0 %1566
      %v1568 = vsub.f32 %v1562, %v1567
      %v1569 = vmul.f32 %v1568, 1.442695
      %v1570 = vpow.pop %v1569
      %v1571 = vsel %vm1153, %v1570, 0.0
      %1572 = vadd.xlane.f32.xlu0 %v1571
      %v1573 = vpop.xlane.xlu0 %1572
      %v1574 = vrcp.pop %v1573
      %v1575 = vmul.f32 %v1570, %v1574
      %1576 = vrot.lane.b32.xlu0 %v1142, 48
      %v1577 = vpop.permute.xlu0 %1576
      %v1580 = vsel %vm1153, %v1575, 0
      %1582 = vmatprep.subr.mxu0 0.0
      %1583 = vmatpush1.msra.mxu0 %v1577
      %1584 = vmatprep.subr.mxu0 0.0
      %1585 = vmatpush1.msra.mxu0 0.0
      %1586 = vmatprep.subr.mxu0 0.0
      %1587 = vmatpush1.msra.mxu0 0.0
      %1588 = vmatprep.subr.mxu0 0.0
      %1589 = vmatpush1.msra.mxu0 0.0
      %1590 = vmatprep.subr.mxu0 0.0
      %1591 = vmatpush1.msra.mxu0 0.0
      %1592 = vmatprep.subr.mxu0 0.0
      %1593 = vmatpush1.msra.mxu0 0.0
      %1594 = vmatprep.subr.mxu0 0.0
      %1595 = vmatpush1.msra.mxu0 0.0
      %1596 = vmatprep.subr.mxu0 0.0
      %1597 = vmatpush1.msra.mxu0 0.0
      %1598 = vmatprep.subr.mxu0 0.0
      %1599 = vmatpush1.msra.mxu0 0.0
      %1600 = vmatprep.subr.mxu0 0.0
      %1601 = vmatpush1.msra.mxu0 0.0
      %1602 = vmatprep.subr.mxu0 0.0
      %1603 = vmatpush1.msra.mxu0 0.0
      %1604 = vmatprep.subr.mxu0 0.0
      %1605 = vmatpush1.msra.mxu0 0.0
      %1606 = vmatprep.subr.mxu0 0.0
      %1607 = vmatpush1.msra.mxu0 0.0
      %1608 = vmatprep.subr.mxu0 0.0
      %1609 = vmatpush1.msra.mxu0 0.0
      %1610 = vmatprep.subr.mxu0 0.0
      %1611 = vmatpush1.msra.mxu0 0.0
      %1612 = vmatprep.subr.mxu0 0.0
      %1613 = vmatpush1.msra.mxu0 0.0
      %1614 = vmatprep.subr.mxu0 0.0
      %1615 = vmatpush1.msra.mxu0 0.0
      %1616 = vmatprep.subr.mxu0 0.0
      %1617 = vmatpush1.msra.mxu0 0.0
      %1618 = vmatprep.subr.mxu0 0.0
      %1619 = vmatpush1.msra.mxu0 0.0
      %1620 = vmatprep.subr.mxu0 0.0
      %1621 = vmatpush1.msra.mxu0 0.0
      %1622 = vmatprep.subr.mxu0 0.0
      %1623 = vmatpush1.msra.mxu0 0.0
      %1624 = vmatprep.subr.mxu0 0.0
      %1625 = vmatpush1.msra.mxu0 0.0
      %1626 = vmatprep.subr.mxu0 0.0
      %1627 = vmatpush1.msra.mxu0 0.0
      %1628 = vmatprep.subr.mxu0 0.0
      %1629 = vmatpush1.msra.mxu0 0.0
      %1630 = vmatprep.subr.mxu0 0.0
      %1631 = vmatpush1.msra.mxu0 0.0
      %1632 = vmatprep.subr.mxu0 0.0
      %1633 = vmatpush1.msra.mxu0 0.0
      %1634 = vmatprep.subr.mxu0 0.0
      %1635 = vmatpush1.msra.mxu0 0.0
      %1636 = vmatprep.subr.mxu0 0.0
      %1637 = vmatpush1.msra.mxu0 0.0
      %1638 = vmatprep.subr.mxu0 0.0
      %1639 = vmatpush1.msra.mxu0 0.0
      %1640 = vmatprep.subr.mxu0 0.0
      %1641 = vmatpush1.msra.mxu0 0.0
      %1642 = vmatprep.subr.mxu0 0.0
      %1643 = vmatpush1.msra.mxu0 0.0
      %1644 = vmatprep.subr.mxu0 0.0
      %1645 = vmatpush1.msra.mxu0 0.0
      %1646 = vmatprep.mubr.f32.mxu0 0.0
      %1647 = vmatmul.mubr.f32.gmra.mrb[0].mxu0 %v1580
      %v1648 = vpop.f32.mrb[0].mxu0
      %v1649 = vadd.f32 0.0, %v1648
      %v1650 = vpop.f32.mrb[0].mxu0
      %1651 = vdwg.mxu0
      %1653 = vrot.lane.b32.xlu0 %v1649, 16
      %v1654 = vpop.permute.xlu0 %1653
      %vm1656 = vcmask 195712
      %1657 = vst.msk [vmem:[#allocation3] sm:$0xff] %vm1656, %v1654
      %1658 = vrot.lane.b32.xlu0 %v1142, 104
      %v1659 = vpop.permute.xlu0 %1658
      %1660 = vrot.lane.b32.xlu0 %v1142, 72
      %v1661 = vpop.permute.xlu0 %1660
      %v1662 = vsel %vm1153, %v1659, 0
      %v1664 = vsel %vm1153, %v1661, 0
      %1666 = vmatprep.subr.mxu0 0.0
      %1667 = vmatpush1.xpose.msra.mxu0 %v1664
      %1668 = vmatprep.subr.mxu0 0.0
      %1669 = vmatpush1.xpose.msra.mxu0 0.0
      %1670 = vmatprep.subr.mxu0 0.0
      %1671 = vmatpush1.xpose.msra.mxu0 0.0
      %1672 = vmatprep.subr.mxu0 0.0
      %1673 = vmatpush1.xpose.msra.mxu0 0.0
      %1674 = vmatprep.subr.mxu0 0.0
      %1675 = vmatpush1.xpose.msra.mxu0 0.0
      %1676 = vmatprep.subr.mxu0 0.0
      %1677 = vmatpush1.xpose.msra.mxu0 0.0
      %1678 = vmatprep.subr.mxu0 0.0
      %1679 = vmatpush1.xpose.msra.mxu0 0.0
      %1680 = vmatprep.subr.mxu0 0.0
      %1681 = vmatpush1.xpose.msra.mxu0 0.0
      %1682 = vmatprep.subr.mxu0 0.0
      %1683 = vmatpush1.xpose.msra.mxu0 0.0
      %1684 = vmatprep.subr.mxu0 0.0
      %1685 = vmatpush1.xpose.msra.mxu0 0.0
      %1686 = vmatprep.subr.mxu0 0.0
      %1687 = vmatpush1.xpose.msra.mxu0 0.0
      %1688 = vmatprep.subr.mxu0 0.0
      %1689 = vmatpush1.xpose.msra.mxu0 0.0
      %1690 = vmatprep.subr.mxu0 0.0
      %1691 = vmatpush1.xpose.msra.mxu0 0.0
      %1692 = vmatprep.subr.mxu0 0.0
      %1693 = vmatpush1.xpose.msra.mxu0 0.0
      %1694 = vmatprep.subr.mxu0 0.0
      %1695 = vmatpush1.xpose.msra.mxu0 0.0
      %1696 = vmatprep.subr.mxu0 0.0
      %1697 = vmatpush1.xpose.msra.mxu0 0.0
      %1698 = vmatprep.subr.mxu0 0.0
      %1699 = vmatpush1.xpose.msra.mxu0 0.0
      %1700 = vmatprep.subr.mxu0 0.0
      %1701 = vmatpush1.xpose.msra.mxu0 0.0
      %1702 = vmatprep.subr.mxu0 0.0
      %1703 = vmatpush1.xpose.msra.mxu0 0.0
      %1704 = vmatprep.subr.mxu0 0.0
      %1705 = vmatpush1.xpose.msra.mxu0 0.0
      %1706 = vmatprep.subr.mxu0 0.0
      %1707 = vmatpush1.xpose.msra.mxu0 0.0
      %1708 = vmatprep.subr.mxu0 0.0
      %1709 = vmatpush1.xpose.msra.mxu0 0.0
      %1710 = vmatprep.subr.mxu0 0.0
      %1711 = vmatpush1.xpose.msra.mxu0 0.0
      %1712 = vmatprep.subr.mxu0 0.0
      %1713 = vmatpush1.xpose.msra.mxu0 0.0
      %1714 = vmatprep.subr.mxu0 0.0
      %1715 = vmatpush1.xpose.msra.mxu0 0.0
      %1716 = vmatprep.subr.mxu0 0.0
      %1717 = vmatpush1.xpose.msra.mxu0 0.0
      %1718 = vmatprep.subr.mxu0 0.0
      %1719 = vmatpush1.xpose.msra.mxu0 0.0
      %1720 = vmatprep.subr.mxu0 0.0
      %1721 = vmatpush1.xpose.msra.mxu0 0.0
      %1722 = vmatprep.subr.mxu0 0.0
      %1723 = vmatpush1.xpose.msra.mxu0 0.0
      %1724 = vmatprep.subr.mxu0 0.0
      %1725 = vmatpush1.xpose.msra.mxu0 0.0
      %1726 = vmatprep.subr.mxu0 0.0
      %1727 = vmatpush1.xpose.msra.mxu0 0.0
      %1728 = vmatprep.subr.mxu0 0.0
      %1729 = vmatpush1.xpose.msra.mxu0 0.0
      %1730 = vmatprep.mubr.f32.mxu0 0.0
      %1731 = vmatmul.mubr.f32.gmra.mrb[0].mxu0 %v1662
      %v1732 = vpop.f32.mrb[0].mxu0
      %v1733 = vadd.f32 %v1028, %v1732
      %v1734 = vpop.f32.mrb[0].mxu0
      %1735 = vdwg.mxu0
      %v1736 = vsel %vm1153, %v1733, -inf
      %1737 = vmax.xlane.f32.xlu0 %v1736
      %v1738 = vpop.xlane.xlu0 %1737
      %v1739 = vsub.f32 %v1733, %v1738
      %v1740 = vmul.f32 %v1739, 1.442695
      %v1741 = vpow.pop %v1740
      %v1742 = vsel %vm1153, %v1741, 0.0
      %1743 = vadd.xlane.f32.xlu0 %v1742
      %v1744 = vpop.xlane.xlu0 %1743
      %v1745 = vrcp.pop %v1744
      %v1746 = vmul.f32 %v1741, %v1745
      %1747 = vrot.lane.b32.xlu0 %v1142, 40
      %v1748 = vpop.permute.xlu0 %1747
      %v1751 = vsel %vm1153, %v1746, 0
      %1753 = vmatprep.subr.mxu0 0.0
      %1754 = vmatpush1.msra.mxu0 %v1748
      %1755 = vmatprep.subr.mxu0 0.0
      %1756 = vmatpush1.msra.mxu0 0.0
      %1757 = vmatprep.subr.mxu0 0.0
      %1758 = vmatpush1.msra.mxu0 0.0
      %1759 = vmatprep.subr.mxu0 0.0
      %1760 = vmatpush1.msra.mxu0 0.0
      %1761 = vmatprep.subr.mxu0 0.0
      %1762 = vmatpush1.msra.mxu0 0.0
      %1763 = vmatprep.subr.mxu0 0.0
      %1764 = vmatpush1.msra.mxu0 0.0
      %1765 = vmatprep.subr.mxu0 0.0
      %1766 = vmatpush1.msra.mxu0 0.0
      %1767 = vmatprep.subr.mxu0 0.0
      %1768 = vmatpush1.msra.mxu0 0.0
      %1769 = vmatprep.subr.mxu0 0.0
      %1770 = vmatpush1.msra.mxu0 0.0
      %1771 = vmatprep.subr.mxu0 0.0
      %1772 = vmatpush1.msra.mxu0 0.0
      %1773 = vmatprep.subr.mxu0 0.0
      %1774 = vmatpush1.msra.mxu0 0.0
      %1775 = vmatprep.subr.mxu0 0.0
      %1776 = vmatpush1.msra.mxu0 0.0
      %1777 = vmatprep.subr.mxu0 0.0
      %1778 = vmatpush1.msra.mxu0 0.0
      %1779 = vmatprep.subr.mxu0 0.0
      %1780 = vmatpush1.msra.mxu0 0.0
      %1781 = vmatprep.subr.mxu0 0.0
      %1782 = vmatpush1.msra.mxu0 0.0
      %1783 = vmatprep.subr.mxu0 0.0
      %1784 = vmatpush1.msra.mxu0 0.0
      %1785 = vmatprep.subr.mxu0 0.0
      %1786 = vmatpush1.msra.mxu0 0.0
      %1787 = vmatprep.subr.mxu0 0.0
      %1788 = vmatpush1.msra.mxu0 0.0
      %1789 = vmatprep.subr.mxu0 0.0
      %1790 = vmatpush1.msra.mxu0 0.0
      %1791 = vmatprep.subr.mxu0 0.0
      %1792 = vmatpush1.msra.mxu0 0.0
      %1793 = vmatprep.subr.mxu0 0.0
      %1794 = vmatpush1.msra.mxu0 0.0
      %1795 = vmatprep.subr.mxu0 0.0
      %1796 = vmatpush1.msra.mxu0 0.0
      %1797 = vmatprep.subr.mxu0 0.0
      %1798 = vmatpush1.msra.mxu0 0.0
      %1799 = vmatprep.subr.mxu0 0.0
      %1800 = vmatpush1.msra.mxu0 0.0
      %1801 = vmatprep.subr.mxu0 0.0
      %1802 = vmatpush1.msra.mxu0 0.0
      %1803 = vmatprep.subr.mxu0 0.0
      %1804 = vmatpush1.msra.mxu0 0.0
      %1805 = vmatprep.subr.mxu0 0.0
      %1806 = vmatpush1.msra.mxu0 0.0
      %1807 = vmatprep.subr.mxu0 0.0
      %1808 = vmatpush1.msra.mxu0 0.0
      %1809 = vmatprep.subr.mxu0 0.0
      %1810 = vmatpush1.msra.mxu0 0.0
      %1811 = vmatprep.subr.mxu0 0.0
      %1812 = vmatpush1.msra.mxu0 0.0
      %1813 = vmatprep.subr.mxu0 0.0
      %1814 = vmatpush1.msra.mxu0 0.0
      %1815 = vmatprep.subr.mxu0 0.0
      %1816 = vmatpush1.msra.mxu0 0.0
      %1817 = vmatprep.mubr.f32.mxu0 0.0
      %1818 = vmatmul.mubr.f32.gmra.mrb[0].mxu0 %v1751
      %v1819 = vpop.f32.mrb[0].mxu0
      %v1820 = vadd.f32 0.0, %v1819
      %v1821 = vpop.f32.mrb[0].mxu0
      %1822 = vdwg.mxu0
      %1824 = vrot.lane.b32.xlu0 %v1820, 24
      %v1825 = vpop.permute.xlu0 %1824
      %vm1827 = vcmask 261312
      %1828 = vst.msk [vmem:[#allocation3] sm:$0xff] %vm1827, %v1825
      %v1829 = vld [vmem:[#allocation3] sm:$0xff]
      %v1831 = vlaneseq
      %v1832 = vshrl.u32 %v1831, 7
      %v1833 = vsub.s32 0, %v1832
      %v1834 = vrot.slane %v1149, %v1833
      %v1837 = vsel %vm1032, %v1829, 0
      %1839 = vmatprep.subr.mxu0 0.0
      %1840 = vmatpush1.msra.mxu0 %v1145
      %1841 = vmatprep.subr.mxu0 0.0
      %1842 = vmatpush1.msra.mxu0 %v1146
      %1843 = vmatprep.subr.mxu0 0.0
      %1844 = vmatpush1.msra.mxu0 %v1147
      %1845 = vmatprep.subr.mxu0 0.0
      %1846 = vmatpush1.msra.mxu0 %v1148
      %1847 = vmatprep.subr.mxu0 0.0
      %1848 = vmatpush1.msra.mxu0 0.0
      %1849 = vmatprep.subr.mxu0 0.0
      %1850 = vmatpush1.msra.mxu0 0.0
      %1851 = vmatprep.subr.mxu0 0.0
      %1852 = vmatpush1.msra.mxu0 0.0
      %1853 = vmatprep.subr.mxu0 0.0
      %1854 = vmatpush1.msra.mxu0 0.0
      %1855 = vmatprep.subr.mxu0 0.0
      %1856 = vmatpush1.msra.mxu0 0.0
      %1857 = vmatprep.subr.mxu0 0.0
      %1858 = vmatpush1.msra.mxu0 0.0
      %1859 = vmatprep.subr.mxu0 0.0
      %1860 = vmatpush1.msra.mxu0 0.0
      %1861 = vmatprep.subr.mxu0 0.0
      %1862 = vmatpush1.msra.mxu0 0.0
      %1863 = vmatprep.subr.mxu0 0.0
      %1864 = vmatpush1.msra.mxu0 0.0
      %1865 = vmatprep.subr.mxu0 0.0
      %1866 = vmatpush1.msra.mxu0 0.0
      %1867 = vmatprep.subr.mxu0 0.0
      %1868 = vmatpush1.msra.mxu0 0.0
      %1869 = vmatprep.subr.mxu0 0.0
      %1870 = vmatpush1.msra.mxu0 0.0
      %1871 = vmatprep.subr.mxu0 0.0
      %1872 = vmatpush1.msra.mxu0 0.0
      %1873 = vmatprep.subr.mxu0 0.0
      %1874 = vmatpush1.msra.mxu0 0.0
      %1875 = vmatprep.subr.mxu0 0.0
      %1876 = vmatpush1.msra.mxu0 0.0
      %1877 = vmatprep.subr.mxu0 0.0
      %1878 = vmatpush1.msra.mxu0 0.0
      %1879 = vmatprep.subr.mxu0 0.0
      %1880 = vmatpush1.msra.mxu0 0.0
      %1881 = vmatprep.subr.mxu0 0.0
      %1882 = vmatpush1.msra.mxu0 0.0
      %1883 = vmatprep.subr.mxu0 0.0
      %1884 = vmatpush1.msra.mxu0 0.0
      %1885 = vmatprep.subr.mxu0 0.0
      %1886 = vmatpush1.msra.mxu0 0.0
      %1887 = vmatprep.subr.mxu0 0.0
      %1888 = vmatpush1.msra.mxu0 0.0
      %1889 = vmatprep.subr.mxu0 0.0
      %1890 = vmatpush1.msra.mxu0 0.0
      %1891 = vmatprep.subr.mxu0 0.0
      %1892 = vmatpush1.msra.mxu0 0.0
      %1893 = vmatprep.subr.mxu0 0.0
      %1894 = vmatpush1.msra.mxu0 0.0
      %1895 = vmatprep.subr.mxu0 0.0
      %1896 = vmatpush1.msra.mxu0 0.0
      %1897 = vmatprep.subr.mxu0 0.0
      %1898 = vmatpush1.msra.mxu0 0.0
      %1899 = vmatprep.subr.mxu0 0.0
      %1900 = vmatpush1.msra.mxu0 0.0
      %1901 = vmatprep.subr.mxu0 0.0
      %1902 = vmatpush1.msra.mxu0 0.0
      %1903 = vmatprep.mubr.f32.mxu0 0.0
      %1904 = vmatmul.mubr.f32.gmra.mrb[0].mxu0 %v1837
      %v1905 = vpop.f32.mrb[0].mxu0
      %v1906 = vadd.f32 %v1834, %v1905
      %v1907 = vpop.f32.mrb[0].mxu0
      %1908 = vdwg.mxu0
      %v1909 = vadd.f32 %v1017, %v1906
      %s1910 = scalar_lea.vmem %s937, 1
      %v1911 = vld [vmem:[%s1910] sm:$0x1]
      %s1912 = scalar_lea.vmem %s941, 1
      %v1913 = vld [vmem:[%s1912] sm:$0x1]
      %v1914 = vsel %vm1032, %v1909, 0.0
      %1915 = vadd.xlane.f32.xlu0 %v1914
      %v1916 = vpop.xlane.xlu0 %1915
      %v1917 = vmul.f32 %v1916, %v1036
      %v1918 = vsub.f32 %v1909, %v1917
      %v1919 = vmul.f32 %v1918, %v1918
      %v1920 = vsel %vm1032, %v1919, 0.0
      %1921 = vadd.xlane.f32.xlu0 %v1920
      %v1922 = vpop.xlane.xlu0 %1921
      %v1923 = vmul.f32 %v1922, %v1036
      %v1924 = vadd.f32 %v1923, 1e-05
      %v1925 = vrsqrt.pop %v1924
      %v1926 = vmul.f32 %v1918, %v1925
      %v1928 = vlaneseq
      %v1929 = vshrl.u32 %v1928, 7
      %v1930 = vsub.s32 0, %v1929
      %v1931 = vrot.slane %v1911, %v1930
      %v1933 = vmul.f32 %v1926, %v1931
      %v1935 = vlaneseq
      %v1936 = vshrl.u32 %v1935, 7
      %v1937 = vsub.s32 0, %v1936
      %v1938 = vrot.slane %v1913, %v1937
      %v1940 = vadd.f32 %v1933, %v1938
      %v1941 = vld [vmem:[%s962] sm:$0xff]
      %v1942 = vld [vmem:[%s962 + $0x8] sm:$0xff]
      %v1943 = vld [vmem:[%s962 + $0x10] sm:$0xff]
      %v1944 = vld [vmem:[%s962 + $0x18] sm:$0xff]
      %v1945 = vld [vmem:[%s965] sm:$0x1]
      %v1947 = vlaneseq
      %v1948 = vshrl.u32 %v1947, 7
      %v1949 = vsub.s32 0, %v1948
      %v1950 = vrot.slane %v1945, %v1949
      %v1953 = vsel %vm1032, %v1940, 0
      %1955 = vmatprep.subr.mxu0 0.0
      %1956 = vmatpush1.msra.mxu0 %v1941
      %1957 = vmatprep.subr.mxu0 0.0
      %1958 = vmatpush1.msra.mxu0 %v1942
      %1959 = vmatprep.subr.mxu0 0.0
      %1960 = vmatpush1.msra.mxu0 %v1943
      %1961 = vmatprep.subr.mxu0 0.0
      %1962 = vmatpush1.msra.mxu0 %v1944
      %1963 = vmatprep.subr.mxu0 0.0
      %1964 = vmatpush1.msra.mxu0 0.0
      %1965 = vmatprep.subr.mxu0 0.0
      %1966 = vmatpush1.msra.mxu0 0.0
      %1967 = vmatprep.subr.mxu0 0.0
      %1968 = vmatpush1.msra.mxu0 0.0
      %1969 = vmatprep.subr.mxu0 0.0
      %1970 = vmatpush1.msra.mxu0 0.0
      %1971 = vmatprep.subr.mxu0 0.0
      %1972 = vmatpush1.msra.mxu0 0.0
      %1973 = vmatprep.subr.mxu0 0.0
      %1974 = vmatpush1.msra.mxu0 0.0
      %1975 = vmatprep.subr.mxu0 0.0
      %1976 = vmatpush1.msra.mxu0 0.0
      %1977 = vmatprep.subr.mxu0 0.0
      %1978 = vmatpush1.msra.mxu0 0.0
      %1979 = vmatprep.subr.mxu0 0.0
      %1980 = vmatpush1.msra.mxu0 0.0
      %1981 = vmatprep.subr.mxu0 0.0
      %1982 = vmatpush1.msra.mxu0 0.0
      %1983 = vmatprep.subr.mxu0 0.0
      %1984 = vmatpush1.msra.mxu0 0.0
      %1985 = vmatprep.subr.mxu0 0.0
      %1986 = vmatpush1.msra.mxu0 0.0
      %1987 = vmatprep.subr.mxu0 0.0
      %1988 = vmatpush1.msra.mxu0 0.0
      %1989 = vmatprep.subr.mxu0 0.0
      %1990 = vmatpush1.msra.mxu0 0.0
      %1991 = vmatprep.subr.mxu0 0.0
      %1992 = vmatpush1.msra.mxu0 0.0
      %1993 = vmatprep.subr.mxu0 0.0
      %1994 = vmatpush1.msra.mxu0 0.0
      %1995 = vmatprep.subr.mxu0 0.0
      %1996 = vmatpush1.msra.mxu0 0.0
      %1997 = vmatprep.subr.mxu0 0.0
      %1998 = vmatpush1.msra.mxu0 0.0
      %1999 = vmatprep.subr.mxu0 0.0
      %2000 = vmatpush1.msra.mxu0 0.0
      %2001 = vmatprep.subr.mxu0 0.0
      %2002 = vmatpush1.msra.mxu0 0.0
      %2003 = vmatprep.subr.mxu0 0.0
      %2004 = vmatpush1.msra.mxu0 0.0
      %2005 = vmatprep.subr.mxu0 0.0
      %2006 = vmatpush1.msra.mxu0 0.0
      %2007 = vmatprep.subr.mxu0 0.0
      %2008 = vmatpush1.msra.mxu0 0.0
      %2009 = vmatprep.subr.mxu0 0.0
      %2010 = vmatpush1.msra.mxu0 0.0
      %2011 = vmatprep.subr.mxu0 0.0
      %2012 = vmatpush1.msra.mxu0 0.0
      %2013 = vmatprep.subr.mxu0 0.0
      %2014 = vmatpush1.msra.mxu0 0.0
      %2015 = vmatprep.subr.mxu0 0.0
      %2016 = vmatpush1.msra.mxu0 0.0
      %2017 = vmatprep.subr.mxu0 0.0
      %2018 = vmatpush1.msra.mxu0 0.0
      %2019 = vmatprep.mubr.f32.mxu0 0.0
      %2020 = vmatmul.mubr.f32.gmra.mrb[0].mxu0 %v1953
      %v2021 = vpop.f32.mrb[0].mxu0
      %v2022 = vadd.f32 %v1950, %v2021
      %v2023 = vpop.f32.mrb[0].mxu0
      %2024 = vdwg.mxu0
      %v2025 = vld [vmem:[%s970] sm:$0xff]
      %v2026 = vld [vmem:[%s970 + $0x8] sm:$0xff]
      %v2027 = vld [vmem:[%s970 + $0x10] sm:$0xff]
      %v2028 = vld [vmem:[%s970 + $0x18] sm:$0xff]
      %v2029 = vld [vmem:[%s973] sm:$0x1]
      %v2031 = vlaneseq
      %v2032 = vshrl.u32 %v2031, 7
      %v2033 = vsub.s32 0, %v2032
      %v2034 = vrot.slane %v2029, %v2033
      %v2037 = vsel %vm1032, %v1018, 0
      %v2040 = vsel %vm1032, %v1019, 0
      %2042 = vmatprep.subr.mxu0 0.0
      %2043 = vmatpush1.msra.mxu0 %v2025
      %2044 = vmatprep.subr.mxu0 0.0
      %2045 = vmatpush1.msra.mxu0 %v2026
      %2046 = vmatprep.subr.mxu0 0.0
      %2047 = vmatpush1.msra.mxu0 %v2027
      %2048 = vmatprep.subr.mxu0 0.0
      %2049 = vmatpush1.msra.mxu0 %v2028
      %2050 = vmatprep.subr.mxu0 0.0
      %2051 = vmatpush1.msra.mxu0 0.0
      %2052 = vmatprep.subr.mxu0 0.0
      %2053 = vmatpush1.msra.mxu0 0.0
      %2054 = vmatprep.subr.mxu0 0.0
      %2055 = vmatpush1.msra.mxu0 0.0
      %2056 = vmatprep.subr.mxu0 0.0
      %2057 = vmatpush1.msra.mxu0 0.0
      %2058 = vmatprep.subr.mxu0 0.0
      %2059 = vmatpush1.msra.mxu0 0.0
      %2060 = vmatprep.subr.mxu0 0.0
      %2061 = vmatpush1.msra.mxu0 0.0
      %2062 = vmatprep.subr.mxu0 0.0
      %2063 = vmatpush1.msra.mxu0 0.0
      %2064 = vmatprep.subr.mxu0 0.0
      %2065 = vmatpush1.msra.mxu0 0.0
      %2066 = vmatprep.subr.mxu0 0.0
      %2067 = vmatpush1.msra.mxu0 0.0
      %2068 = vmatprep.subr.mxu0 0.0
      %2069 = vmatpush1.msra.mxu0 0.0
      %2070 = vmatprep.subr.mxu0 0.0
      %2071 = vmatpush1.msra.mxu0 0.0
      %2072 = vmatprep.subr.mxu0 0.0
      %2073 = vmatpush1.msra.mxu0 0.0
      %2074 = vmatprep.subr.mxu0 0.0
      %2075 = vmatpush1.msra.mxu0 0.0
      %2076 = vmatprep.subr.mxu0 0.0
      %2077 = vmatpush1.msra.mxu0 0.0
      %2078 = vmatprep.subr.mxu0 0.0
      %2079 = vmatpush1.msra.mxu0 0.0
      %2080 = vmatprep.subr.mxu0 0.0
      %2081 = vmatpush1.msra.mxu0 0.0
      %2082 = vmatprep.subr.mxu0 0.0
      %2083 = vmatpush1.msra.mxu0 0.0
      %2084 = vmatprep.subr.mxu0 0.0
      %2085 = vmatpush1.msra.mxu0 0.0
      %2086 = vmatprep.subr.mxu0 0.0
      %2087 = vmatpush1.msra.mxu0 0.0
      %2088 = vmatprep.subr.mxu0 0.0
      %2089 = vmatpush1.msra.mxu0 0.0
      %2090 = vmatprep.subr.mxu0 0.0
      %2091 = vmatpush1.msra.mxu0 0.0
      %2092 = vmatprep.subr.mxu0 0.0
      %2093 = vmatpush1.msra.mxu0 0.0
      %2094 = vmatprep.subr.mxu0 0.0
      %2095 = vmatpush1.msra.mxu0 0.0
      %2096 = vmatprep.subr.mxu0 0.0
      %2097 = vmatpush1.msra.mxu0 0.0
      %2098 = vmatprep.subr.mxu0 0.0
      %2099 = vmatpush1.msra.mxu0 0.0
      %2100 = vmatprep.subr.mxu0 0.0
      %2101 = vmatpush1.msra.mxu0 0.0
      %2102 = vmatprep.subr.mxu0 0.0
      %2103 = vmatpush1.msra.mxu0 0.0
      %2104 = vmatprep.subr.mxu0 0.0
      %2105 = vmatpush1.msra.mxu0 0.0
      %2106 = vmatprep.mubr.f32.mxu0 0.0
      %2107 = vmatmul.mubr.f32.gmra.mrb[0].mxu0 %v2037
      %v2108 = vpop.f32.mrb[0].mxu0
      %v2109 = vadd.f32 %v2034, %v2108
      %v2110 = vpop.f32.mrb[0].mxu0
      %2111 = vmatprep.mubr.f32.mxu0 0.0
      %2112 = vmatmul.mubr.f32.gmra.mrb[0].mxu0 %v2040
      %v2113 = vpop.f32.mrb[0].mxu0
      %v2114 = vadd.f32 %v2034, %v2113
      %v2115 = vpop.f32.mrb[0].mxu0
      %2116 = vdwg.mxu0
      %v2117 = vld [vmem:[%s978] sm:$0xff]
      %v2118 = vld [vmem:[%s978 + $0x8] sm:$0xff]
      %v2119 = vld [vmem:[%s978 + $0x10] sm:$0xff]
      %v2120 = vld [vmem:[%s978 + $0x18] sm:$0xff]
      %v2121 = vld [vmem:[%s981] sm:$0x1]
      %v2123 = vlaneseq
      %v2124 = vshrl.u32 %v2123, 7
      %v2125 = vsub.s32 0, %v2124
      %v2126 = vrot.slane %v1029, %v2125
      %v2129 = vsel %vm1153, %v2022, 0
      %v2132 = vsel %vm1153, %v2109, 0
      %v2135 = vsel %vm1153, %v2114, 0
      %2137 = vmatprep.subr.mxu0 0.0
      %2138 = vmatpush1.xpose.msra.mxu0 %v2132
      %2139 = vmatprep.subr.mxu0 0.0
      %2140 = vmatpush1.xpose.msra.mxu0 %v2135
      %2141 = vmatprep.subr.mxu0 0.0
      %2142 = vmatpush1.xpose.msra.mxu0 0.0
      %2143 = vmatprep.subr.mxu0 0.0
      %2144 = vmatpush1.xpose.msra.mxu0 0.0
      %2145 = vmatprep.subr.mxu0 0.0
      %2146 = vmatpush1.xpose.msra.mxu0 0.0
      %2147 = vmatprep.subr.mxu0 0.0
      %2148 = vmatpush1.xpose.msra.mxu0 0.0
      %2149 = vmatprep.subr.mxu0 0.0
      %2150 = vmatpush1.xpose.msra.mxu0 0.0
      %2151 = vmatprep.subr.mxu0 0.0
      %2152 = vmatpush1.xpose.msra.mxu0 0.0
      %2153 = vmatprep.subr.mxu0 0.0
      %2154 = vmatpush1.xpose.msra.mxu0 0.0
      %2155 = vmatprep.subr.mxu0 0.0
      %2156 = vmatpush1.xpose.msra.mxu0 0.0
      %2157 = vmatprep.subr.mxu0 0.0
      %2158 = vmatpush1.xpose.msra.mxu0 0.0
      %2159 = vmatprep.subr.mxu0 0.0
      %2160 = vmatpush1.xpose.msra.mxu0 0.0
      %2161 = vmatprep.subr.mxu0 0.0
      %2162 = vmatpush1.xpose.msra.mxu0 0.0
      %2163 = vmatprep.subr.mxu0 0.0
      %2164 = vmatpush1.xpose.msra.mxu0 0.0
      %2165 = vmatprep.subr.mxu0 0.0
      %2166 = vmatpush1.xpose.msra.mxu0 0.0
      %2167 = vmatprep.subr.mxu0 0.0
      %2168 = vmatpush1.xpose.msra.mxu0 0.0
      %2169 = vmatprep.subr.mxu0 0.0
      %2170 = vmatpush1.xpose.msra.mxu0 0.0
      %2171 = vmatprep.subr.mxu0 0.0
      %2172 = vmatpush1.xpose.msra.mxu0 0.0
      %2173 = vmatprep.subr.mxu0 0.0
      %2174 = vmatpush1.xpose.msra.mxu0 0.0
      %2175 = vmatprep.subr.mxu0 0.0
      %2176 = vmatpush1.xpose.msra.mxu0 0.0
      %2177 = vmatprep.subr.mxu0 0.0
      %2178 = vmatpush1.xpose.msra.mxu0 0.0
      %2179 = vmatprep.subr.mxu0 0.0
      %2180 = vmatpush1.xpose.msra.mxu0 0.0
      %2181 = vmatprep.subr.mxu0 0.0
      %2182 = vmatpush1.xpose.msra.mxu0 0.0
      %2183 = vmatprep.subr.mxu0 0.0
      %2184 = vmatpush1.xpose.msra.mxu0 0.0
      %2185 = vmatprep.subr.mxu0 0.0
      %2186 = vmatpush1.xpose.msra.mxu0 0.0
      %2187 = vmatprep.subr.mxu0 0.0
      %2188 = vmatpush1.xpose.msra.mxu0 0.0
      %2189 = vmatprep.subr.mxu0 0.0
      %2190 = vmatpush1.xpose.msra.mxu0 0.0
      %2191 = vmatprep.subr.mxu0 0.0
      %2192 = vmatpush1.xpose.msra.mxu0 0.0
      %2193 = vmatprep.subr.mxu0 0.0
      %2194 = vmatpush1.xpose.msra.mxu0 0.0
      %2195 = vmatprep.subr.mxu0 0.0
      %2196 = vmatpush1.xpose.msra.mxu0 0.0
      %2197 = vmatprep.subr.mxu0 0.0
      %2198 = vmatpush1.xpose.msra.mxu0 0.0
      %2199 = vmatprep.subr.mxu0 0.0
      %2200 = vmatpush1.xpose.msra.mxu0 0.0
      %2201 = vmatprep.mubr.f32.mxu0 0.0
      %2202 = vmatmul.mubr.f32.gmra.mrb[0].mxu0 %v2129
      %v2203 = vpop.f32.mrb[0].mxu0
      %v2204 = vadd.f32 %v2126, %v2203
      %v2205 = vpop.f32.mrb[0].mxu0
      %2206 = vdwg.mxu0
      %vm2207 = vcmask 80896
      %v2208 = vsel %vm2207, %v2204, -inf
      %2209 = vmax.xlane.f32.xlu0 %v2208
      %v2210 = vpop.xlane.xlu0 %2209
      %v2211 = vsub.f32 %v2204, %v2210
      %v2212 = vmul.f32 %v2211, 1.442695
      %v2213 = vpow.pop %v2212
      %v2214 = vsel %vm2207, %v2213, 0.0
      %2215 = vadd.xlane.f32.xlu0 %v2214
      %v2216 = vpop.xlane.xlu0 %2215
      %v2217 = vrcp.pop %v2216
      %v2218 = vmul.f32 %v2213, %v2217
      %2219 = vrot.lane.b32.xlu0 %v2109, 96
      %v2220 = vpop.permute.xlu0 %2219
      %2221 = vrot.lane.b32.xlu0 %v2114, 96
      %v2222 = vpop.permute.xlu0 %2221
      %v2225 = vsel %vm2207, %v2218, 0
      %vm2227 = vcmask 1041408
      %v2228 = vsel %vm2227, %v2222, 0
      %2230 = vmatprep.subr.mxu0 0.0
      %2231 = vmatpush1.msra.mxu0 %v2220
      %2232 = vmatprep.subr.mxu0 0.0
      %2233 = vmatpush1.msra.mxu0 %v2228
      %2234 = vmatprep.subr.mxu0 0.0
      %2235 = vmatpush1.msra.mxu0 0.0
      %2236 = vmatprep.subr.mxu0 0.0
      %2237 = vmatpush1.msra.mxu0 0.0
      %2238 = vmatprep.subr.mxu0 0.0
      %2239 = vmatpush1.msra.mxu0 0.0
      %2240 = vmatprep.subr.mxu0 0.0
      %2241 = vmatpush1.msra.mxu0 0.0
      %2242 = vmatprep.subr.mxu0 0.0
      %2243 = vmatpush1.msra.mxu0 0.0
      %2244 = vmatprep.subr.mxu0 0.0
      %2245 = vmatpush1.msra.mxu0 0.0
      %2246 = vmatprep.subr.mxu0 0.0
      %2247 = vmatpush1.msra.mxu0 0.0
      %2248 = vmatprep.subr.mxu0 0.0
      %2249 = vmatpush1.msra.mxu0 0.0
      %2250 = vmatprep.subr.mxu0 0.0
      %2251 = vmatpush1.msra.mxu0 0.0
      %2252 = vmatprep.subr.mxu0 0.0
      %2253 = vmatpush1.msra.mxu0 0.0
      %2254 = vmatprep.subr.mxu0 0.0
      %2255 = vmatpush1.msra.mxu0 0.0
      %2256 = vmatprep.subr.mxu0 0.0
      %2257 = vmatpush1.msra.mxu0 0.0
      %2258 = vmatprep.subr.mxu0 0.0
      %2259 = vmatpush1.msra.mxu0 0.0
      %2260 = vmatprep.subr.mxu0 0.0
      %2261 = vmatpush1.msra.mxu0 0.0
      %2262 = vmatprep.subr.mxu0 0.0
      %2263 = vmatpush1.msra.mxu0 0.0
      %2264 = vmatprep.subr.mxu0 0.0
      %2265 = vmatpush1.msra.mxu0 0.0
      %2266 = vmatprep.subr.mxu0 0.0
      %2267 = vmatpush1.msra.mxu0 0.0
      %2268 = vmatprep.subr.mxu0 0.0
      %2269 = vmatpush1.msra.mxu0 0.0
      %2270 = vmatprep.subr.mxu0 0.0
      %2271 = vmatpush1.msra.mxu0 0.0
      %2272 = vmatprep.subr.mxu0 0.0
      %2273 = vmatpush1.msra.mxu0 0.0
      %2274 = vmatprep.subr.mxu0 0.0
      %2275 = vmatpush1.msra.mxu0 0.0
      %2276 = vmatprep.subr.mxu0 0.0
      %2277 = vmatpush1.msra.mxu0 0.0
      %2278 = vmatprep.subr.mxu0 0.0
      %2279 = vmatpush1.msra.mxu0 0.0
      %2280 = vmatprep.subr.mxu0 0.0
      %2281 = vmatpush1.msra.mxu0 0.0
      %2282 = vmatprep.subr.mxu0 0.0
      %2283 = vmatpush1.msra.mxu0 0.0
      %2284 = vmatprep.subr.mxu0 0.0
      %2285 = vmatpush1.msra.mxu0 0.0
      %2286 = vmatprep.subr.mxu0 0.0
      %2287 = vmatpush1.msra.mxu0 0.0
      %2288 = vmatprep.subr.mxu0 0.0
      %2289 = vmatpush1.msra.mxu0 0.0
      %2290 = vmatprep.subr.mxu0 0.0
      %2291 = vmatpush1.msra.mxu0 0.0
      %2292 = vmatprep.subr.mxu0 0.0
      %2293 = vmatpush1.msra.mxu0 0.0
      %2294 = vmatprep.mubr.f32.mxu0 0.0
      %2295 = vmatmul.mubr.f32.gmra.mrb[0].mxu0 %v2225
      %v2296 = vpop.f32.mrb[0].mxu0
      %v2297 = vadd.f32 0.0, %v2296
      %v2298 = vpop.f32.mrb[0].mxu0
      %2299 = vdwg.mxu0
      %2300 = vst.msk [vmem:[#allocation3] sm:$0xff] %vm1153, %v2297
      %2301 = vrot.lane.b32.xlu0 %v2022, 120
      %v2302 = vpop.permute.xlu0 %2301
      %2303 = vrot.lane.b32.xlu0 %v2109, 120
      %v2304 = vpop.permute.xlu0 %2303
      %2305 = vrot.lane.b32.xlu0 %v2114, 120
      %v2306 = vpop.permute.xlu0 %2305
      %v2307 = vsel %vm1153, %v2302, 0
      %v2309 = vsel %vm1153, %v2304, 0
      %v2311 = vsel %vm1153, %v2306, 0
      %2313 = vmatprep.subr.mxu0 0.0
      %2314 = vmatpush1.xpose.msra.mxu0 %v2309
      %2315 = vmatprep.subr.mxu0 0.0
      %2316 = vmatpush1.xpose.msra.mxu0 %v2311
      %2317 = vmatprep.subr.mxu0 0.0
      %2318 = vmatpush1.xpose.msra.mxu0 0.0
      %2319 = vmatprep.subr.mxu0 0.0
      %2320 = vmatpush1.xpose.msra.mxu0 0.0
      %2321 = vmatprep.subr.mxu0 0.0
      %2322 = vmatpush1.xpose.msra.mxu0 0.0
      %2323 = vmatprep.subr.mxu0 0.0
      %2324 = vmatpush1.xpose.msra.mxu0 0.0
      %2325 = vmatprep.subr.mxu0 0.0
      %2326 = vmatpush1.xpose.msra.mxu0 0.0
      %2327 = vmatprep.subr.mxu0 0.0
      %2328 = vmatpush1.xpose.msra.mxu0 0.0
      %2329 = vmatprep.subr.mxu0 0.0
      %2330 = vmatpush1.xpose.msra.mxu0 0.0
      %2331 = vmatprep.subr.mxu0 0.0
      %2332 = vmatpush1.xpose.msra.mxu0 0.0
      %2333 = vmatprep.subr.mxu0 0.0
      %2334 = vmatpush1.xpose.msra.mxu0 0.0
      %2335 = vmatprep.subr.mxu0 0.0
      %2336 = vmatpush1.xpose.msra.mxu0 0.0
      %2337 = vmatprep.subr.mxu0 0.0
      %2338 = vmatpush1.xpose.msra.mxu0 0.0
      %2339 = vmatprep.subr.mxu0 0.0
      %2340 = vmatpush1.xpose.msra.mxu0 0.0
      %2341 = vmatprep.subr.mxu0 0.0
      %2342 = vmatpush1.xpose.msra.mxu0 0.0
      %2343 = vmatprep.subr.mxu0 0.0
      %2344 = vmatpush1.xpose.msra.mxu0 0.0
      %2345 = vmatprep.subr.mxu0 0.0
      %2346 = vmatpush1.xpose.msra.mxu0 0.0
      %2347 = vmatprep.subr.mxu0 0.0
      %2348 = vmatpush1.xpose.msra.mxu0 0.0
      %2349 = vmatprep.subr.mxu0 0.0
      %2350 = vmatpush1.xpose.msra.mxu0 0.0
      %2351 = vmatprep.subr.mxu0 0.0
      %2352 = vmatpush1.xpose.msra.mxu0 0.0
      %2353 = vmatprep.subr.mxu0 0.0
      %2354 = vmatpush1.xpose.msra.mxu0 0.0
      %2355 = vmatprep.subr.mxu0 0.0
      %2356 = vmatpush1.xpose.msra.mxu0 0.0
      %2357 = vmatprep.subr.mxu0 0.0
      %2358 = vmatpush1.xpose.msra.mxu0 0.0
      %2359 = vmatprep.subr.mxu0 0.0
      %2360 = vmatpush1.xpose.msra.mxu0 0.0
      %2361 = vmatprep.subr.mxu0 0.0
      %2362 = vmatpush1.xpose.msra.mxu0 0.0
      %2363 = vmatprep.subr.mxu0 0.0
      %2364 = vmatpush1.xpose.msra.mxu0 0.0
      %2365 = vmatprep.subr.mxu0 0.0
      %2366 = vmatpush1.xpose.msra.mxu0 0.0
      %2367 = vmatprep.subr.mxu0 0.0
      %2368 = vmatpush1.xpose.msra.mxu0 0.0
      %2369 = vmatprep.subr.mxu0 0.0
      %2370 = vmatpush1.xpose.msra.mxu0 0.0
      %2371 = vmatprep.subr.mxu0 0.0
      %2372 = vmatpush1.xpose.msra.mxu0 0.0
      %2373 = vmatprep.subr.mxu0 0.0
      %2374 = vmatpush1.xpose.msra.mxu0 0.0
      %2375 = vmatprep.subr.mxu0 0.0
      %2376 = vmatpush1.xpose.msra.mxu0 0.0
      %2377 = vmatprep.mubr.f32.mxu0 0.0
      %2378 = vmatmul.mubr.f32.gmra.mrb[0].mxu0 %v2307
      %v2379 = vpop.f32.mrb[0].mxu0
      %v2380 = vadd.f32 %v2126, %v2379
      %v2381 = vpop.f32.mrb[0].mxu0
      %2382 = vdwg.mxu0
      %v2383 = vsel %vm2207, %v2380, -inf
      %2384 = vmax.xlane.f32.xlu0 %v2383
      %v2385 = vpop.xlane.xlu0 %2384
      %v2386 = vsub.f32 %v2380, %v2385
      %v2387 = vmul.f32 %v2386, 1.442695
      %v2388 = vpow.pop %v2387
      %v2389 = vsel %vm2207, %v2388, 0.0
      %2390 = vadd.xlane.f32.xlu0 %v2389
      %v2391 = vpop.xlane.xlu0 %2390
      %v2392 = vrcp.pop %v2391
      %v2393 = vmul.f32 %v2388, %v2392
      %2394 = vrot.lane.b32.xlu0 %v2109, 88
      %v2395 = vpop.permute.xlu0 %2394
      %2396 = vrot.lane.b32.xlu0 %v2114, 88
      %v2397 = vpop.permute.xlu0 %2396
      %v2400 = vsel %vm2207, %v2393, 0
      %v2402 = vsel %vm2227, %v2397, 0
      %2404 = vmatprep.subr.mxu0 0.0
      %2405 = vmatpush1.msra.mxu0 %v2395
      %2406 = vmatprep.subr.mxu0 0.0
      %2407 = vmatpush1.msra.mxu0 %v2402
      %2408 = vmatprep.subr.mxu0 0.0
      %2409 = vmatpush1.msra.mxu0 0.0
      %2410 = vmatprep.subr.mxu0 0.0
      %2411 = vmatpush1.msra.mxu0 0.0
      %2412 = vmatprep.subr.mxu0 0.0
      %2413 = vmatpush1.msra.mxu0 0.0
      %2414 = vmatprep.subr.mxu0 0.0
      %2415 = vmatpush1.msra.mxu0 0.0
      %2416 = vmatprep.subr.mxu0 0.0
      %2417 = vmatpush1.msra.mxu0 0.0
      %2418 = vmatprep.subr.mxu0 0.0
      %2419 = vmatpush1.msra.mxu0 0.0
      %2420 = vmatprep.subr.mxu0 0.0
      %2421 = vmatpush1.msra.mxu0 0.0
      %2422 = vmatprep.subr.mxu0 0.0
      %2423 = vmatpush1.msra.mxu0 0.0
      %2424 = vmatprep.subr.mxu0 0.0
      %2425 = vmatpush1.msra.mxu0 0.0
      %2426 = vmatprep.subr.mxu0 0.0
      %2427 = vmatpush1.msra.mxu0 0.0
      %2428 = vmatprep.subr.mxu0 0.0
      %2429 = vmatpush1.msra.mxu0 0.0
      %2430 = vmatprep.subr.mxu0 0.0
      %2431 = vmatpush1.msra.mxu0 0.0
      %2432 = vmatprep.subr.mxu0 0.0
      %2433 = vmatpush1.msra.mxu0 0.0
      %2434 = vmatprep.subr.mxu0 0.0
      %2435 = vmatpush1.msra.mxu0 0.0
      %2436 = vmatprep.subr.mxu0 0.0
      %2437 = vmatpush1.msra.mxu0 0.0
      %2438 = vmatprep.subr.mxu0 0.0
      %2439 = vmatpush1.msra.mxu0 0.0
      %2440 = vmatprep.subr.mxu0 0.0
      %2441 = vmatpush1.msra.mxu0 0.0
      %2442 = vmatprep.subr.mxu0 0.0
      %2443 = vmatpush1.msra.mxu0 0.0
      %2444 = vmatprep.subr.mxu0 0.0
      %2445 = vmatpush1.msra.mxu0 0.0
      %2446 = vmatprep.subr.mxu0 0.0
      %2447 = vmatpush1.msra.mxu0 0.0
      %2448 = vmatprep.subr.mxu0 0.0
      %2449 = vmatpush1.msra.mxu0 0.0
      %2450 = vmatprep.subr.mxu0 0.0
      %2451 = vmatpush1.msra.mxu0 0.0
      %2452 = vmatprep.subr.mxu0 0.0
      %2453 = vmatpush1.msra.mxu0 0.0
      %2454 = vmatprep.subr.mxu0 0.0
      %2455 = vmatpush1.msra.mxu0 0.0
      %2456 = vmatprep.subr.mxu0 0.0
      %2457 = vmatpush1.msra.mxu0 0.0
      %2458 = vmatprep.subr.mxu0 0.0
      %2459 = vmatpush1.msra.mxu0 0.0
      %2460 = vmatprep.subr.mxu0 0.0
      %2461 = vmatpush1.msra.mxu0 0.0
      %2462 = vmatprep.subr.mxu0 0.0
      %2463 = vmatpush1.msra.mxu0 0.0
      %2464 = vmatprep.subr.mxu0 0.0
      %2465 = vmatpush1.msra.mxu0 0.0
      %2466 = vmatprep.subr.mxu0 0.0
      %2467 = vmatpush1.msra.mxu0 0.0
      %2468 = vmatprep.mubr.f32.mxu0 0.0
      %2469 = vmatmul.mubr.f32.gmra.mrb[0].mxu0 %v2400
      %v2470 = vpop.f32.mrb[0].mxu0
      %v2471 = vadd.f32 0.0, %v2470
      %v2472 = vpop.f32.mrb[0].mxu0
      %2473 = vdwg.mxu0
      %2475 = vrot.lane.b32.xlu0 %v2471, 8
      %v2476 = vpop.permute.xlu0 %2475
      %2478 = vst.msk [vmem:[#allocation3] sm:$0xff] %vm1485, %v2476
      %2479 = vrot.lane.b32.xlu0 %v2022, 112
      %v2480 = vpop.permute.xlu0 %2479
      %2481 = vrot.lane.b32.xlu0 %v2109, 112
      %v2482 = vpop.permute.xlu0 %2481
      %2483 = vrot.lane.b32.xlu0 %v2114, 112
      %v2484 = vpop.permute.xlu0 %2483
      %v2485 = vsel %vm1153, %v2480, 0
      %v2487 = vsel %vm1153, %v2482, 0
      %v2489 = vsel %vm1153, %v2484, 0
      %2491 = vmatprep.subr.mxu0 0.0
      %2492 = vmatpush1.xpose.msra.mxu0 %v2487
      %2493 = vmatprep.subr.mxu0 0.0
      %2494 = vmatpush1.xpose.msra.mxu0 %v2489
      %2495 = vmatprep.subr.mxu0 0.0
      %2496 = vmatpush1.xpose.msra.mxu0 0.0
      %2497 = vmatprep.subr.mxu0 0.0
      %2498 = vmatpush1.xpose.msra.mxu0 0.0
      %2499 = vmatprep.subr.mxu0 0.0
      %2500 = vmatpush1.xpose.msra.mxu0 0.0
      %2501 = vmatprep.subr.mxu0 0.0
      %2502 = vmatpush1.xpose.msra.mxu0 0.0
      %2503 = vmatprep.subr.mxu0 0.0
      %2504 = vmatpush1.xpose.msra.mxu0 0.0
      %2505 = vmatprep.subr.mxu0 0.0
      %2506 = vmatpush1.xpose.msra.mxu0 0.0
      %2507 = vmatprep.subr.mxu0 0.0
      %2508 = vmatpush1.xpose.msra.mxu0 0.0
      %2509 = vmatprep.subr.mxu0 0.0
      %2510 = vmatpush1.xpose.msra.mxu0 0.0
      %2511 = vmatprep.subr.mxu0 0.0
      %2512 = vmatpush1.xpose.msra.mxu0 0.0
      %2513 = vmatprep.subr.mxu0 0.0
      %2514 = vmatpush1.xpose.msra.mxu0 0.0
      %2515 = vmatprep.subr.mxu0 0.0
      %2516 = vmatpush1.xpose.msra.mxu0 0.0
      %2517 = vmatprep.subr.mxu0 0.0
      %2518 = vmatpush1.xpose.msra.mxu0 0.0
      %2519 = vmatprep.subr.mxu0 0.0
      %2520 = vmatpush1.xpose.msra.mxu0 0.0
      %2521 = vmatprep.subr.mxu0 0.0
      %2522 = vmatpush1.xpose.msra.mxu0 0.0
      %2523 = vmatprep.subr.mxu0 0.0
      %2524 = vmatpush1.xpose.msra.mxu0 0.0
      %2525 = vmatprep.subr.mxu0 0.0
      %2526 = vmatpush1.xpose.msra.mxu0 0.0
      %2527 = vmatprep.subr.mxu0 0.0
      %2528 = vmatpush1.xpose.msra.mxu0 0.0
      %2529 = vmatprep.subr.mxu0 0.0
      %2530 = vmatpush1.xpose.msra.mxu0 0.0
      %2531 = vmatprep.subr.mxu0 0.0
      %2532 = vmatpush1.xpose.msra.mxu0 0.0
      %2533 = vmatprep.subr.mxu0 0.0
      %2534 = vmatpush1.xpose.msra.mxu0 0.0
      %2535 = vmatprep.subr.mxu0 0.0
      %2536 = vmatpush1.xpose.msra.mxu0 0.0
      %2537 = vmatprep.subr.mxu0 0.0
      %2538 = vmatpush1.xpose.msra.mxu0 0.0
      %2539 = vmatprep.subr.mxu0 0.0
      %2540 = vmatpush1.xpose.msra.mxu0 0.0
      %2541 = vmatprep.subr.mxu0 0.0
      %2542 = vmatpush1.xpose.msra.mxu0 0.0
      %2543 = vmatprep.subr.mxu0 0.0
      %2544 = vmatpush1.xpose.msra.mxu0 0.0
      %2545 = vmatprep.subr.mxu0 0.0
      %2546 = vmatpush1.xpose.msra.mxu0 0.0
      %2547 = vmatprep.subr.mxu0 0.0
      %2548 = vmatpush1.xpose.msra.mxu0 0.0
      %2549 = vmatprep.subr.mxu0 0.0
      %2550 = vmatpush1.xpose.msra.mxu0 0.0
      %2551 = vmatprep.subr.mxu0 0.0
      %2552 = vmatpush1.xpose.msra.mxu0 0.0
      %2553 = vmatprep.subr.mxu0 0.0
      %2554 = vmatpush1.xpose.msra.mxu0 0.0
      %2555 = vmatprep.mubr.f32.mxu0 0.0
      %2556 = vmatmul.mubr.f32.gmra.mrb[0].mxu0 %v2485
      %v2557 = vpop.f32.mrb[0].mxu0
      %v2558 = vadd.f32 %v2126, %v2557
      %v2559 = vpop.f32.mrb[0].mxu0
      %2560 = vdwg.mxu0
      %v2561 = vsel %vm2207, %v2558, -inf
      %2562 = vmax.xlane.f32.xlu0 %v2561
      %v2563 = vpop.xlane.xlu0 %2562
      %v2564 = vsub.f32 %v2558, %v2563
      %v2565 = vmul.f32 %v2564, 1.442695
      %v2566 = vpow.pop %v2565
      %v2567 = vsel %vm2207, %v2566, 0.0
      %2568 = vadd.xlane.f32.xlu0 %v2567
      %v2569 = vpop.xlane.xlu0 %2568
      %v2570 = vrcp.pop %v2569
      %v2571 = vmul.f32 %v2566, %v2570
      %2572 = vrot.lane.b32.xlu0 %v2109, 80
      %v2573 = vpop.permute.xlu0 %2572
      %2574 = vrot.lane.b32.xlu0 %v2114, 80
      %v2575 = vpop.permute.xlu0 %2574
      %v2578 = vsel %vm2207, %v2571, 0
      %v2580 = vsel %vm2227, %v2575, 0
      %2582 = vmatprep.subr.mxu0 0.0
      %2583 = vmatpush1.msra.mxu0 %v2573
      %2584 = vmatprep.subr.mxu0 0.0
      %2585 = vmatpush1.msra.mxu0 %v2580
      %2586 = vmatprep.subr.mxu0 0.0
      %2587 = vmatpush1.msra.mxu0 0.0
      %2588 = vmatprep.subr.mxu0 0.0
      %2589 = vmatpush1.msra.mxu0 0.0
      %2590 = vmatprep.subr.mxu0 0.0
      %2591 = vmatpush1.msra.mxu0 0.0
      %2592 = vmatprep.subr.mxu0 0.0
      %2593 = vmatpush1.msra.mxu0 0.0
      %2594 = vmatprep.subr.mxu0 0.0
      %2595 = vmatpush1.msra.mxu0 0.0
      %2596 = vmatprep.subr.mxu0 0.0
      %2597 = vmatpush1.msra.mxu0 0.0
      %2598 = vmatprep.subr.mxu0 0.0
      %2599 = vmatpush1.msra.mxu0 0.0
      %2600 = vmatprep.subr.mxu0 0.0
      %2601 = vmatpush1.msra.mxu0 0.0
      %2602 = vmatprep.subr.mxu0 0.0
      %2603 = vmatpush1.msra.mxu0 0.0
      %2604 = vmatprep.subr.mxu0 0.0
      %2605 = vmatpush1.msra.mxu0 0.0
      %2606 = vmatprep.subr.mxu0 0.0
      %2607 = vmatpush1.msra.mxu0 0.0
      %2608 = vmatprep.subr.mxu0 0.0
      %2609 = vmatpush1.msra.mxu0 0.0
      %2610 = vmatprep.subr.mxu0 0.0
      %2611 = vmatpush1.msra.mxu0 0.0
      %2612 = vmatprep.subr.mxu0 0.0
      %2613 = vmatpush1.msra.mxu0 0.0
      %2614 = vmatprep.subr.mxu0 0.0
      %2615 = vmatpush1.msra.mxu0 0.0
      %2616 = vmatprep.subr.mxu0 0.0
      %2617 = vmatpush1.msra.mxu0 0.0
      %2618 = vmatprep.subr.mxu0 0.0
      %2619 = vmatpush1.msra.mxu0 0.0
      %2620 = vmatprep.subr.mxu0 0.0
      %2621 = vmatpush1.msra.mxu0 0.0
      %2622 = vmatprep.subr.mxu0 0.0
      %2623 = vmatpush1.msra.mxu0 0.0
      %2624 = vmatprep.subr.mxu0 0.0
      %2625 = vmatpush1.msra.mxu0 0.0
      %2626 = vmatprep.subr.mxu0 0.0
      %2627 = vmatpush1.msra.mxu0 0.0
      %2628 = vmatprep.subr.mxu0 0.0
      %2629 = vmatpush1.msra.mxu0 0.0
      %2630 = vmatprep.subr.mxu0 0.0
      %2631 = vmatpush1.msra.mxu0 0.0
      %2632 = vmatprep.subr.mxu0 0.0
      %2633 = vmatpush1.msra.mxu0 0.0
      %2634 = vmatprep.subr.mxu0 0.0
      %2635 = vmatpush1.msra.mxu0 0.0
      %2636 = vmatprep.subr.mxu0 0.0
      %2637 = vmatpush1.msra.mxu0 0.0
      %2638 = vmatprep.subr.mxu0 0.0
      %2639 = vmatpush1.msra.mxu0 0.0
      %2640 = vmatprep.subr.mxu0 0.0
      %2641 = vmatpush1.msra.mxu0 0.0
      %2642 = vmatprep.subr.mxu0 0.0
      %2643 = vmatpush1.msra.mxu0 0.0
      %2644 = vmatprep.subr.mxu0 0.0
      %2645 = vmatpush1.msra.mxu0 0.0
      %2646 = vmatprep.mubr.f32.mxu0 0.0
      %2647 = vmatmul.mubr.f32.gmra.mrb[0].mxu0 %v2578
      %v2648 = vpop.f32.mrb[0].mxu0
      %v2649 = vadd.f32 0.0, %v2648
      %v2650 = vpop.f32.mrb[0].mxu0
      %2651 = vdwg.mxu0
      %2653 = vrot.lane.b32.xlu0 %v2649, 16
      %v2654 = vpop.permute.xlu0 %2653
      %2656 = vst.msk [vmem:[#allocation3] sm:$0xff] %vm1656, %v2654
      %2657 = vrot.lane.b32.xlu0 %v2022, 104
      %v2658 = vpop.permute.xlu0 %2657
      %2659 = vrot.lane.b32.xlu0 %v2109, 104
      %v2660 = vpop.permute.xlu0 %2659
      %2661 = vrot.lane.b32.xlu0 %v2114, 104
      %v2662 = vpop.permute.xlu0 %2661
      %v2663 = vsel %vm1153, %v2658, 0
      %v2665 = vsel %vm1153, %v2660, 0
      %v2667 = vsel %vm1153, %v2662, 0
      %2669 = vmatprep.subr.mxu0 0.0
      %2670 = vmatpush1.xpose.msra.mxu0 %v2665
      %2671 = vmatprep.subr.mxu0 0.0
      %2672 = vmatpush1.xpose.msra.mxu0 %v2667
      %2673 = vmatprep.subr.mxu0 0.0
      %2674 = vmatpush1.xpose.msra.mxu0 0.0
      %2675 = vmatprep.subr.mxu0 0.0
      %2676 = vmatpush1.xpose.msra.mxu0 0.0
      %2677 = vmatprep.subr.mxu0 0.0
      %2678 = vmatpush1.xpose.msra.mxu0 0.0
      %2679 = vmatprep.subr.mxu0 0.0
      %2680 = vmatpush1.xpose.msra.mxu0 0.0
      %2681 = vmatprep.subr.mxu0 0.0
      %2682 = vmatpush1.xpose.msra.mxu0 0.0
      %2683 = vmatprep.subr.mxu0 0.0
      %2684 = vmatpush1.xpose.msra.mxu0 0.0
      %2685 = vmatprep.subr.mxu0 0.0
      %2686 = vmatpush1.xpose.msra.mxu0 0.0
      %2687 = vmatprep.subr.mxu0 0.0
      %2688 = vmatpush1.xpose.msra.mxu0 0.0
      %2689 = vmatprep.subr.mxu0 0.0
      %2690 = vmatpush1.xpose.msra.mxu0 0.0
      %2691 = vmatprep.subr.mxu0 0.0
      %2692 = vmatpush1.xpose.msra.mxu0 0.0
      %2693 = vmatprep.subr.mxu0 0.0
      %2694 = vmatpush1.xpose.msra.mxu0 0.0
      %2695 = vmatprep.subr.mxu0 0.0
      %2696 = vmatpush1.xpose.msra.mxu0 0.0
      %2697 = vmatprep.subr.mxu0 0.0
      %2698 = vmatpush1.xpose.msra.mxu0 0.0
      %2699 = vmatprep.subr.mxu0 0.0
      %2700 = vmatpush1.xpose.msra.mxu0 0.0
      %2701 = vmatprep.subr.mxu0 0.0
      %2702 = vmatpush1.xpose.msra.mxu0 0.0
      %2703 = vmatprep.subr.mxu0 0.0
      %2704 = vmatpush1.xpose.msra.mxu0 0.0
      %2705 = vmatprep.subr.mxu0 0.0
      %2706 = vmatpush1.xpose.msra.mxu0 0.0
      %2707 = vmatprep.subr.mxu0 0.0
      %2708 = vmatpush1.xpose.msra.mxu0 0.0
      %2709 = vmatprep.subr.mxu0 0.0
      %2710 = vmatpush1.xpose.msra.mxu0 0.0
      %2711 = vmatprep.subr.mxu0 0.0
      %2712 = vmatpush1.xpose.msra.mxu0 0.0
      %2713 = vmatprep.subr.mxu0 0.0
      %2714 = vmatpush1.xpose.msra.mxu0 0.0
      %2715 = vmatprep.subr.mxu0 0.0
      %2716 = vmatpush1.xpose.msra.mxu0 0.0
      %2717 = vmatprep.subr.mxu0 0.0
      %2718 = vmatpush1.xpose.msra.mxu0 0.0
      %2719 = vmatprep.subr.mxu0 0.0
      %2720 = vmatpush1.xpose.msra.mxu0 0.0
      %2721 = vmatprep.subr.mxu0 0.0
      %2722 = vmatpush1.xpose.msra.mxu0 0.0
      %2723 = vmatprep.subr.mxu0 0.0
      %2724 = vmatpush1.xpose.msra.mxu0 0.0
      %2725 = vmatprep.subr.mxu0 0.0
      %2726 = vmatpush1.xpose.msra.mxu0 0.0
      %2727 = vmatprep.subr.mxu0 0.0
      %2728 = vmatpush1.xpose.msra.mxu0 0.0
      %2729 = vmatprep.subr.mxu0 0.0
      %2730 = vmatpush1.xpose.msra.mxu0 0.0
      %2731 = vmatprep.subr.mxu0 0.0
      %2732 = vmatpush1.xpose.msra.mxu0 0.0
      %2733 = vmatprep.mubr.f32.mxu0 0.0
      %2734 = vmatmul.mubr.f32.gmra.mrb[0].mxu0 %v2663
      %v2735 = vpop.f32.mrb[0].mxu0
      %v2736 = vadd.f32 %v2126, %v2735
      %v2737 = vpop.f32.mrb[0].mxu0
      %2738 = vdwg.mxu0
      %v2739 = vsel %vm2207, %v2736, -inf
      %2740 = vmax.xlane.f32.xlu0 %v2739
      %v2741 = vpop.xlane.xlu0 %2740
      %v2742 = vsub.f32 %v2736, %v2741
      %v2743 = vmul.f32 %v2742, 1.442695
      %v2744 = vpow.pop %v2743
      %v2745 = vsel %vm2207, %v2744, 0.0
      %2746 = vadd.xlane.f32.xlu0 %v2745
      %v2747 = vpop.xlane.xlu0 %2746
      %v2748 = vrcp.pop %v2747
      %v2749 = vmul.f32 %v2744, %v2748
      %2750 = vrot.lane.b32.xlu0 %v2109, 72
      %v2751 = vpop.permute.xlu0 %2750
      %2752 = vrot.lane.b32.xlu0 %v2114, 72
      %v2753 = vpop.permute.xlu0 %2752
      %v2756 = vsel %vm2207, %v2749, 0
      %v2758 = vsel %vm2227, %v2753, 0
      %2760 = vmatprep.subr.mxu0 0.0
      %2761 = vmatpush1.msra.mxu0 %v2751
      %2762 = vmatprep.subr.mxu0 0.0
      %2763 = vmatpush1.msra.mxu0 %v2758
      %2764 = vmatprep.subr.mxu0 0.0
      %2765 = vmatpush1.msra.mxu0 0.0
      %2766 = vmatprep.subr.mxu0 0.0
      %2767 = vmatpush1.msra.mxu0 0.0
      %2768 = vmatprep.subr.mxu0 0.0
      %2769 = vmatpush1.msra.mxu0 0.0
      %2770 = vmatprep.subr.mxu0 0.0
      %2771 = vmatpush1.msra.mxu0 0.0
      %2772 = vmatprep.subr.mxu0 0.0
      %2773 = vmatpush1.msra.mxu0 0.0
      %2774 = vmatprep.subr.mxu0 0.0
      %2775 = vmatpush1.msra.mxu0 0.0
      %2776 = vmatprep.subr.mxu0 0.0
      %2777 = vmatpush1.msra.mxu0 0.0
      %2778 = vmatprep.subr.mxu0 0.0
      %2779 = vmatpush1.msra.mxu0 0.0
      %2780 = vmatprep.subr.mxu0 0.0
      %2781 = vmatpush1.msra.mxu0 0.0
      %2782 = vmatprep.subr.mxu0 0.0
      %2783 = vmatpush1.msra.mxu0 0.0
      %2784 = vmatprep.subr.mxu0 0.0
      %2785 = vmatpush1.msra.mxu0 0.0
      %2786 = vmatprep.subr.mxu0 0.0
      %2787 = vmatpush1.msra.mxu0 0.0
      %2788 = vmatprep.subr.mxu0 0.0
      %2789 = vmatpush1.msra.mxu0 0.0
      %2790 = vmatprep.subr.mxu0 0.0
      %2791 = vmatpush1.msra.mxu0 0.0
      %2792 = vmatprep.subr.mxu0 0.0
      %2793 = vmatpush1.msra.mxu0 0.0
      %2794 = vmatprep.subr.mxu0 0.0
      %2795 = vmatpush1.msra.mxu0 0.0
      %2796 = vmatprep.subr.mxu0 0.0
      %2797 = vmatpush1.msra.mxu0 0.0
      %2798 = vmatprep.subr.mxu0 0.0
      %2799 = vmatpush1.msra.mxu0 0.0
      %2800 = vmatprep.subr.mxu0 0.0
      %2801 = vmatpush1.msra.mxu0 0.0
      %2802 = vmatprep.subr.mxu0 0.0
      %2803 = vmatpush1.msra.mxu0 0.0
      %2804 = vmatprep.subr.mxu0 0.0
      %2805 = vmatpush1.msra.mxu0 0.0
      %2806 = vmatprep.subr.mxu0 0.0
      %2807 = vmatpush1.msra.mxu0 0.0
      %2808 = vmatprep.subr.mxu0 0.0
      %2809 = vmatpush1.msra.mxu0 0.0
      %2810 = vmatprep.subr.mxu0 0.0
      %2811 = vmatpush1.msra.mxu0 0.0
      %2812 = vmatprep.subr.mxu0 0.0
      %2813 = vmatpush1.msra.mxu0 0.0
      %2814 = vmatprep.subr.mxu0 0.0
      %2815 = vmatpush1.msra.mxu0 0.0
      %2816 = vmatprep.subr.mxu0 0.0
      %2817 = vmatpush1.msra.mxu0 0.0
      %2818 = vmatprep.subr.mxu0 0.0
      %2819 = vmatpush1.msra.mxu0 0.0
      %2820 = vmatprep.subr.mxu0 0.0
      %2821 = vmatpush1.msra.mxu0 0.0
      %2822 = vmatprep.subr.mxu0 0.0
      %2823 = vmatpush1.msra.mxu0 0.0
      %2824 = vmatprep.mubr.f32.mxu0 0.0
      %2825 = vmatmul.mubr.f32.gmra.mrb[0].mxu0 %v2756
      %v2826 = vpop.f32.mrb[0].mxu0
      %v2827 = vadd.f32 0.0, %v2826
      %v2828 = vpop.f32.mrb[0].mxu0
      %2829 = vdwg.mxu0
      %2831 = vrot.lane.b32.xlu0 %v2827, 24
      %v2832 = vpop.permute.xlu0 %2831
      %2834 = vst.msk [vmem:[#allocation3] sm:$0xff] %vm1827, %v2832
      %v2835 = vld [vmem:[#allocation3] sm:$0xff]
      %v2837 = vlaneseq
      %v2838 = vshrl.u32 %v2837, 7
      %v2839 = vsub.s32 0, %v2838
      %v2840 = vrot.slane %v2121, %v2839
      %v2843 = vsel %vm1032, %v2835, 0
      %2845 = vmatprep.subr.mxu0 0.0
      %2846 = vmatpush1.msra.mxu0 %v2117
      %2847 = vmatprep.subr.mxu0 0.0
      %2848 = vmatpush1.msra.mxu0 %v2118
      %2849 = vmatprep.subr.mxu0 0.0
      %2850 = vmatpush1.msra.mxu0 %v2119
      %2851 = vmatprep.subr.mxu0 0.0
      %2852 = vmatpush1.msra.mxu0 %v2120
      %2853 = vmatprep.subr.mxu0 0.0
      %2854 = vmatpush1.msra.mxu0 0.0
      %2855 = vmatprep.subr.mxu0 0.0
      %2856 = vmatpush1.msra.mxu0 0.0
      %2857 = vmatprep.subr.mxu0 0.0
      %2858 = vmatpush1.msra.mxu0 0.0
      %2859 = vmatprep.subr.mxu0 0.0
      %2860 = vmatpush1.msra.mxu0 0.0
      %2861 = vmatprep.subr.mxu0 0.0
      %2862 = vmatpush1.msra.mxu0 0.0
      %2863 = vmatprep.subr.mxu0 0.0
      %2864 = vmatpush1.msra.mxu0 0.0
      %2865 = vmatprep.subr.mxu0 0.0
      %2866 = vmatpush1.msra.mxu0 0.0
      %2867 = vmatprep.subr.mxu0 0.0
      %2868 = vmatpush1.msra.mxu0 0.0
      %2869 = vmatprep.subr.mxu0 0.0
      %2870 = vmatpush1.msra.mxu0 0.0
      %2871 = vmatprep.subr.mxu0 0.0
      %2872 = vmatpush1.msra.mxu0 0.0
      %2873 = vmatprep.subr.mxu0 0.0
      %2874 = vmatpush1.msra.mxu0 0.0
      %2875 = vmatprep.subr.mxu0 0.0
      %2876 = vmatpush1.msra.mxu0 0.0
      %2877 = vmatprep.subr.mxu0 0.0
      %2878 = vmatpush1.msra.mxu0 0.0
      %2879 = vmatprep.subr.mxu0 0.0
      %2880 = vmatpush1.msra.mxu0 0.0
      %2881 = vmatprep.subr.mxu0 0.0
      %2882 = vmatpush1.msra.mxu0 0.0
      %2883 = vmatprep.subr.mxu0 0.0
      %2884 = vmatpush1.msra.mxu0 0.0
      %2885 = vmatprep.subr.mxu0 0.0
      %2886 = vmatpush1.msra.mxu0 0.0
      %2887 = vmatprep.subr.mxu0 0.0
      %2888 = vmatpush1.msra.mxu0 0.0
      %2889 = vmatprep.subr.mxu0 0.0
      %2890 = vmatpush1.msra.mxu0 0.0
      %2891 = vmatprep.subr.mxu0 0.0
      %2892 = vmatpush1.msra.mxu0 0.0
      %2893 = vmatprep.subr.mxu0 0.0
      %2894 = vmatpush1.msra.mxu0 0.0
      %2895 = vmatprep.subr.mxu0 0.0
      %2896 = vmatpush1.msra.mxu0 0.0
      %2897 = vmatprep.subr.mxu0 0.0
      %2898 = vmatpush1.msra.mxu0 0.0
      %2899 = vmatprep.subr.mxu0 0.0
      %2900 = vmatpush1.msra.mxu0 0.0
      %2901 = vmatprep.subr.mxu0 0.0
      %2902 = vmatpush1.msra.mxu0 0.0
      %2903 = vmatprep.subr.mxu0 0.0
      %2904 = vmatpush1.msra.mxu0 0.0
      %2905 = vmatprep.subr.mxu0 0.0
      %2906 = vmatpush1.msra.mxu0 0.0
      %2907 = vmatprep.subr.mxu0 0.0
      %2908 = vmatpush1.msra.mxu0 0.0
      %2909 = vmatprep.mubr.f32.mxu0 0.0
      %2910 = vmatmul.mubr.f32.gmra.mrb[0].mxu0 %v2843
      %v2911 = vpop.f32.mrb[0].mxu0
      %v2912 = vadd.f32 %v2840, %v2911
      %v2913 = vpop.f32.mrb[0].mxu0
      %2914 = vdwg.mxu0
      %v2915 = vadd.f32 %v1909, %v2912
      %s2916 = scalar_lea.vmem %s937, 2
      %v2917 = vld [vmem:[%s2916] sm:$0x1]
      %s2918 = scalar_lea.vmem %s941, 2
      %v2919 = vld [vmem:[%s2918] sm:$0x1]
      %v2920 = vsel %vm1032, %v2915, 0.0
      %2921 = vadd.xlane.f32.xlu0 %v2920
      %v2922 = vpop.xlane.xlu0 %2921
      %v2923 = vmul.f32 %v2922, %v1036
      %v2924 = vsub.f32 %v2915, %v2923
      %v2925 = vmul.f32 %v2924, %v2924
      %v2926 = vsel %vm1032, %v2925, 0.0
      %2927 = vadd.xlane.f32.xlu0 %v2926
      %v2928 = vpop.xlane.xlu0 %2927
      %v2929 = vmul.f32 %v2928, %v1036
      %v2930 = vadd.f32 %v2929, 1e-05
      %v2931 = vrsqrt.pop %v2930
      %v2932 = vmul.f32 %v2924, %v2931
      %v2934 = vlaneseq
      %v2935 = vshrl.u32 %v2934, 7
      %v2936 = vsub.s32 0, %v2935
      %v2937 = vrot.slane %v2917, %v2936
      %v2939 = vmul.f32 %v2932, %v2937
      %v2941 = vlaneseq
      %v2942 = vshrl.u32 %v2941, 7
      %v2943 = vsub.s32 0, %v2942
      %v2944 = vrot.slane %v2919, %v2943
      %v2946 = vadd.f32 %v2939, %v2944
      %v2947 = vld [vmem:[%s986] sm:$0xff]
      %v2948 = vld [vmem:[%s986 + $0x8] sm:$0xff]
      %v2949 = vld [vmem:[%s986 + $0x10] sm:$0xff]
      %v2950 = vld [vmem:[%s986 + $0x18] sm:$0xff]
      %v2951 = vld [vmem:[%s989] sm:$0x1]
      %v2953 = vlaneseq
      %v2954 = vshrl.u32 %v2953, 7
      %v2955 = vsub.s32 0, %v2954
      %v2956 = vrot.slane %v2951, %v2955
      %v2959 = vsel %vm1032, %v2946, 0
      %2961 = vmatprep.subr.mxu0 0.0
      %2962 = vmatpush1.msra.mxu0 %v2947
      %2963 = vmatprep.subr.mxu0 0.0
      %2964 = vmatpush1.msra.mxu0 %v2948
      %2965 = vmatprep.subr.mxu0 0.0
      %2966 = vmatpush1.msra.mxu0 %v2949
      %2967 = vmatprep.subr.mxu0 0.0
      %2968 = vmatpush1.msra.mxu0 %v2950
      %2969 = vmatprep.subr.mxu0 0.0
      %2970 = vmatpush1.msra.mxu0 0.0
      %2971 = vmatprep.subr.mxu0 0.0
      %2972 = vmatpush1.msra.mxu0 0.0
      %2973 = vmatprep.subr.mxu0 0.0
      %2974 = vmatpush1.msra.mxu0 0.0
      %2975 = vmatprep.subr.mxu0 0.0
      %2976 = vmatpush1.msra.mxu0 0.0
      %2977 = vmatprep.subr.mxu0 0.0
      %2978 = vmatpush1.msra.mxu0 0.0
      %2979 = vmatprep.subr.mxu0 0.0
      %2980 = vmatpush1.msra.mxu0 0.0
      %2981 = vmatprep.subr.mxu0 0.0
      %2982 = vmatpush1.msra.mxu0 0.0
      %2983 = vmatprep.subr.mxu0 0.0
      %2984 = vmatpush1.msra.mxu0 0.0
      %2985 = vmatprep.subr.mxu0 0.0
      %2986 = vmatpush1.msra.mxu0 0.0
      %2987 = vmatprep.subr.mxu0 0.0
      %2988 = vmatpush1.msra.mxu0 0.0
      %2989 = vmatprep.subr.mxu0 0.0
      %2990 = vmatpush1.msra.mxu0 0.0
      %2991 = vmatprep.subr.mxu0 0.0
      %2992 = vmatpush1.msra.mxu0 0.0
      %2993 = vmatprep.subr.mxu0 0.0
      %2994 = vmatpush1.msra.mxu0 0.0
      %2995 = vmatprep.subr.mxu0 0.0
      %2996 = vmatpush1.msra.mxu0 0.0
      %2997 = vmatprep.subr.mxu0 0.0
      %2998 = vmatpush1.msra.mxu0 0.0
      %2999 = vmatprep.subr.mxu0 0.0
      %3000 = vmatpush1.msra.mxu0 0.0
      %3001 = vmatprep.subr.mxu0 0.0
      %3002 = vmatpush1.msra.mxu0 0.0
      %3003 = vmatprep.subr.mxu0 0.0
      %3004 = vmatpush1.msra.mxu0 0.0
      %3005 = vmatprep.subr.mxu0 0.0
      %3006 = vmatpush1.msra.mxu0 0.0
      %3007 = vmatprep.subr.mxu0 0.0
      %3008 = vmatpush1.msra.mxu0 0.0
      %3009 = vmatprep.subr.mxu0 0.0
      %3010 = vmatpush1.msra.mxu0 0.0
      %3011 = vmatprep.subr.mxu0 0.0
      %3012 = vmatpush1.msra.mxu0 0.0
      %3013 = vmatprep.subr.mxu0 0.0
      %3014 = vmatpush1.msra.mxu0 0.0
      %3015 = vmatprep.subr.mxu0 0.0
      %3016 = vmatpush1.msra.mxu0 0.0
      %3017 = vmatprep.subr.mxu0 0.0
      %3018 = vmatpush1.msra.mxu0 0.0
      %3019 = vmatprep.subr.mxu0 0.0
      %3020 = vmatpush1.msra.mxu0 0.0
      %3021 = vmatprep.subr.mxu0 0.0
      %3022 = vmatpush1.msra.mxu0 0.0
      %3023 = vmatprep.subr.mxu0 0.0
      %3024 = vmatpush1.msra.mxu0 0.0
      %3025 = vmatprep.mubr.f32.mxu0 0.0
      %3026 = vmatmul.mubr.f32.gmra.mrb[0].mxu0 %v2959
      %v3027 = vpop.f32.mrb[0].mxu0
      %v3028 = vadd.f32 %v2956, %v3027
      %v3029 = vpop.f32.mrb[0].mxu0
      %3030 = vdwg.mxu0
      %v3031 = vmax.f32 %v3028, 0.0
      %v3032 = vld [vmem:[%s994] sm:$0xff]
      %v3033 = vld [vmem:[%s994 + $0x8] sm:$0xff]
      %v3034 = vld [vmem:[%s994 + $0x10] sm:$0xff]
      %v3035 = vld [vmem:[%s994 + $0x18] sm:$0xff]
      %v3036 = vld [vmem:[%s994 + $0x20] sm:$0xff]
      %v3037 = vld [vmem:[%s994 + $0x28] sm:$0xff]
      %v3038 = vld [vmem:[%s994 + $0x30] sm:$0xff]
      %v3039 = vld [vmem:[%s994 + $0x38] sm:$0xff]
      %v3040 = vld [vmem:[%s994 + $0x40] sm:$0xff]
      %v3041 = vld [vmem:[%s994 + $0x48] sm:$0xff]
      %v3042 = vld [vmem:[%s994 + $0x50] sm:$0xff]
      %v3043 = vld [vmem:[%s994 + $0x58] sm:$0xff]
      %v3044 = vld [vmem:[%s994 + $0x60] sm:$0xff]
      %v3045 = vld [vmem:[%s994 + $0x68] sm:$0xff]
      %v3046 = vld [vmem:[%s994 + $0x70] sm:$0xff]
      %v3047 = vld [vmem:[%s994 + $0x78] sm:$0xff]
      %3048 = vmatprep.subr.mxu0 0.0
      %3049 = vmatpush1.msra.mxu0 %v3032
      %3050 = vmatprep.subr.mxu0 0.0
      %3051 = vmatpush1.msra.mxu0 %v3033
      %3052 = vmatprep.subr.mxu0 0.0
      %3053 = vmatpush1.msra.mxu0 %v3034
      %3054 = vmatprep.subr.mxu0 0.0
      %3055 = vmatpush1.msra.mxu0 %v3035
      %3056 = vmatprep.subr.mxu0 0.0
      %3057 = vmatpush1.msra.mxu0 %v3036
      %3058 = vmatprep.subr.mxu0 0.0
      %3059 = vmatpush1.msra.mxu0 %v3037
      %3060 = vmatprep.subr.mxu0 0.0
      %3061 = vmatpush1.msra.mxu0 %v3038
      %3062 = vmatprep.subr.mxu0 0.0
      %3063 = vmatpush1.msra.mxu0 %v3039
      %3064 = vmatprep.subr.mxu0 0.0
      %3065 = vmatpush1.msra.mxu0 %v3040
      %3066 = vmatprep.subr.mxu0 0.0
      %3067 = vmatpush1.msra.mxu0 %v3041
      %3068 = vmatprep.subr.mxu0 0.0
      %3069 = vmatpush1.msra.mxu0 %v3042
      %3070 = vmatprep.subr.mxu0 0.0
      %3071 = vmatpush1.msra.mxu0 %v3043
      %3072 = vmatprep.subr.mxu0 0.0
      %3073 = vmatpush1.msra.mxu0 %v3044
      %3074 = vmatprep.subr.mxu0 0.0
      %3075 = vmatpush1.msra.mxu0 %v3045
      %3076 = vmatprep.subr.mxu0 0.0
      %3077 = vmatpush1.msra.mxu0 %v3046
      %3078 = vmatprep.subr.mxu0 0.0
      %3079 = vmatpush1.msra.mxu0 %v3047
      %3080 = vmatprep.subr.mxu0 0.0
      %3081 = vmatpush1.msra.mxu0 0.0
      %3082 = vmatprep.subr.mxu0 0.0
      %3083 = vmatpush1.msra.mxu0 0.0
      %3084 = vmatprep.subr.mxu0 0.0
      %3085 = vmatpush1.msra.mxu0 0.0
      %3086 = vmatprep.subr.mxu0 0.0
      %3087 = vmatpush1.msra.mxu0 0.0
      %3088 = vmatprep.subr.mxu0 0.0
      %3089 = vmatpush1.msra.mxu0 0.0
      %3090 = vmatprep.subr.mxu0 0.0
      %3091 = vmatpush1.msra.mxu0 0.0
      %3092 = vmatprep.subr.mxu0 0.0
      %3093 = vmatpush1.msra.mxu0 0.0
      %3094 = vmatprep.subr.mxu0 0.0
      %3095 = vmatpush1.msra.mxu0 0.0
      %3096 = vmatprep.subr.mxu0 0.0
      %3097 = vmatpush1.msra.mxu0 0.0
      %3098 = vmatprep.subr.mxu0 0.0
      %3099 = vmatpush1.msra.mxu0 0.0
      %3100 = vmatprep.subr.mxu0 0.0
      %3101 = vmatpush1.msra.mxu0 0.0
      %3102 = vmatprep.subr.mxu0 0.0
      %3103 = vmatpush1.msra.mxu0 0.0
      %3104 = vmatprep.subr.mxu0 0.0
      %3105 = vmatpush1.msra.mxu0 0.0
      %3106 = vmatprep.subr.mxu0 0.0
      %3107 = vmatpush1.msra.mxu0 0.0
      %3108 = vmatprep.subr.mxu0 0.0
      %3109 = vmatpush1.msra.mxu0 0.0
      %3110 = vmatprep.subr.mxu0 0.0
      %3111 = vmatpush1.msra.mxu0 0.0
      %3112 = vmatprep.mubr.f32.mxu0 0.0
      %3113 = vmatmul.mubr.f32.gmra.mrb[0].mxu0 %v3031
      %v3114 = vpop.f32.mrb[0].mxu0
      %v3115 = vadd.f32 0.0, %v3114
      %v3116 = vpop.f32.mrb[0].mxu0
      %3117 = vdwg.mxu0
      %v3118 = vadd.f32 %v2915, %v3115
      %v3119 = vld [vmem:[%s997] sm:$0x1]
      %v3121 = vlaneseq
      %v3122 = vshrl.u32 %v3121, 7
      %v3123 = vsub.s32 0, %v3122
      %v3124 = vrot.slane %v3119, %v3123
      %v3126 = vadd.f32 %v3118, %v3124
      %3127 = vst.msk [vmem:[%s1016] sm:$0xff] %vm1032, %v3126
      %p3128 = scmp.eq.s32.totalorder %s37, 1
      // Predicated region
      $region113: #{decoder_forward.2} parent=107 // pred_check
        %p3129 = pneg %p3128
      $region114: #{decoder_forward.2} parent=107 // pred_check_branch
        %3131 = sbr.rel (%p3129) target = $region116
      $region115: #{decoder_forward.2} parent=107 // pred_region
        %v3132 = vld [vmem:[%s20] sm:$0x1]
        %v3133 = vld [vmem:[%s21] sm:$0x1]
        %v3134 = vsel %vm1032, %v3126, 0.0
        %3135 = vadd.xlane.f32.xlu0 %v3134
        %v3136 = vpop.xlane.xlu0 %3135
        %v3137 = vmul.f32 %v3136, %v1036
        %v3138 = vsub.f32 %v3126, %v3137
        %v3139 = vmul.f32 %v3138, %v3138
        %v3140 = vsel %vm1032, %v3139, 0.0
        %3141 = vadd.xlane.f32.xlu0 %v3140
        %v3142 = vpop.xlane.xlu0 %3141
        %v3143 = vmul.f32 %v3142, %v1036
        %v3144 = vadd.f32 %v3143, 1e-05
        %v3145 = vrsqrt.pop %v3144
        %v3146 = vmul.f32 %v3138, %v3145
        %v3148 = vlaneseq
        %v3149 = vshrl.u32 %v3148, 7
        %v3150 = vsub.s32 0, %v3149
        %v3151 = vrot.slane %v3132, %v3150
        %v3153 = vmul.f32 %v3146, %v3151
        %v3155 = vlaneseq
        %v3156 = vshrl.u32 %v3155, 7
        %v3157 = vsub.s32 0, %v3156
        %v3158 = vrot.slane %v3133, %v3157
        %v3160 = vadd.f32 %v3153, %v3158
        %3161 = vst.msk [vmem:[%s1016] sm:$0xff] %vm1032, %v3160
      $region116: #{decoder_forward.2} parent=107 // pred_fallthru
        _
      // Predicated region
      $region117: #{decoder_forward.2} parent=107 // pred_check
        %p3162 = pneg %p620
      $region118: #{decoder_forward.2} parent=107 // pred_check_branch
        %3164 = sbr.rel (%p3162) target = $region120
      $region119: #{decoder_forward.2} parent=107 // pred_region
        _
      $region120: #{decoder_forward.2} parent=107 // pred_fallthru
        _
      // Predicated region
      $region121: #{decoder_forward.2} parent=107 // pred_check
        %p3165 = pneg %p620
      $region122: #{decoder_forward.2} parent=107 // pred_check_branch
        %3167 = sbr.rel (%p3165) target = $region124
      $region123: #{decoder_forward.2} parent=107 // pred_region
        _
      $region124: #{decoder_forward.2} parent=107 // pred_fallthru
        _
    $region108: #{decoder_forward.2} parent=5 // pred_fallthru
      _
    %p3168 = scmp.le.s32.totalorder 2, %s28
    // Predicated region
    $region125: #{decoder_forward.2} parent=5 // pred_check
      %p3169 = pneg %p3168
    $region126: #{decoder_forward.2} parent=5 // pred_check_branch
      %3171 = sbr.rel (%p3169) target = $region128
    $region127: #{decoder_forward.2} parent=5 // pred_region
      %s3172 = ssub.s32 %s28, 2
    $region128: #{decoder_forward.2} parent=5 // pred_fallthru
      _
  $region6: #{decoder_forward.2} parent=0 // loop_footer
    %s32 = sadd.s32 1, %s28
  $region7: #{decoder_forward.2} parent=0 // loop_footer_branch
    %27 = sbr.rel target = $region3
  $region8: #{decoder_forward.2} parent=0 // loop_exit
    _

</llo_original>
